<compile_context>
chip_gen: v6e
topology: v6e:2x2x1
jax: 0.10.0
libtpu: 0.0.40
codegen_flags: <defaults>
</compile_context>

<pallas_src>
import functools

import jax
import jax.numpy as jnp
from jax import lax
from jax.experimental import pallas as pl
from jax.experimental.pallas import tpu as pltpu

# ---------------------------------------------------------------------------
# Model / problem constants (small shapes consistent with the module forward).
# ---------------------------------------------------------------------------
NUM_LAYERS = 2            # GNN depth; jk_mode='cat' -> jk_dim = HIDDEN * NUM_LAYERS
HIDDEN = 32               # hidden_dim
MLP_H = 32                # mlp_hidden_dim
TASK_DIM = 4
D_XS, D_XT, D_E = 6, 5, 3
N_S, N_T, N_E, B = 16, 12, 24, 2    # nodes per side, edges, graphs per instance
G = 4                               # total graph instances
G_STK = 2                           # instances stacked per grid step -> grid=(2,)


def _round_up(x, m):
    return (x + m - 1) // m * m


assert G % G_STK == 0
N_STEPS = G // G_STK
N_S_PAD = _round_up(N_S, 8)
N_T_PAD = _round_up(N_T, 8)
S_ROWS = G_STK * N_S_PAD            # stacked s-side node rows per grid step
T_ROWS = G_STK * N_T_PAD            # stacked t-side node rows per grid step
B_ROWS = G_STK * B                  # graphs per grid step
B_ROWS_PAD = _round_up(B_ROWS, 8)
D_IN_PAD = 16                       # >= D_XS + D_XT = 11 (full-dim BlockSpec exception)
LANE_OUT = 128                      # lane-dense output slab width


# ---------------------------------------------------------------------------
# Pallas kernel: G_STK stacked graph instances per grid step, weights resident.
# ---------------------------------------------------------------------------
def ranklist_kernel(x_ref, a_ref, at_ref, ps_ref, pt_ref, smask_ref, tmask_ref,
                    w_in_s_ref, b_in_s_ref, w_in_t_ref, b_in_t_ref,
                    ws_ref, bs_ref, wt_ref, bt_ref,
                    w12a_ref, b12a_ref, w12b_ref, b12b_ref,
                    wta_ref, bta_ref, wtb_ref, btb_ref,
                    out_ref):
    mm = functools.partial(jnp.dot, preferred_element_type=jnp.float32)

    s_mask = smask_ref[...]          # zero on padded s node rows (here all-ones)
    t_mask = tmask_ref[...]          # zero on padded t node rows

    # Input embedding: per-side row-block matmuls (rows are grouped s-then-t;
    # the split at S_ROWS is a free multiple-of-8 sublane cut).  Padded node
    # rows are explicitly zeroed so downstream messages / pooling never see
    # relu(bias) garbage.
    x = x_ref[...]
    h_s = jnp.maximum(mm(x[:S_ROWS], w_in_s_ref[...]) + b_in_s_ref[...], 0.0) * s_mask
    h_t = jnp.maximum(mm(x[S_ROWS:], w_in_t_ref[...]) + b_in_t_ref[...], 0.0) * t_mask

    a = a_ref[...]                   # block-diag over stacked instances [S_ROWS, T_ROWS]
    at = at_ref[...]                 # its transpose (precomputed in glue)
    ps = ps_ref[...]                 # add-pool matrix, s side [B_ROWS_PAD, S_ROWS]
    pt = pt_ref[...]                 # add-pool matrix, t side [B_ROWS_PAD, T_ROWS]

    pooled_s = []
    pooled_t = []
    for l in range(NUM_LAYERS):
        msg_s = mm(a, h_t)           # all stacked instances in one matmul
        msg_t = mm(at, h_s)
        h_s = jnp.maximum(mm(h_s + msg_s, ws_ref[l]) + bs_ref[l], 0.0) * s_mask
        h_t = jnp.maximum(mm(h_t + msg_t, wt_ref[l]) + bt_ref[l], 0.0) * t_mask
        pooled_s.append(mm(ps, h_s))                     # global_add_pool (per graph)
        pooled_t.append(mm(pt, h_t))

    # predictMLP heads 1 & 2 fused; JK-'cat' and pool_s||pool_t concatenates are
    # replaced by accumulated partial matmuls over per-(side, layer) row blocks.
    hid = b12a_ref[...]
    for l in range(NUM_LAYERS):
        hid = hid + mm(pooled_s[l], w12a_ref[l])                   # s-side, layer l
        hid = hid + mm(pooled_t[l], w12a_ref[NUM_LAYERS + l])      # t-side, layer l
    hid = jnp.maximum(hid, 0.0)                                    # [B_ROWS_PAD, 2*MLP_H]

    # Block-diagonal second stage emits x1 || x2 directly in a lane-dense slab.
    xc = mm(hid, w12b_ref[...]) + b12b_ref[...]                    # [B_ROWS_PAD, 128]
    hid_t = jnp.maximum(mm(xc, wta_ref[...]) + bta_ref[...], 0.0)  # mlp_tot hidden
    out_ref[...] = (mm(hid_t, wtb_ref[...]) + btb_ref[...]).astype(out_ref.dtype)


def ranklistnet_forward(X, A, AT, Ps, Pt, s_mask, t_mask, packed_params):
    n_steps = X.shape[0]

    def _step_spec(shape):
        nd = len(shape)
        return pl.BlockSpec((None,) + tuple(shape[1:]),
                            lambda i, nd=nd: (i,) + (0,) * (nd - 1))

    def _const_spec(arr):
        # Constant block index -> weights stay VMEM-resident across grid steps.
        # (Single-buffering them via pipeline_mode=pl.Buffered(1) would reclaim
        # a little more VMEM when tiles grow; skipped at these tiny sizes.)
        nd = arr.ndim
        return pl.BlockSpec(arr.shape, lambda i, nd=nd: (0,) * nd)

    const_ops = (Ps, Pt, s_mask, t_mask) + tuple(packed_params)
    in_specs = ([_step_spec(X.shape), _step_spec(A.shape), _step_spec(AT.shape)]
                + [_const_spec(p) for p in const_ops])

    out = pl.pallas_call(
        ranklist_kernel,
        grid=(n_steps,),
        in_specs=in_specs,
        out_specs=pl.BlockSpec((None, B_ROWS_PAD, LANE_OUT), lambda i: (i, 0, 0)),
        out_shape=jax.ShapeDtypeStruct((n_steps, B_ROWS_PAD, LANE_OUT), jnp.float32),
        compiler_params=pltpu.CompilerParams(dimension_semantics=("parallel",)),
    )(X, A, AT, *const_ops)

    # Unstack: step s, local instance g, graph b  ->  instance s*G_STK+g, graph b.
    return out[:, :B_ROWS, :TASK_DIM].reshape(n_steps * G_STK, B, TASK_DIM)


# ---------------------------------------------------------------------------
# JAX glue: fold edge weighting + structure into dense, instance-stacked
# operands, and pack the raw parameters into MXU-friendly layouts.
# ---------------------------------------------------------------------------
def build_graph_operands(x_s, x_t, edge_attr, src, dst, xs_batch, xt_batch, w_edge):
    g = x_s.shape[0]
    assert g % G_STK == 0
    n_steps = g // G_STK

    def per_instance(xs_i, xt_i, ea_i, src_i, dst_i):
        ew = jnp.sum(ea_i * w_edge, axis=1)                                  # [E]
        a = jnp.zeros((N_S_PAD, N_T_PAD), jnp.float32).at[src_i, dst_i].add(ew)
        at = jnp.zeros((N_T_PAD, N_S_PAD), jnp.float32).at[dst_i, src_i].add(ew)
        xs_p = jnp.zeros((N_S_PAD, D_IN_PAD), jnp.float32).at[:N_S, :D_XS].set(xs_i)
        xt_p = jnp.zeros((N_T_PAD, D_IN_PAD), jnp.float32
                         ).at[:N_T, D_XS:D_XS + D_XT].set(xt_i)
        return a, at, xs_p, xt_p

    a, at, xs_p, xt_p = jax.vmap(per_instance)(x_s, x_t, edge_attr, src, dst)

    eye = jnp.eye(G_STK, dtype=jnp.float32)

    def block_diag(m):    # [n_steps, G_STK, r, c] -> [n_steps, G_STK*r, G_STK*c]
        n, gs, r, c = m.shape
        out = m[:, :, :, None, :] * eye[None, :, None, :, None]   # exact (no matmul)
        return out.reshape(n, gs * r, gs * c)

    A = block_diag(a.reshape(n_steps, G_STK, N_S_PAD, N_T_PAD))
    AT = block_diag(at.reshape(n_steps, G_STK, N_T_PAD, N_S_PAD))

    X = jnp.concatenate([xs_p.reshape(n_steps, S_ROWS, D_IN_PAD),
                         xt_p.reshape(n_steps, T_ROWS, D_IN_PAD)], axis=1)

    # Pooling matrices (identical across grid steps -> constant-index operands).
    ps_local = jnp.zeros((B, N_S_PAD), jnp.float32).at[xs_batch, jnp.arange(N_S)].set(1.0)
    pt_local = jnp.zeros((B, N_T_PAD), jnp.float32).at[xt_batch, jnp.arange(N_T)].set(1.0)
    Ps = jnp.zeros((B_ROWS_PAD, S_ROWS), jnp.float32).at[:B_ROWS].set(
        jnp.kron(eye, ps_local))
    Pt = jnp.zeros((B_ROWS_PAD, T_ROWS), jnp.float32).at[:B_ROWS].set(
        jnp.kron(eye, pt_local))

    # Node-row validity masks (explicitly zero padded node rows in the kernel).
    s_valid = jnp.tile((jnp.arange(N_S_PAD) < N_S).astype(jnp.float32), G_STK)
    t_valid = jnp.tile((jnp.arange(N_T_PAD) < N_T).astype(jnp.float32), G_STK)
    s_mask = jnp.broadcast_to(s_valid[:, None], (S_ROWS, HIDDEN))
    t_mask = jnp.broadcast_to(t_valid[:, None], (T_ROWS, HIDDEN))
    return X, A, AT, Ps, Pt, s_mask, t_mask


def pack_params(params):
    (w_edge, w_in_s, b_in_s, w_in_t, b_in_t, ws_l, bs_l, wt_l, bt_l,
     w1a, b1a, w1b, b1b, w2a, b2a, w2b, b2b, wta, bta, wtb, btb) = params
    H = HIDDEN
    # Per-side input embeddings, padded along the 16-lane input feature axis.
    w_in_s_p = jnp.zeros((D_IN_PAD, H), jnp.float32).at[:D_XS].set(w_in_s)
    w_in_t_p = jnp.zeros((D_IN_PAD, H), jnp.float32).at[D_XS:D_XS + D_XT].set(w_in_t)
    # Heads 1 & 2, stage 1: [w1a | w2a] split into (s,l0),(s,l1),(t,l0),(t,l1) blocks.
    w12a = jnp.concatenate([w1a, w2a], axis=1).reshape(2 * NUM_LAYERS, H, 2 * MLP_H)
    b12a = jnp.concatenate([b1a, b2a], axis=1)                      # [1, 2*MLP_H]
    # Stage 2 block-diagonal + lane padding -> emits x1 || x2 directly.
    w12b = jnp.zeros((2 * MLP_H, LANE_OUT), jnp.float32)
    w12b = w12b.at[:MLP_H, 0:5].set(w1b).at[MLP_H:, 5:10].set(w2b)
    b12b = jnp.zeros((1, LANE_OUT), jnp.float32).at[:, 0:5].set(b1b).at[:, 5:10].set(b2b)
    # mlp_tot, lane padded (extra lanes of xc are exactly zero -> product exact).
    wta_p = jnp.zeros((LANE_OUT, MLP_H), jnp.float32).at[:10].set(wta)
    wtb_p = jnp.zeros((MLP_H, LANE_OUT), jnp.float32).at[:, :TASK_DIM].set(wtb)
    btb_p = jnp.zeros((1, LANE_OUT), jnp.float32).at[:, :TASK_DIM].set(btb)
    return (w_in_s_p, b_in_s, w_in_t_p, b_in_t, ws_l, bs_l, wt_l, bt_l,
            w12a, b12a, w12b, b12b, wta_p, bta, wtb_p, btb_p)


# ---------------------------------------------------------------------------
# Independent plain-JAX reference mirroring the original (unfused) module math.
# HIGHEST matmul precision so the f32 reference is as exact as the kernel path.
# ---------------------------------------------------------------------------
def reference_forward(x_s, x_t, edge_attr, src, dst, xs_batch, xt_batch, params):
    (w_edge, w_in_s, b_in_s, w_in_t, b_in_t, ws_l, bs_l, wt_l, bt_l,
     w1a, b1a, w1b, b1b, w2a, b2a, w2b, b2b, wta, bta, wtb, btb) = params
    relu = lambda v: jnp.maximum(v, 0.0)
    mm = functools.partial(jnp.dot, precision=lax.Precision.HIGHEST,
                           preferred_element_type=jnp.float32)

    ew = jnp.sum(edge_attr * w_edge, axis=1)
    a = jnp.zeros((x_s.shape[0], x_t.shape[0]), jnp.float32).at[src, dst].add(ew)

    h_s = relu(mm(x_s, w_in_s) + b_in_s)
    h_t = relu(mm(x_t, w_in_t) + b_in_t)
    hs_jk, ht_jk = [], []
    for l in range(NUM_LAYERS):
        msg_s = mm(a, h_t)
        msg_t = mm(a.T, h_s)
        h_s = relu(mm(h_s + msg_s, ws_l[l]) + bs_l[l])
        h_t = relu(mm(h_t + msg_t, wt_l[l]) + bt_l[l])
        hs_jk.append(h_s)
        ht_jk.append(h_t)
    xs = jnp.concatenate(hs_jk, axis=1)
    xt = jnp.concatenate(ht_jk, axis=1)
    pool_s = jnp.zeros((B, xs.shape[1]), jnp.float32).at[xs_batch].add(xs)
    pool_t = jnp.zeros((B, xt.shape[1]), jnp.float32).at[xt_batch].add(xt)
    x = jnp.concatenate([pool_s, pool_t], axis=1)
    x1 = mm(relu(mm(x, w1a) + b1a), w1b) + b1b
    x2 = mm(relu(mm(x, w2a) + b2a), w2b) + b2b
    xc = jnp.concatenate([x1, x2], axis=1)
    return mm(relu(mm(xc, wta) + bta), wtb) + btb


def _linear(key, fan_in, fan_out):
    """Deterministic nn.Linear-style init: U(-1/sqrt(fan_in), 1/sqrt(fan_in))."""
    kw, kb = jax.random.split(key)
    a = 1.0 / jnp.sqrt(jnp.float32(fan_in))
    w = jax.random.uniform(kw, (fan_in, fan_out), jnp.float32, -a, a)
    b = jax.random.uniform(kb, (1, fan_out), jnp.float32, -a, a)
    return w, b


if __name__ == "__main__":
    key = jax.random.PRNGKey(0)
    dkeys = jax.random.split(key, 6)

    # Per-instance graph data.
    x_s = jax.random.normal(dkeys[0], (G, N_S, D_XS), jnp.float32)
    x_t = jax.random.normal(dkeys[1], (G, N_T, D_XT), jnp.float32)
    edge_attr = jax.random.normal(dkeys[2], (G, N_E, D_E), jnp.float32)
    src = jax.random.randint(dkeys[3], (G, N_E), 0, N_S)
    dst = jax.random.randint(dkeys[4], (G, N_E), 0, N_T)
    xs_batch = jnp.concatenate([jnp.zeros(N_S // 2, jnp.int32),
                                jnp.ones(N_S - N_S // 2, jnp.int32)])
    xt_batch = jnp.concatenate([jnp.zeros(N_T // 2, jnp.int32),
                                jnp.ones(N_T - N_T // 2, jnp.int32)])

    # Deterministic parameters.
    pkeys = jax.random.split(dkeys[5], 12)
    w_edge = jax.random.uniform(pkeys[0], (1, D_E), jnp.float32, -1.0, 1.0) / jnp.sqrt(
        jnp.float32(D_E))
    w_in_s, b_in_s = _linear(pkeys[1], D_XS, HIDDEN)
    w_in_t, b_in_t = _linear(pkeys[2], D_XT, HIDDEN)
    lkeys = jax.random.split(pkeys[3], 2 * NUM_LAYERS)
    ws, bs, wt, bt = [], [], [], []
    for l in range(NUM_LAYERS):
        w, b_ = _linear(lkeys[2 * l], HIDDEN, HIDDEN); ws.append(w); bs.append(b_)
        w, b_ = _linear(lkeys[2 * l + 1], HIDDEN, HIDDEN); wt.append(w); bt.append(b_)
    ws_l, bs_l = jnp.stack(ws), jnp.stack(bs)
    wt_l, bt_l = jnp.stack(wt), jnp.stack(bt)
    jk = HIDDEN * NUM_LAYERS
    w1a, b1a = _linear(pkeys[4], 2 * jk, MLP_H)
    w1b, b1b = _linear(pkeys[5], MLP_H, 5)
    w2a, b2a = _linear(pkeys[6], 2 * jk, MLP_H)
    w2b, b2b = _linear(pkeys[7], MLP_H, 5)
    wta, bta = _linear(pkeys[8], 10, MLP_H)
    wtb, btb = _linear(pkeys[9], MLP_H, TASK_DIM)

    params = (w_edge, w_in_s, b_in_s, w_in_t, b_in_t, ws_l, bs_l, wt_l, bt_l,
              w1a, b1a, w1b, b1b, w2a, b2a, w2b, b2b, wta, bta, wtb, btb)

    # Glue: fold edge weighting + structure into dense stacked operands (the
    # edge_index / batch-vector scatters have no clean in-kernel Pallas path).
    operands = build_graph_operands(x_s, x_t, edge_attr, src, dst,
                                    xs_batch, xt_batch, w_edge)
    packed = pack_params(params)

    out = ranklistnet_forward(*operands, packed)
    out = jax.block_until_ready(out)
    assert out.shape == (G, B, TASK_DIM), out.shape

    ref = jnp.stack([
        reference_forward(x_s[g], x_t[g], edge_attr[g], src[g], dst[g],
                          xs_batch, xt_batch, params)
        for g in range(G)
    ])
    assert jnp.allclose(out, ref, rtol=1e-5, atol=1e-5), (
        float(jnp.max(jnp.abs(out - ref))))

    print("KERNEL_OK")
</pallas_src>

<mosaic_0001>
module attributes {stable_mosaic.version = 11 : i64} {
  func.func @ranklist_kernel(%arg0: i32, %arg1: memref<1x64x16xf32, #tpu.memory_space<vmem>>, %arg2: memref<1x32x32xf32, #tpu.memory_space<vmem>>, %arg3: memref<1x32x32xf32, #tpu.memory_space<vmem>>, %arg4: memref<8x32xf32, #tpu.memory_space<vmem>>, %arg5: memref<8x32xf32, #tpu.memory_space<vmem>>, %arg6: memref<32x32xf32, #tpu.memory_space<vmem>>, %arg7: memref<32x32xf32, #tpu.memory_space<vmem>>, %arg8: memref<16x32xf32, #tpu.memory_space<vmem>>, %arg9: memref<1x32xf32, #tpu.memory_space<vmem>>, %arg10: memref<16x32xf32, #tpu.memory_space<vmem>>, %arg11: memref<1x32xf32, #tpu.memory_space<vmem>>, %arg12: memref<2x32x32xf32, #tpu.memory_space<vmem>>, %arg13: memref<2x1x32xf32, #tpu.memory_space<vmem>>, %arg14: memref<2x32x32xf32, #tpu.memory_space<vmem>>, %arg15: memref<2x1x32xf32, #tpu.memory_space<vmem>>, %arg16: memref<4x32x64xf32, #tpu.memory_space<vmem>>, %arg17: memref<1x64xf32, #tpu.memory_space<vmem>>, %arg18: memref<64x128xf32, #tpu.memory_space<vmem>>, %arg19: memref<1x128xf32, #tpu.memory_space<vmem>>, %arg20: memref<128x32xf32, #tpu.memory_space<vmem>>, %arg21: memref<1x32xf32, #tpu.memory_space<vmem>>, %arg22: memref<32x128xf32, #tpu.memory_space<vmem>>, %arg23: memref<1x128xf32, #tpu.memory_space<vmem>>, %arg24: memref<1x8x128xf32, #tpu.memory_space<vmem>>) attributes {dimension_semantics = [#tpu.dimension_semantics<parallel>], iteration_bounds = array<i64: 2>, scalar_prefetch = 0 : i64, scratch_operands = 0 : i64, tpu.core_type = #tpu.core_type<tc>, window_params = [{transform_indices = @transform_0, window_bounds = array<i64: 1, 64, 16>}, {transform_indices = @transform_1, window_bounds = array<i64: 1, 32, 32>}, {transform_indices = @transform_2, window_bounds = array<i64: 1, 32, 32>}, {pipeline_mode = #tpu.pipeline_mode<synchronous>, transform_indices = @transform_3, window_bounds = array<i64: 8, 32>}, {pipeline_mode = #tpu.pipeline_mode<synchronous>, transform_indices = @transform_4, window_bounds = array<i64: 8, 32>}, {pipeline_mode = #tpu.pipeline_mode<synchronous>, transform_indices = @transform_5, window_bounds = array<i64: 32, 32>}, {pipeline_mode = #tpu.pipeline_mode<synchronous>, transform_indices = @transform_6, window_bounds = array<i64: 32, 32>}, {pipeline_mode = #tpu.pipeline_mode<synchronous>, transform_indices = @transform_7, window_bounds = array<i64: 16, 32>}, {pipeline_mode = #tpu.pipeline_mode<synchronous>, transform_indices = @transform_8, window_bounds = array<i64: 1, 32>}, {pipeline_mode = #tpu.pipeline_mode<synchronous>, transform_indices = @transform_9, window_bounds = array<i64: 16, 32>}, {pipeline_mode = #tpu.pipeline_mode<synchronous>, transform_indices = @transform_10, window_bounds = array<i64: 1, 32>}, {pipeline_mode = #tpu.pipeline_mode<synchronous>, transform_indices = @transform_11, window_bounds = array<i64: 2, 32, 32>}, {pipeline_mode = #tpu.pipeline_mode<synchronous>, transform_indices = @transform_12, window_bounds = array<i64: 2, 1, 32>}, {pipeline_mode = #tpu.pipeline_mode<synchronous>, transform_indices = @transform_13, window_bounds = array<i64: 2, 32, 32>}, {pipeline_mode = #tpu.pipeline_mode<synchronous>, transform_indices = @transform_14, window_bounds = array<i64: 2, 1, 32>}, {pipeline_mode = #tpu.pipeline_mode<synchronous>, transform_indices = @transform_15, window_bounds = array<i64: 4, 32, 64>}, {pipeline_mode = #tpu.pipeline_mode<synchronous>, transform_indices = @transform_16, window_bounds = array<i64: 1, 64>}, {pipeline_mode = #tpu.pipeline_mode<synchronous>, transform_indices = @transform_17, window_bounds = array<i64: 64, 128>}, {pipeline_mode = #tpu.pipeline_mode<synchronous>, transform_indices = @transform_18, window_bounds = array<i64: 1, 128>}, {pipeline_mode = #tpu.pipeline_mode<synchronous>, transform_indices = @transform_19, window_bounds = array<i64: 128, 32>}, {pipeline_mode = #tpu.pipeline_mode<synchronous>, transform_indices = @transform_20, window_bounds = array<i64: 1, 32>}, {pipeline_mode = #tpu.pipeline_mode<synchronous>, transform_indices = @transform_21, window_bounds = array<i64: 32, 128>}, {pipeline_mode = #tpu.pipeline_mode<synchronous>, transform_indices = @transform_22, window_bounds = array<i64: 1, 128>}, {transform_indices = @transform_23, window_bounds = array<i64: 1, 8, 128>}]} {
    %c0 = arith.constant 0 : index
    %c0_0 = arith.constant 0 : index
    %0 = vector.load %arg6[%c0, %c0_0] : memref<32x32xf32, #tpu.memory_space<vmem>>, vector<32x32xf32>
    %c0_1 = arith.constant 0 : index
    %c0_2 = arith.constant 0 : index
    %1 = vector.load %arg7[%c0_1, %c0_2] : memref<32x32xf32, #tpu.memory_space<vmem>>, vector<32x32xf32>
    %c0_3 = arith.constant 0 : index
    %c0_4 = arith.constant 0 : index
    %c0_5 = arith.constant 0 : index
    %2 = vector.load %arg1[%c0_3, %c0_4, %c0_5] : memref<1x64x16xf32, #tpu.memory_space<vmem>>, vector<1x64x16xf32>
    %3 = vector.shape_cast %2 : vector<1x64x16xf32> to vector<64x16xf32>
    %4 = vector.extract_strided_slice %3 {offsets = [0, 0], sizes = [32, 16], strides = [1, 1]} : vector<64x16xf32> to vector<32x16xf32>
    %c0_6 = arith.constant 0 : index
    %c0_7 = arith.constant 0 : index
    %5 = vector.load %arg8[%c0_6, %c0_7] : memref<16x32xf32, #tpu.memory_space<vmem>>, vector<16x32xf32>
    %cst = arith.constant dense<0.000000e+00> : vector<32x32xf32>
    %6 = tpu.matmul %4, %5, %cst {dimension_numbers = #tpu.dot_dimension_numbers<[1], [0], [0], [1], [0, 0, 1, 1], [], []>} : vector<32x16xf32>, vector<16x32xf32>, vector<32x32xf32> -> vector<32x32xf32>
    %c0_8 = arith.constant 0 : index
    %c0_9 = arith.constant 0 : index
    %7 = vector.load %arg9[%c0_8, %c0_9] : memref<1x32xf32, #tpu.memory_space<vmem>>, vector<1x32xf32>
    %8 = vector.broadcast %7 : vector<1x32xf32> to vector<32x32xf32>
    %9 = arith.addf %6, %8 : vector<32x32xf32>
    %cst_10 = arith.constant 0.000000e+00 : f32
    %10 = vector.broadcast %cst_10 : f32 to vector<32x32xf32>
    %11 = arith.maximumf %9, %10 : vector<32x32xf32>
    %12 = arith.mulf %11, %0 : vector<32x32xf32>
    %13 = vector.extract_strided_slice %3 {offsets = [32, 0], sizes = [32, 16], strides = [1, 1]} : vector<64x16xf32> to vector<32x16xf32>
    %c0_11 = arith.constant 0 : index
    %c0_12 = arith.constant 0 : index
    %14 = vector.load %arg10[%c0_11, %c0_12] : memref<16x32xf32, #tpu.memory_space<vmem>>, vector<16x32xf32>
    %cst_13 = arith.constant dense<0.000000e+00> : vector<32x32xf32>
    %15 = tpu.matmul %13, %14, %cst_13 {dimension_numbers = #tpu.dot_dimension_numbers<[1], [0], [0], [1], [0, 0, 1, 1], [], []>} : vector<32x16xf32>, vector<16x32xf32>, vector<32x32xf32> -> vector<32x32xf32>
    %c0_14 = arith.constant 0 : index
    %c0_15 = arith.constant 0 : index
    %16 = vector.load %arg11[%c0_14, %c0_15] : memref<1x32xf32, #tpu.memory_space<vmem>>, vector<1x32xf32>
    %17 = vector.broadcast %16 : vector<1x32xf32> to vector<32x32xf32>
    %18 = arith.addf %15, %17 : vector<32x32xf32>
    %cst_16 = arith.constant 0.000000e+00 : f32
    %19 = vector.broadcast %cst_16 : f32 to vector<32x32xf32>
    %20 = arith.maximumf %18, %19 : vector<32x32xf32>
    %21 = arith.mulf %20, %1 : vector<32x32xf32>
    %c0_17 = arith.constant 0 : index
    %c0_18 = arith.constant 0 : index
    %c0_19 = arith.constant 0 : index
    %22 = vector.load %arg2[%c0_17, %c0_18, %c0_19] : memref<1x32x32xf32, #tpu.memory_space<vmem>>, vector<1x32x32xf32>
    %23 = vector.shape_cast %22 : vector<1x32x32xf32> to vector<32x32xf32>
    %c0_20 = arith.constant 0 : index
    %c0_21 = arith.constant 0 : index
    %c0_22 = arith.constant 0 : index
    %24 = vector.load %arg3[%c0_20, %c0_21, %c0_22] : memref<1x32x32xf32, #tpu.memory_space<vmem>>, vector<1x32x32xf32>
    %25 = vector.shape_cast %24 : vector<1x32x32xf32> to vector<32x32xf32>
    %c0_23 = arith.constant 0 : index
    %c0_24 = arith.constant 0 : index
    %26 = vector.load %arg4[%c0_23, %c0_24] : memref<8x32xf32, #tpu.memory_space<vmem>>, vector<8x32xf32>
    %c0_25 = arith.constant 0 : index
    %c0_26 = arith.constant 0 : index
    %27 = vector.load %arg5[%c0_25, %c0_26] : memref<8x32xf32, #tpu.memory_space<vmem>>, vector<8x32xf32>
    %cst_27 = arith.constant dense<0.000000e+00> : vector<32x32xf32>
    %28 = tpu.matmul %23, %21, %cst_27 {dimension_numbers = #tpu.dot_dimension_numbers<[1], [0], [0], [1], [0, 0, 1, 1], [], []>} : vector<32x32xf32>, vector<32x32xf32>, vector<32x32xf32> -> vector<32x32xf32>
    %cst_28 = arith.constant dense<0.000000e+00> : vector<32x32xf32>
    %29 = tpu.matmul %25, %12, %cst_28 {dimension_numbers = #tpu.dot_dimension_numbers<[1], [0], [0], [1], [0, 0, 1, 1], [], []>} : vector<32x32xf32>, vector<32x32xf32>, vector<32x32xf32> -> vector<32x32xf32>
    %30 = arith.addf %12, %28 : vector<32x32xf32>
    %c0_29 = arith.constant 0 : index
    %c0_30 = arith.constant 0 : index
    %c0_31 = arith.constant 0 : index
    %31 = vector.load %arg12[%c0_29, %c0_30, %c0_31] : memref<2x32x32xf32, #tpu.memory_space<vmem>>, vector<1x32x32xf32>
    %32 = vector.shape_cast %31 : vector<1x32x32xf32> to vector<32x32xf32>
    %cst_32 = arith.constant dense<0.000000e+00> : vector<32x32xf32>
    %33 = tpu.matmul %30, %32, %cst_32 {dimension_numbers = #tpu.dot_dimension_numbers<[1], [0], [0], [1], [0, 0, 1, 1], [], []>} : vector<32x32xf32>, vector<32x32xf32>, vector<32x32xf32> -> vector<32x32xf32>
    %c0_33 = arith.constant 0 : index
    %c0_34 = arith.constant 0 : index
    %c0_35 = arith.constant 0 : index
    %34 = vector.load %arg13[%c0_33, %c0_34, %c0_35] : memref<2x1x32xf32, #tpu.memory_space<vmem>>, vector<1x1x32xf32>
    %35 = vector.shape_cast %34 : vector<1x1x32xf32> to vector<1x32xf32>
    %36 = vector.broadcast %35 : vector<1x32xf32> to vector<32x32xf32>
    %37 = arith.addf %33, %36 : vector<32x32xf32>
    %cst_36 = arith.constant 0.000000e+00 : f32
    %38 = vector.broadcast %cst_36 : f32 to vector<32x32xf32>
    %39 = arith.maximumf %37, %38 : vector<32x32xf32>
    %40 = arith.mulf %39, %0 : vector<32x32xf32>
    %41 = arith.addf %21, %29 : vector<32x32xf32>
    %c0_37 = arith.constant 0 : index
    %c0_38 = arith.constant 0 : index
    %c0_39 = arith.constant 0 : index
    %42 = vector.load %arg14[%c0_37, %c0_38, %c0_39] : memref<2x32x32xf32, #tpu.memory_space<vmem>>, vector<1x32x32xf32>
    %43 = vector.shape_cast %42 : vector<1x32x32xf32> to vector<32x32xf32>
    %cst_40 = arith.constant dense<0.000000e+00> : vector<32x32xf32>
    %44 = tpu.matmul %41, %43, %cst_40 {dimension_numbers = #tpu.dot_dimension_numbers<[1], [0], [0], [1], [0, 0, 1, 1], [], []>} : vector<32x32xf32>, vector<32x32xf32>, vector<32x32xf32> -> vector<32x32xf32>
    %c0_41 = arith.constant 0 : index
    %c0_42 = arith.constant 0 : index
    %c0_43 = arith.constant 0 : index
    %45 = vector.load %arg15[%c0_41, %c0_42, %c0_43] : memref<2x1x32xf32, #tpu.memory_space<vmem>>, vector<1x1x32xf32>
    %46 = vector.shape_cast %45 : vector<1x1x32xf32> to vector<1x32xf32>
    %47 = vector.broadcast %46 : vector<1x32xf32> to vector<32x32xf32>
    %48 = arith.addf %44, %47 : vector<32x32xf32>
    %cst_44 = arith.constant 0.000000e+00 : f32
    %49 = vector.broadcast %cst_44 : f32 to vector<32x32xf32>
    %50 = arith.maximumf %48, %49 : vector<32x32xf32>
    %51 = arith.mulf %50, %1 : vector<32x32xf32>
    %cst_45 = arith.constant dense<0.000000e+00> : vector<8x32xf32>
    %52 = tpu.matmul %26, %40, %cst_45 {dimension_numbers = #tpu.dot_dimension_numbers<[1], [0], [0], [1], [0, 0, 1, 1], [], []>} : vector<8x32xf32>, vector<32x32xf32>, vector<8x32xf32> -> vector<8x32xf32>
    %cst_46 = arith.constant dense<0.000000e+00> : vector<8x32xf32>
    %53 = tpu.matmul %27, %51, %cst_46 {dimension_numbers = #tpu.dot_dimension_numbers<[1], [0], [0], [1], [0, 0, 1, 1], [], []>} : vector<8x32xf32>, vector<32x32xf32>, vector<8x32xf32> -> vector<8x32xf32>
    %cst_47 = arith.constant dense<0.000000e+00> : vector<32x32xf32>
    %54 = tpu.matmul %23, %51, %cst_47 {dimension_numbers = #tpu.dot_dimension_numbers<[1], [0], [0], [1], [0, 0, 1, 1], [], []>} : vector<32x32xf32>, vector<32x32xf32>, vector<32x32xf32> -> vector<32x32xf32>
    %cst_48 = arith.constant dense<0.000000e+00> : vector<32x32xf32>
    %55 = tpu.matmul %25, %40, %cst_48 {dimension_numbers = #tpu.dot_dimension_numbers<[1], [0], [0], [1], [0, 0, 1, 1], [], []>} : vector<32x32xf32>, vector<32x32xf32>, vector<32x32xf32> -> vector<32x32xf32>
    %56 = arith.addf %40, %54 : vector<32x32xf32>
    %c1 = arith.constant 1 : index
    %c0_49 = arith.constant 0 : index
    %c0_50 = arith.constant 0 : index
    %57 = vector.load %arg12[%c1, %c0_49, %c0_50] : memref<2x32x32xf32, #tpu.memory_space<vmem>>, vector<1x32x32xf32>
    %58 = vector.shape_cast %57 : vector<1x32x32xf32> to vector<32x32xf32>
    %cst_51 = arith.constant dense<0.000000e+00> : vector<32x32xf32>
    %59 = tpu.matmul %56, %58, %cst_51 {dimension_numbers = #tpu.dot_dimension_numbers<[1], [0], [0], [1], [0, 0, 1, 1], [], []>} : vector<32x32xf32>, vector<32x32xf32>, vector<32x32xf32> -> vector<32x32xf32>
    %c1_52 = arith.constant 1 : index
    %c0_53 = arith.constant 0 : index
    %c0_54 = arith.constant 0 : index
    %60 = vector.load %arg13[%c1_52, %c0_53, %c0_54] : memref<2x1x32xf32, #tpu.memory_space<vmem>>, vector<1x1x32xf32>
    %61 = vector.shape_cast %60 : vector<1x1x32xf32> to vector<1x32xf32>
    %62 = vector.broadcast %61 : vector<1x32xf32> to vector<32x32xf32>
    %63 = arith.addf %59, %62 : vector<32x32xf32>
    %cst_55 = arith.constant 0.000000e+00 : f32
    %64 = vector.broadcast %cst_55 : f32 to vector<32x32xf32>
    %65 = arith.maximumf %63, %64 : vector<32x32xf32>
    %66 = arith.mulf %65, %0 : vector<32x32xf32>
    %67 = arith.addf %51, %55 : vector<32x32xf32>
    %c1_56 = arith.constant 1 : index
    %c0_57 = arith.constant 0 : index
    %c0_58 = arith.constant 0 : index
    %68 = vector.load %arg14[%c1_56, %c0_57, %c0_58] : memref<2x32x32xf32, #tpu.memory_space<vmem>>, vector<1x32x32xf32>
    %69 = vector.shape_cast %68 : vector<1x32x32xf32> to vector<32x32xf32>
    %cst_59 = arith.constant dense<0.000000e+00> : vector<32x32xf32>
    %70 = tpu.matmul %67, %69, %cst_59 {dimension_numbers = #tpu.dot_dimension_numbers<[1], [0], [0], [1], [0, 0, 1, 1], [], []>} : vector<32x32xf32>, vector<32x32xf32>, vector<32x32xf32> -> vector<32x32xf32>
    %c1_60 = arith.constant 1 : index
    %c0_61 = arith.constant 0 : index
    %c0_62 = arith.constant 0 : index
    %71 = vector.load %arg15[%c1_60, %c0_61, %c0_62] : memref<2x1x32xf32, #tpu.memory_space<vmem>>, vector<1x1x32xf32>
    %72 = vector.shape_cast %71 : vector<1x1x32xf32> to vector<1x32xf32>
    %73 = vector.broadcast %72 : vector<1x32xf32> to vector<32x32xf32>
    %74 = arith.addf %70, %73 : vector<32x32xf32>
    %cst_63 = arith.constant 0.000000e+00 : f32
    %75 = vector.broadcast %cst_63 : f32 to vector<32x32xf32>
    %76 = arith.maximumf %74, %75 : vector<32x32xf32>
    %77 = arith.mulf %76, %1 : vector<32x32xf32>
    %cst_64 = arith.constant dense<0.000000e+00> : vector<8x32xf32>
    %78 = tpu.matmul %26, %66, %cst_64 {dimension_numbers = #tpu.dot_dimension_numbers<[1], [0], [0], [1], [0, 0, 1, 1], [], []>} : vector<8x32xf32>, vector<32x32xf32>, vector<8x32xf32> -> vector<8x32xf32>
    %cst_65 = arith.constant dense<0.000000e+00> : vector<8x32xf32>
    %79 = tpu.matmul %27, %77, %cst_65 {dimension_numbers = #tpu.dot_dimension_numbers<[1], [0], [0], [1], [0, 0, 1, 1], [], []>} : vector<8x32xf32>, vector<32x32xf32>, vector<8x32xf32> -> vector<8x32xf32>
    %c0_66 = arith.constant 0 : index
    %c0_67 = arith.constant 0 : index
    %80 = vector.load %arg17[%c0_66, %c0_67] : memref<1x64xf32, #tpu.memory_space<vmem>>, vector<1x64xf32>
    %c0_68 = arith.constant 0 : index
    %c0_69 = arith.constant 0 : index
    %c0_70 = arith.constant 0 : index
    %81 = vector.load %arg16[%c0_68, %c0_69, %c0_70] : memref<4x32x64xf32, #tpu.memory_space<vmem>>, vector<1x32x64xf32>
    %82 = vector.shape_cast %81 : vector<1x32x64xf32> to vector<32x64xf32>
    %cst_71 = arith.constant dense<0.000000e+00> : vector<8x64xf32>
    %83 = tpu.matmul %52, %82, %cst_71 {dimension_numbers = #tpu.dot_dimension_numbers<[1], [0], [0], [1], [0, 0, 1, 1], [], []>} : vector<8x32xf32>, vector<32x64xf32>, vector<8x64xf32> -> vector<8x64xf32>
    %84 = vector.broadcast %80 : vector<1x64xf32> to vector<8x64xf32>
    %85 = arith.addf %84, %83 : vector<8x64xf32>
    %c2 = arith.constant 2 : index
    %c0_72 = arith.constant 0 : index
    %c0_73 = arith.constant 0 : index
    %86 = vector.load %arg16[%c2, %c0_72, %c0_73] : memref<4x32x64xf32, #tpu.memory_space<vmem>>, vector<1x32x64xf32>
    %87 = vector.shape_cast %86 : vector<1x32x64xf32> to vector<32x64xf32>
    %cst_74 = arith.constant dense<0.000000e+00> : vector<8x64xf32>
    %88 = tpu.matmul %53, %87, %cst_74 {dimension_numbers = #tpu.dot_dimension_numbers<[1], [0], [0], [1], [0, 0, 1, 1], [], []>} : vector<8x32xf32>, vector<32x64xf32>, vector<8x64xf32> -> vector<8x64xf32>
    %89 = arith.addf %85, %88 : vector<8x64xf32>
    %c1_75 = arith.constant 1 : index
    %c0_76 = arith.constant 0 : index
    %c0_77 = arith.constant 0 : index
    %90 = vector.load %arg16[%c1_75, %c0_76, %c0_77] : memref<4x32x64xf32, #tpu.memory_space<vmem>>, vector<1x32x64xf32>
    %91 = vector.shape_cast %90 : vector<1x32x64xf32> to vector<32x64xf32>
    %cst_78 = arith.constant dense<0.000000e+00> : vector<8x64xf32>
    %92 = tpu.matmul %78, %91, %cst_78 {dimension_numbers = #tpu.dot_dimension_numbers<[1], [0], [0], [1], [0, 0, 1, 1], [], []>} : vector<8x32xf32>, vector<32x64xf32>, vector<8x64xf32> -> vector<8x64xf32>
    %93 = arith.addf %89, %92 : vector<8x64xf32>
    %c3 = arith.constant 3 : index
    %c0_79 = arith.constant 0 : index
    %c0_80 = arith.constant 0 : index
    %94 = vector.load %arg16[%c3, %c0_79, %c0_80] : memref<4x32x64xf32, #tpu.memory_space<vmem>>, vector<1x32x64xf32>
    %95 = vector.shape_cast %94 : vector<1x32x64xf32> to vector<32x64xf32>
    %cst_81 = arith.constant dense<0.000000e+00> : vector<8x64xf32>
    %96 = tpu.matmul %79, %95, %cst_81 {dimension_numbers = #tpu.dot_dimension_numbers<[1], [0], [0], [1], [0, 0, 1, 1], [], []>} : vector<8x32xf32>, vector<32x64xf32>, vector<8x64xf32> -> vector<8x64xf32>
    %97 = arith.addf %93, %96 : vector<8x64xf32>
    %cst_82 = arith.constant 0.000000e+00 : f32
    %98 = vector.broadcast %cst_82 : f32 to vector<8x64xf32>
    %99 = arith.maximumf %97, %98 : vector<8x64xf32>
    %c0_83 = arith.constant 0 : index
    %c0_84 = arith.constant 0 : index
    %100 = vector.load %arg18[%c0_83, %c0_84] : memref<64x128xf32, #tpu.memory_space<vmem>>, vector<64x128xf32>
    %cst_85 = arith.constant dense<0.000000e+00> : vector<8x128xf32>
    %101 = tpu.matmul %99, %100, %cst_85 {dimension_numbers = #tpu.dot_dimension_numbers<[1], [0], [0], [1], [0, 0, 1, 1], [], []>} : vector<8x64xf32>, vector<64x128xf32>, vector<8x128xf32> -> vector<8x128xf32>
    %c0_86 = arith.constant 0 : index
    %c0_87 = arith.constant 0 : index
    %102 = vector.load %arg19[%c0_86, %c0_87] : memref<1x128xf32, #tpu.memory_space<vmem>>, vector<1x128xf32>
    %103 = vector.broadcast %102 : vector<1x128xf32> to vector<8x128xf32>
    %104 = arith.addf %101, %103 : vector<8x128xf32>
    %c0_88 = arith.constant 0 : index
    %c0_89 = arith.constant 0 : index
    %105 = vector.load %arg20[%c0_88, %c0_89] : memref<128x32xf32, #tpu.memory_space<vmem>>, vector<128x32xf32>
    %cst_90 = arith.constant dense<0.000000e+00> : vector<8x32xf32>
    %106 = tpu.matmul %104, %105, %cst_90 {dimension_numbers = #tpu.dot_dimension_numbers<[1], [0], [0], [1], [0, 0, 1, 1], [], []>} : vector<8x128xf32>, vector<128x32xf32>, vector<8x32xf32> -> vector<8x32xf32>
    %c0_91 = arith.constant 0 : index
    %c0_92 = arith.constant 0 : index
    %107 = vector.load %arg21[%c0_91, %c0_92] : memref<1x32xf32, #tpu.memory_space<vmem>>, vector<1x32xf32>
    %108 = vector.broadcast %107 : vector<1x32xf32> to vector<8x32xf32>
    %109 = arith.addf %106, %108 : vector<8x32xf32>
    %cst_93 = arith.constant 0.000000e+00 : f32
    %110 = vector.broadcast %cst_93 : f32 to vector<8x32xf32>
    %111 = arith.maximumf %109, %110 : vector<8x32xf32>
    %c0_94 = arith.constant 0 : index
    %c0_95 = arith.constant 0 : index
    %112 = vector.load %arg22[%c0_94, %c0_95] : memref<32x128xf32, #tpu.memory_space<vmem>>, vector<32x128xf32>
    %cst_96 = arith.constant dense<0.000000e+00> : vector<8x128xf32>
    %113 = tpu.matmul %111, %112, %cst_96 {dimension_numbers = #tpu.dot_dimension_numbers<[1], [0], [0], [1], [0, 0, 1, 1], [], []>} : vector<8x32xf32>, vector<32x128xf32>, vector<8x128xf32> -> vector<8x128xf32>
    %c0_97 = arith.constant 0 : index
    %c0_98 = arith.constant 0 : index
    %114 = vector.load %arg23[%c0_97, %c0_98] : memref<1x128xf32, #tpu.memory_space<vmem>>, vector<1x128xf32>
    %115 = vector.broadcast %114 : vector<1x128xf32> to vector<8x128xf32>
    %116 = arith.addf %113, %115 : vector<8x128xf32>
    %c0_99 = arith.constant 0 : index
    %c0_100 = arith.constant 0 : index
    %c0_101 = arith.constant 0 : index
    %117 = vector.load %arg24[%c0_99, %c0_100, %c0_101] : memref<1x8x128xf32, #tpu.memory_space<vmem>>, vector<1x8x128xf32>
    %118 = vector.shape_cast %117 : vector<1x8x128xf32> to vector<8x128xf32>
    %119 = vector.shape_cast %116 : vector<8x128xf32> to vector<1x8x128xf32>
    tpu.vector_store %arg24[%c0_99, %c0_100, %c0_101], %119 {strides = array<i32>} : memref<1x8x128xf32, #tpu.memory_space<vmem>>, vector<1x8x128xf32>,
    return
  }
  func.func @transform_0(%arg0: i32) -> (i32, i32, i32) {
    %c0_i32 = arith.constant 0 : i32
    %c0_i32_0 = arith.constant 0 : i32
    %c0_i32_1 = arith.constant 0 : i32
    return %arg0, %c0_i32, %c0_i32_0 : i32, i32, i32
  }
  func.func @transform_1(%arg0: i32) -> (i32, i32, i32) {
    %c0_i32 = arith.constant 0 : i32
    %c0_i32_0 = arith.constant 0 : i32
    %c0_i32_1 = arith.constant 0 : i32
    return %arg0, %c0_i32, %c0_i32_0 : i32, i32, i32
  }
  func.func @transform_2(%arg0: i32) -> (i32, i32, i32) {
    %c0_i32 = arith.constant 0 : i32
    %c0_i32_0 = arith.constant 0 : i32
    %c0_i32_1 = arith.constant 0 : i32
    return %arg0, %c0_i32, %c0_i32_0 : i32, i32, i32
  }
  func.func @transform_3(%arg0: i32) -> (i32, i32) {
    %c0_i32 = arith.constant 0 : i32
    %c0_i32_0 = arith.constant 0 : i32
    %c0_i32_1 = arith.constant 0 : i32
    return %c0_i32, %c0_i32_0 : i32, i32
  }
  func.func @transform_4(%arg0: i32) -> (i32, i32) {
    %c0_i32 = arith.constant 0 : i32
    %c0_i32_0 = arith.constant 0 : i32
    %c0_i32_1 = arith.constant 0 : i32
    return %c0_i32, %c0_i32_0 : i32, i32
  }
  func.func @transform_5(%arg0: i32) -> (i32, i32) {
    %c0_i32 = arith.constant 0 : i32
    %c0_i32_0 = arith.constant 0 : i32
    %c0_i32_1 = arith.constant 0 : i32
    return %c0_i32, %c0_i32_0 : i32, i32
  }
  func.func @transform_6(%arg0: i32) -> (i32, i32) {
    %c0_i32 = arith.constant 0 : i32
    %c0_i32_0 = arith.constant 0 : i32
    %c0_i32_1 = arith.constant 0 : i32
    return %c0_i32, %c0_i32_0 : i32, i32
  }
  func.func @transform_7(%arg0: i32) -> (i32, i32) {
    %c0_i32 = arith.constant 0 : i32
    %c0_i32_0 = arith.constant 0 : i32
    %c0_i32_1 = arith.constant 0 : i32
    return %c0_i32, %c0_i32_0 : i32, i32
  }
  func.func @transform_8(%arg0: i32) -> (i32, i32) {
    %c0_i32 = arith.constant 0 : i32
    %c0_i32_0 = arith.constant 0 : i32
    %c0_i32_1 = arith.constant 0 : i32
    return %c0_i32, %c0_i32_0 : i32, i32
  }
  func.func @transform_9(%arg0: i32) -> (i32, i32) {
    %c0_i32 = arith.constant 0 : i32
    %c0_i32_0 = arith.constant 0 : i32
    %c0_i32_1 = arith.constant 0 : i32
    return %c0_i32, %c0_i32_0 : i32, i32
  }
  func.func @transform_10(%arg0: i32) -> (i32, i32) {
    %c0_i32 = arith.constant 0 : i32
    %c0_i32_0 = arith.constant 0 : i32
    %c0_i32_1 = arith.constant 0 : i32
    return %c0_i32, %c0_i32_0 : i32, i32
  }
  func.func @transform_11(%arg0: i32) -> (i32, i32, i32) {
    %c0_i32 = arith.constant 0 : i32
    %c0_i32_0 = arith.constant 0 : i32
    %c0_i32_1 = arith.constant 0 : i32
    %c0_i32_2 = arith.constant 0 : i32
    return %c0_i32, %c0_i32_0, %c0_i32_1 : i32, i32, i32
  }
  func.func @transform_12(%arg0: i32) -> (i32, i32, i32) {
    %c0_i32 = arith.constant 0 : i32
    %c0_i32_0 = arith.constant 0 : i32
    %c0_i32_1 = arith.constant 0 : i32
    %c0_i32_2 = arith.constant 0 : i32
    return %c0_i32, %c0_i32_0, %c0_i32_1 : i32, i32, i32
  }
  func.func @transform_13(%arg0: i32) -> (i32, i32, i32) {
    %c0_i32 = arith.constant 0 : i32
    %c0_i32_0 = arith.constant 0 : i32
    %c0_i32_1 = arith.constant 0 : i32
    %c0_i32_2 = arith.constant 0 : i32
    return %c0_i32, %c0_i32_0, %c0_i32_1 : i32, i32, i32
  }
  func.func @transform_14(%arg0: i32) -> (i32, i32, i32) {
    %c0_i32 = arith.constant 0 : i32
    %c0_i32_0 = arith.constant 0 : i32
    %c0_i32_1 = arith.constant 0 : i32
    %c0_i32_2 = arith.constant 0 : i32
    return %c0_i32, %c0_i32_0, %c0_i32_1 : i32, i32, i32
  }
  func.func @transform_15(%arg0: i32) -> (i32, i32, i32) {
    %c0_i32 = arith.constant 0 : i32
    %c0_i32_0 = arith.constant 0 : i32
    %c0_i32_1 = arith.constant 0 : i32
    %c0_i32_2 = arith.constant 0 : i32
    return %c0_i32, %c0_i32_0, %c0_i32_1 : i32, i32, i32
  }
  func.func @transform_16(%arg0: i32) -> (i32, i32) {
    %c0_i32 = arith.constant 0 : i32
    %c0_i32_0 = arith.constant 0 : i32
    %c0_i32_1 = arith.constant 0 : i32
    return %c0_i32, %c0_i32_0 : i32, i32
  }
  func.func @transform_17(%arg0: i32) -> (i32, i32) {
    %c0_i32 = arith.constant 0 : i32
    %c0_i32_0 = arith.constant 0 : i32
    %c0_i32_1 = arith.constant 0 : i32
    return %c0_i32, %c0_i32_0 : i32, i32
  }
  func.func @transform_18(%arg0: i32) -> (i32, i32) {
    %c0_i32 = arith.constant 0 : i32
    %c0_i32_0 = arith.constant 0 : i32
    %c0_i32_1 = arith.constant 0 : i32
    return %c0_i32, %c0_i32_0 : i32, i32
  }
  func.func @transform_19(%arg0: i32) -> (i32, i32) {
    %c0_i32 = arith.constant 0 : i32
    %c0_i32_0 = arith.constant 0 : i32
    %c0_i32_1 = arith.constant 0 : i32
    return %c0_i32, %c0_i32_0 : i32, i32
  }
  func.func @transform_20(%arg0: i32) -> (i32, i32) {
    %c0_i32 = arith.constant 0 : i32
    %c0_i32_0 = arith.constant 0 : i32
    %c0_i32_1 = arith.constant 0 : i32
    return %c0_i32, %c0_i32_0 : i32, i32
  }
  func.func @transform_21(%arg0: i32) -> (i32, i32) {
    %c0_i32 = arith.constant 0 : i32
    %c0_i32_0 = arith.constant 0 : i32
    %c0_i32_1 = arith.constant 0 : i32
    return %c0_i32, %c0_i32_0 : i32, i32
  }
  func.func @transform_22(%arg0: i32) -> (i32, i32) {
    %c0_i32 = arith.constant 0 : i32
    %c0_i32_0 = arith.constant 0 : i32
    %c0_i32_1 = arith.constant 0 : i32
    return %c0_i32, %c0_i32_0 : i32, i32
  }
  func.func @transform_23(%arg0: i32) -> (i32, i32, i32) {
    %c0_i32 = arith.constant 0 : i32
    %c0_i32_0 = arith.constant 0 : i32
    %c0_i32_1 = arith.constant 0 : i32
    return %arg0, %c0_i32, %c0_i32_0 : i32, i32, i32
  }
}

</mosaic_0001>

<llo_original>
// kernel: tpu_custom_call.1
$region0: #{tpu_custom_call.1}
  #allocation0 [shape = 'u32[]', space=smem, size = 0x4, offset = 0x4, fixed_abs, tag = 'smem constant byte address 0x4 - core index']
  #allocation1 [shape = 'u32[144,128]{1,0:T(1,128)}', space=vmem, size = 0x12000, scoped, tag = 'internal scratch']
  %s0 = inlined_call_operand.vmem [shape: f32[2,64,16], index: 0, kind: input, shape index: {}]
  %s1 = inlined_call_operand.vmem [shape: f32[2,32,32], index: 1, kind: input, shape index: {}]
  %s2 = inlined_call_operand.vmem [shape: f32[2,32,32], index: 2, kind: input, shape index: {}]
  %s3 = inlined_call_operand.hbm [shape: f32[8,32], index: 3, kind: input, shape index: {}]
  %s4 = inlined_call_operand.hbm [shape: f32[8,32], index: 4, kind: input, shape index: {}]
  %s5 = inlined_call_operand.hbm [shape: f32[32,32], index: 5, kind: input, shape index: {}]
  %s6 = inlined_call_operand.hbm [shape: f32[32,32], index: 6, kind: input, shape index: {}]
  %s7 = inlined_call_operand.hbm [shape: f32[16,32], index: 7, kind: input, shape index: {}]
  %s8 = inlined_call_operand.hbm [shape: f32[1,32], index: 8, kind: input, shape index: {}]
  %s9 = inlined_call_operand.hbm [shape: f32[16,32], index: 9, kind: input, shape index: {}]
  %s10 = inlined_call_operand.hbm [shape: f32[1,32], index: 10, kind: input, shape index: {}]
  %s11 = inlined_call_operand.vmem [shape: f32[2,32,32], index: 11, kind: input, shape index: {}]
  %s12 = inlined_call_operand.hbm [shape: f32[2,1,32], index: 12, kind: input, shape index: {}]
  %s13 = inlined_call_operand.hbm [shape: f32[2,32,32], index: 13, kind: input, shape index: {}]
  %s14 = inlined_call_operand.hbm [shape: f32[2,1,32], index: 14, kind: input, shape index: {}]
  %s15 = inlined_call_operand.vmem [shape: f32[4,32,64], index: 15, kind: input, shape index: {}]
  %s16 = inlined_call_operand.hbm [shape: f32[1,64], index: 16, kind: input, shape index: {}]
  %s17 = inlined_call_operand.hbm [shape: f32[64,128], index: 17, kind: input, shape index: {}]
  %s18 = inlined_call_operand.hbm [shape: f32[1,128], index: 18, kind: input, shape index: {}]
  %s19 = inlined_call_operand.vmem [shape: f32[128,32], index: 19, kind: input, shape index: {}]
  %s20 = inlined_call_operand.vmem [shape: f32[1,32], index: 20, kind: input, shape index: {}]
  %s21 = inlined_call_operand.hbm [shape: f32[32,128], index: 21, kind: input, shape index: {}]
  %s22 = inlined_call_operand.vmem [shape: f32[1,128], index: 22, kind: input, shape index: {}]
  %s23 = inlined_call_operand.hbm [shape: f32[2,8,128], index: 23, kind: output, shape index: {}]
  %s24 = sld [smem:[#allocation0]]
  $region185: #{tpu_custom_call.1} parent=0
    _
  %s26 = ssub.s32 1, %s24
  %s27 = scalar_select 0, %s26, %s24
  $region1: #{tpu_custom_call.1} parent=0
    #allocation2 [shape = 'u8[4096]{0}', space=vmem, size = 0x1000, scoped, tag = 'input window, operand 3, single buffered']
    #allocation3 [shape = 's32[2]{0}', space=sflag, size = 0x8, scoped, tag = 'scoped memory for tpu_custom_call.1']
    #allocation4 [shape = 's32[2]{0}', space=sflag, size = 0x8, scoped, tag = 'scoped memory for tpu_custom_call.1']
    #allocation5 [shape = 'u8[4096]{0}', space=vmem, size = 0x1000, scoped, tag = 'input window, operand 4, single buffered']
    #allocation6 [shape = 's32[1]{0}', space=sflag, size = 0x4, scoped, tag = 'scoped memory for tpu_custom_call.1']
    #allocation7 [shape = 'u8[16384]{0}', space=vmem, size = 0x4000, scoped, tag = 'input window, operand 5, single buffered']
    #allocation8 [shape = 'u8[16384]{0}', space=vmem, size = 0x4000, scoped, tag = 'input window, operand 6, single buffered']
    #allocation9 [shape = 's32[1]{0}', space=sflag, size = 0x4, scoped, tag = 'scoped memory for tpu_custom_call.1']
    #allocation10 [shape = 'u8[8192]{0}', space=vmem, size = 0x2000, scoped, tag = 'input window, operand 7, single buffered']
    #allocation11 [shape = 'u8[512]{0}', space=vmem, size = 0x400, scoped, tag = 'input window, operand 8, single buffered']
    #allocation12 [shape = 's32[1]{0}', space=sflag, size = 0x4, scoped, tag = 'scoped memory for tpu_custom_call.1']
    #allocation13 [shape = 'u8[8192]{0}', space=vmem, size = 0x2000, scoped, tag = 'input window, operand 9, single buffered']
    #allocation14 [shape = 'u8[512]{0}', space=vmem, size = 0x400, scoped, tag = 'input window, operand 10, single buffered']
    #allocation15 [shape = 's32[1]{0}', space=sflag, size = 0x4, scoped, tag = 'scoped memory for tpu_custom_call.1']
    #allocation16 [shape = 'u8[1024]{0}', space=vmem, size = 0x400, scoped, tag = 'input window, operand 12, single buffered']
    #allocation17 [shape = 'u8[32768]{0}', space=vmem, size = 0x8000, scoped, tag = 'input window, operand 13, single buffered']
    #allocation18 [shape = 's32[1]{0}', space=sflag, size = 0x4, scoped, tag = 'scoped memory for tpu_custom_call.1']
    #allocation19 [shape = 'u8[1024]{0}', space=vmem, size = 0x400, scoped, tag = 'input window, operand 14, single buffered']
    #allocation20 [shape = 'u8[512]{0}', space=vmem, size = 0x400, scoped, tag = 'input window, operand 16, single buffered']
    #allocation21 [shape = 's32[1]{0}', space=sflag, size = 0x4, scoped, tag = 'scoped memory for tpu_custom_call.1']
    #allocation22 [shape = 'u8[32768]{0}', space=vmem, size = 0x8000, scoped, tag = 'input window, operand 17, single buffered']
    #allocation23 [shape = 'u8[512]{0}', space=vmem, size = 0x400, scoped, tag = 'input window, operand 18, single buffered']
    #allocation24 [shape = 's32[1]{0}', space=sflag, size = 0x4, scoped, tag = 'scoped memory for tpu_custom_call.1']
    #allocation25 [shape = 'u8[16384]{0}', space=vmem, size = 0x4000, scoped, tag = 'input window, operand 21, single buffered']
    #allocation26 [shape = 'u8[8192]{0}', space=vmem, size = 0x2000, scoped, tag = 'output window, operand 0']
    %28 = vsyncpa [#allocation3], 0
    %29 = vsyncpa [#allocation6], 0
    %30 = vsyncpa [#allocation9], 0
    %31 = vsyncpa [#allocation12], 0
    %32 = vsyncpa [#allocation15], 0
    %33 = vsyncpa [#allocation18], 0
    %34 = vsyncpa [#allocation21], 0
    %35 = vsyncpa [#allocation24], 0
    %36 = vsyncpa [#allocation4], 0
    %s37 = scalar_lea.sflag [#allocation4], 1
    %38 = vsyncpa %s37, 0
    loop: start=0, step=1, limit=4
    $region2: #{tpu_custom_call.1} parent=1 // loop_pre_header
      _
    $region3: #{tpu_custom_call.1} parent=1 // loop_header
      %s40 = sphi 0, %s44
      %p41 = scmp.ge.s32.totalorder %s40, 4
      %s50 = sphi 0, %s52
      %s53 = sphi 0, %s50
      %s54 = sphi 0, %s53
      %s70 = sphi 0, %s54
      %s76 = sphi 0, %s78
      %s79 = sphi 0, %s76
      %s80 = sphi 0, %s79
      %s96 = sphi 0, %s80
      %s102 = sphi 0, %s104
      %s105 = sphi 0, %s102
      %s106 = sphi 0, %s105
      %s122 = sphi 0, %s106
      %s126 = sphi 0, %s126
      %s128 = sphi 0, %s126
      %s129 = sphi 0, %s128
      %s143 = sphi 0, %s129
      %s147 = sphi 0, %s147
      %s149 = sphi 0, %s147
      %s150 = sphi 0, %s149
      %s164 = sphi 0, %s150
      %s168 = sphi 0, %s168
      %s170 = sphi 0, %s168
      %s171 = sphi 0, %s170
      %s185 = sphi 0, %s171
      %s189 = sphi 0, %s189
      %s191 = sphi 0, %s189
      %s192 = sphi 0, %s191
      %s206 = sphi 0, %s192
      %s210 = sphi 0, %s210
      %s212 = sphi 0, %s210
      %s213 = sphi 0, %s212
      %s227 = sphi 0, %s213
      %s231 = sphi 0, %s231
      %s233 = sphi 0, %s231
      %s234 = sphi 0, %s233
      %s248 = sphi 0, %s234
      %s252 = sphi 0, %s252
      %s254 = sphi 0, %s252
      %s255 = sphi 0, %s254
      %s269 = sphi 0, %s255
      %s273 = sphi 0, %s273
      %s275 = sphi 0, %s273
      %s276 = sphi 0, %s275
      %s290 = sphi 0, %s276
      %s294 = sphi 0, %s294
      %s296 = sphi 0, %s294
      %s297 = sphi 0, %s296
      %s311 = sphi 0, %s297
      %s315 = sphi 0, %s315
      %s317 = sphi 0, %s315
      %s318 = sphi 0, %s317
      %s332 = sphi 0, %s318
      %s336 = sphi 0, %s336
      %s338 = sphi 0, %s336
      %s339 = sphi 0, %s338
      %s353 = sphi 0, %s339
      %s357 = sphi 0, %s357
      %s359 = sphi 0, %s357
      %s360 = sphi 0, %s359
      %s374 = sphi 0, %s360
      %s378 = sphi 0, %s378
      %s380 = sphi 0, %s378
      %s381 = sphi 0, %s380
      %s395 = sphi 0, %s381
      %s399 = sphi 0, %s399
      %s401 = sphi 0, %s399
      %s402 = sphi 0, %s401
      %s416 = sphi 0, %s402
      %s420 = sphi 0, %s420
      %s422 = sphi 0, %s420
      %s423 = sphi 0, %s422
      %s437 = sphi 0, %s423
      %s441 = sphi 0, %s441
      %s443 = sphi 0, %s441
      %s444 = sphi 0, %s443
      %s458 = sphi 0, %s444
      %s462 = sphi 0, %s462
      %s464 = sphi 0, %s462
      %s465 = sphi 0, %s464
      %s479 = sphi 0, %s465
      %s483 = sphi 0, %s483
      %s485 = sphi 0, %s483
      %s486 = sphi 0, %s485
      %s500 = sphi 0, %s486
      %s504 = sphi 0, %s504
      %s506 = sphi 0, %s504
      %s507 = sphi 0, %s506
      %s521 = sphi 0, %s507
      %s525 = sphi 0, %s525
      %s527 = sphi 0, %s525
      %s528 = sphi 0, %s527
      %s542 = sphi 0, %s528
      %s548 = sphi 0, %s550
      %s551 = sphi 0, %s548
      %s552 = sphi 0, %s551
      %s568 = sphi 0, %s552
    $region4: #{tpu_custom_call.1} parent=1 // loop_header_branch
      %43 = sbr.rel (%p41) target = $region8
    $region5: #{tpu_custom_call.1} parent=1 // loop_body
      %s45 = ssub.s32 %s40, 1
      %s46 = ssub.s32 %s40, 2
      %s47 = sadd.s32 %s40, 1
      %s48 = ssub.s32 %s40, %s47
      %p49 = scmp.eq.s32.totalorder %s48, 0
      %s51 = sadd.s32 %s50, 1
      %s52 = scalar_select %p49, %s50, %s51
      %p55 = pneg %p49
      %p56 = scmp.eq.s32.totalorder %s40, 1
      %p57 = por %p55, %p56
      %p58 = scmp.ne.s32.totalorder %s50, %s53
      %p59 = scmp.eq.s32.totalorder %s40, 0
      %p60 = por %p58, %p59
      %p61 = scmp.ne.s32.totalorder %s50, %s53
      %p62 = scmp.eq.s32.totalorder %s45, 1
      %p63 = por %p61, %p62
      %p64 = scmp.ne.s32.totalorder %s53, %s54
      %p65 = scmp.eq.s32.totalorder %s45, 0
      %p66 = por %p64, %p65
      %p67 = scmp.ne.s32.totalorder %s53, %s54
      %p68 = scmp.eq.s32.totalorder %s46, 1
      %p69 = por %p67, %p68
      %p71 = scmp.ne.s32.totalorder %s54, %s70
      %p72 = scmp.eq.s32.totalorder %s46, 0
      %p73 = por %p71, %p72
      %s74 = ssub.s32 %s40, %s47
      %p75 = scmp.eq.s32.totalorder %s74, 0
      %s77 = sadd.s32 %s76, 1
      %s78 = scalar_select %p75, %s76, %s77
      %p81 = pneg %p75
      %p82 = scmp.eq.s32.totalorder %s40, 1
      %p83 = por %p81, %p82
      %p84 = scmp.ne.s32.totalorder %s76, %s79
      %p85 = scmp.eq.s32.totalorder %s40, 0
      %p86 = por %p84, %p85
      %p87 = scmp.ne.s32.totalorder %s76, %s79
      %p88 = scmp.eq.s32.totalorder %s45, 1
      %p89 = por %p87, %p88
      %p90 = scmp.ne.s32.totalorder %s79, %s80
      %p91 = scmp.eq.s32.totalorder %s45, 0
      %p92 = por %p90, %p91
      %p93 = scmp.ne.s32.totalorder %s79, %s80
      %p94 = scmp.eq.s32.totalorder %s46, 1
      %p95 = por %p93, %p94
      %p97 = scmp.ne.s32.totalorder %s80, %s96
      %p98 = scmp.eq.s32.totalorder %s46, 0
      %p99 = por %p97, %p98
      %s100 = ssub.s32 %s40, %s47
      %p101 = scmp.eq.s32.totalorder %s100, 0
      %s103 = sadd.s32 %s102, 1
      %s104 = scalar_select %p101, %s102, %s103
      %p107 = pneg %p101
      %p108 = scmp.eq.s32.totalorder %s40, 1
      %p109 = por %p107, %p108
      %p110 = scmp.ne.s32.totalorder %s102, %s105
      %p111 = scmp.eq.s32.totalorder %s40, 0
      %p112 = por %p110, %p111
      %p113 = scmp.ne.s32.totalorder %s102, %s105
      %p114 = scmp.eq.s32.totalorder %s45, 1
      %p115 = por %p113, %p114
      %p116 = scmp.ne.s32.totalorder %s105, %s106
      %p117 = scmp.eq.s32.totalorder %s45, 0
      %p118 = por %p116, %p117
      %p119 = scmp.ne.s32.totalorder %s105, %s106
      %p120 = scmp.eq.s32.totalorder %s46, 1
      %p121 = por %p119, %p120
      %p123 = scmp.ne.s32.totalorder %s106, %s122
      %p124 = scmp.eq.s32.totalorder %s46, 0
      %p125 = por %p123, %p124
      %s127 = sadd.s32 %s126, 1
      %p130 = scmp.eq.s32.totalorder %s40, 1
      %p131 = scmp.ne.s32.totalorder %s126, %s128
      %p132 = scmp.eq.s32.totalorder %s40, 0
      %p133 = por %p131, %p132
      %p134 = scmp.ne.s32.totalorder %s126, %s128
      %p135 = scmp.eq.s32.totalorder %s45, 1
      %p136 = por %p134, %p135
      %p137 = scmp.ne.s32.totalorder %s128, %s129
      %p138 = scmp.eq.s32.totalorder %s45, 0
      %p139 = por %p137, %p138
      %p140 = scmp.ne.s32.totalorder %s128, %s129
      %p141 = scmp.eq.s32.totalorder %s46, 1
      %p142 = por %p140, %p141
      %p144 = scmp.ne.s32.totalorder %s129, %s143
      %p145 = scmp.eq.s32.totalorder %s46, 0
      %p146 = por %p144, %p145
      %s148 = sadd.s32 %s147, 1
      %p151 = scmp.eq.s32.totalorder %s40, 1
      %p152 = scmp.ne.s32.totalorder %s147, %s149
      %p153 = scmp.eq.s32.totalorder %s40, 0
      %p154 = por %p152, %p153
      %p155 = scmp.ne.s32.totalorder %s147, %s149
      %p156 = scmp.eq.s32.totalorder %s45, 1
      %p157 = por %p155, %p156
      %p158 = scmp.ne.s32.totalorder %s149, %s150
      %p159 = scmp.eq.s32.totalorder %s45, 0
      %p160 = por %p158, %p159
      %p161 = scmp.ne.s32.totalorder %s149, %s150
      %p162 = scmp.eq.s32.totalorder %s46, 1
      %p163 = por %p161, %p162
      %p165 = scmp.ne.s32.totalorder %s150, %s164
      %p166 = scmp.eq.s32.totalorder %s46, 0
      %p167 = por %p165, %p166
      %s169 = sadd.s32 %s168, 1
      %p172 = scmp.eq.s32.totalorder %s40, 1
      %p173 = scmp.ne.s32.totalorder %s168, %s170
      %p174 = scmp.eq.s32.totalorder %s40, 0
      %p175 = por %p173, %p174
      %p176 = scmp.ne.s32.totalorder %s168, %s170
      %p177 = scmp.eq.s32.totalorder %s45, 1
      %p178 = por %p176, %p177
      %p179 = scmp.ne.s32.totalorder %s170, %s171
      %p180 = scmp.eq.s32.totalorder %s45, 0
      %p181 = por %p179, %p180
      %p182 = scmp.ne.s32.totalorder %s170, %s171
      %p183 = scmp.eq.s32.totalorder %s46, 1
      %p184 = por %p182, %p183
      %p186 = scmp.ne.s32.totalorder %s171, %s185
      %p187 = scmp.eq.s32.totalorder %s46, 0
      %p188 = por %p186, %p187
      %s190 = sadd.s32 %s189, 1
      %p193 = scmp.eq.s32.totalorder %s40, 1
      %p194 = scmp.ne.s32.totalorder %s189, %s191
      %p195 = scmp.eq.s32.totalorder %s40, 0
      %p196 = por %p194, %p195
      %p197 = scmp.ne.s32.totalorder %s189, %s191
      %p198 = scmp.eq.s32.totalorder %s45, 1
      %p199 = por %p197, %p198
      %p200 = scmp.ne.s32.totalorder %s191, %s192
      %p201 = scmp.eq.s32.totalorder %s45, 0
      %p202 = por %p200, %p201
      %p203 = scmp.ne.s32.totalorder %s191, %s192
      %p204 = scmp.eq.s32.totalorder %s46, 1
      %p205 = por %p203, %p204
      %p207 = scmp.ne.s32.totalorder %s192, %s206
      %p208 = scmp.eq.s32.totalorder %s46, 0
      %p209 = por %p207, %p208
      %s211 = sadd.s32 %s210, 1
      %p214 = scmp.eq.s32.totalorder %s40, 1
      %p215 = scmp.ne.s32.totalorder %s210, %s212
      %p216 = scmp.eq.s32.totalorder %s40, 0
      %p217 = por %p215, %p216
      %p218 = scmp.ne.s32.totalorder %s210, %s212
      %p219 = scmp.eq.s32.totalorder %s45, 1
      %p220 = por %p218, %p219
      %p221 = scmp.ne.s32.totalorder %s212, %s213
      %p222 = scmp.eq.s32.totalorder %s45, 0
      %p223 = por %p221, %p222
      %p224 = scmp.ne.s32.totalorder %s212, %s213
      %p225 = scmp.eq.s32.totalorder %s46, 1
      %p226 = por %p224, %p225
      %p228 = scmp.ne.s32.totalorder %s213, %s227
      %p229 = scmp.eq.s32.totalorder %s46, 0
      %p230 = por %p228, %p229
      %s232 = sadd.s32 %s231, 1
      %p235 = scmp.eq.s32.totalorder %s40, 1
      %p236 = scmp.ne.s32.totalorder %s231, %s233
      %p237 = scmp.eq.s32.totalorder %s40, 0
      %p238 = por %p236, %p237
      %p239 = scmp.ne.s32.totalorder %s231, %s233
      %p240 = scmp.eq.s32.totalorder %s45, 1
      %p241 = por %p239, %p240
      %p242 = scmp.ne.s32.totalorder %s233, %s234
      %p243 = scmp.eq.s32.totalorder %s45, 0
      %p244 = por %p242, %p243
      %p245 = scmp.ne.s32.totalorder %s233, %s234
      %p246 = scmp.eq.s32.totalorder %s46, 1
      %p247 = por %p245, %p246
      %p249 = scmp.ne.s32.totalorder %s234, %s248
      %p250 = scmp.eq.s32.totalorder %s46, 0
      %p251 = por %p249, %p250
      %s253 = sadd.s32 %s252, 1
      %p256 = scmp.eq.s32.totalorder %s40, 1
      %p257 = scmp.ne.s32.totalorder %s252, %s254
      %p258 = scmp.eq.s32.totalorder %s40, 0
      %p259 = por %p257, %p258
      %p260 = scmp.ne.s32.totalorder %s252, %s254
      %p261 = scmp.eq.s32.totalorder %s45, 1
      %p262 = por %p260, %p261
      %p263 = scmp.ne.s32.totalorder %s254, %s255
      %p264 = scmp.eq.s32.totalorder %s45, 0
      %p265 = por %p263, %p264
      %p266 = scmp.ne.s32.totalorder %s254, %s255
      %p267 = scmp.eq.s32.totalorder %s46, 1
      %p268 = por %p266, %p267
      %p270 = scmp.ne.s32.totalorder %s255, %s269
      %p271 = scmp.eq.s32.totalorder %s46, 0
      %p272 = por %p270, %p271
      %s274 = sadd.s32 %s273, 1
      %p277 = scmp.eq.s32.totalorder %s40, 1
      %p278 = scmp.ne.s32.totalorder %s273, %s275
      %p279 = scmp.eq.s32.totalorder %s40, 0
      %p280 = por %p278, %p279
      %p281 = scmp.ne.s32.totalorder %s273, %s275
      %p282 = scmp.eq.s32.totalorder %s45, 1
      %p283 = por %p281, %p282
      %p284 = scmp.ne.s32.totalorder %s275, %s276
      %p285 = scmp.eq.s32.totalorder %s45, 0
      %p286 = por %p284, %p285
      %p287 = scmp.ne.s32.totalorder %s275, %s276
      %p288 = scmp.eq.s32.totalorder %s46, 1
      %p289 = por %p287, %p288
      %p291 = scmp.ne.s32.totalorder %s276, %s290
      %p292 = scmp.eq.s32.totalorder %s46, 0
      %p293 = por %p291, %p292
      %s295 = sadd.s32 %s294, 1
      %p298 = scmp.eq.s32.totalorder %s40, 1
      %p299 = scmp.ne.s32.totalorder %s294, %s296
      %p300 = scmp.eq.s32.totalorder %s40, 0
      %p301 = por %p299, %p300
      %p302 = scmp.ne.s32.totalorder %s294, %s296
      %p303 = scmp.eq.s32.totalorder %s45, 1
      %p304 = por %p302, %p303
      %p305 = scmp.ne.s32.totalorder %s296, %s297
      %p306 = scmp.eq.s32.totalorder %s45, 0
      %p307 = por %p305, %p306
      %p308 = scmp.ne.s32.totalorder %s296, %s297
      %p309 = scmp.eq.s32.totalorder %s46, 1
      %p310 = por %p308, %p309
      %p312 = scmp.ne.s32.totalorder %s297, %s311
      %p313 = scmp.eq.s32.totalorder %s46, 0
      %p314 = por %p312, %p313
      %s316 = sadd.s32 %s315, 1
      %p319 = scmp.eq.s32.totalorder %s40, 1
      %p320 = scmp.ne.s32.totalorder %s315, %s317
      %p321 = scmp.eq.s32.totalorder %s40, 0
      %p322 = por %p320, %p321
      %p323 = scmp.ne.s32.totalorder %s315, %s317
      %p324 = scmp.eq.s32.totalorder %s45, 1
      %p325 = por %p323, %p324
      %p326 = scmp.ne.s32.totalorder %s317, %s318
      %p327 = scmp.eq.s32.totalorder %s45, 0
      %p328 = por %p326, %p327
      %p329 = scmp.ne.s32.totalorder %s317, %s318
      %p330 = scmp.eq.s32.totalorder %s46, 1
      %p331 = por %p329, %p330
      %p333 = scmp.ne.s32.totalorder %s318, %s332
      %p334 = scmp.eq.s32.totalorder %s46, 0
      %p335 = por %p333, %p334
      %s337 = sadd.s32 %s336, 1
      %p340 = scmp.eq.s32.totalorder %s40, 1
      %p341 = scmp.ne.s32.totalorder %s336, %s338
      %p342 = scmp.eq.s32.totalorder %s40, 0
      %p343 = por %p341, %p342
      %p344 = scmp.ne.s32.totalorder %s336, %s338
      %p345 = scmp.eq.s32.totalorder %s45, 1
      %p346 = por %p344, %p345
      %p347 = scmp.ne.s32.totalorder %s338, %s339
      %p348 = scmp.eq.s32.totalorder %s45, 0
      %p349 = por %p347, %p348
      %p350 = scmp.ne.s32.totalorder %s338, %s339
      %p351 = scmp.eq.s32.totalorder %s46, 1
      %p352 = por %p350, %p351
      %p354 = scmp.ne.s32.totalorder %s339, %s353
      %p355 = scmp.eq.s32.totalorder %s46, 0
      %p356 = por %p354, %p355
      %s358 = sadd.s32 %s357, 1
      %p361 = scmp.eq.s32.totalorder %s40, 1
      %p362 = scmp.ne.s32.totalorder %s357, %s359
      %p363 = scmp.eq.s32.totalorder %s40, 0
      %p364 = por %p362, %p363
      %p365 = scmp.ne.s32.totalorder %s357, %s359
      %p366 = scmp.eq.s32.totalorder %s45, 1
      %p367 = por %p365, %p366
      %p368 = scmp.ne.s32.totalorder %s359, %s360
      %p369 = scmp.eq.s32.totalorder %s45, 0
      %p370 = por %p368, %p369
      %p371 = scmp.ne.s32.totalorder %s359, %s360
      %p372 = scmp.eq.s32.totalorder %s46, 1
      %p373 = por %p371, %p372
      %p375 = scmp.ne.s32.totalorder %s360, %s374
      %p376 = scmp.eq.s32.totalorder %s46, 0
      %p377 = por %p375, %p376
      %s379 = sadd.s32 %s378, 1
      %p382 = scmp.eq.s32.totalorder %s40, 1
      %p383 = scmp.ne.s32.totalorder %s378, %s380
      %p384 = scmp.eq.s32.totalorder %s40, 0
      %p385 = por %p383, %p384
      %p386 = scmp.ne.s32.totalorder %s378, %s380
      %p387 = scmp.eq.s32.totalorder %s45, 1
      %p388 = por %p386, %p387
      %p389 = scmp.ne.s32.totalorder %s380, %s381
      %p390 = scmp.eq.s32.totalorder %s45, 0
      %p391 = por %p389, %p390
      %p392 = scmp.ne.s32.totalorder %s380, %s381
      %p393 = scmp.eq.s32.totalorder %s46, 1
      %p394 = por %p392, %p393
      %p396 = scmp.ne.s32.totalorder %s381, %s395
      %p397 = scmp.eq.s32.totalorder %s46, 0
      %p398 = por %p396, %p397
      %s400 = sadd.s32 %s399, 1
      %p403 = scmp.eq.s32.totalorder %s40, 1
      %p404 = scmp.ne.s32.totalorder %s399, %s401
      %p405 = scmp.eq.s32.totalorder %s40, 0
      %p406 = por %p404, %p405
      %p407 = scmp.ne.s32.totalorder %s399, %s401
      %p408 = scmp.eq.s32.totalorder %s45, 1
      %p409 = por %p407, %p408
      %p410 = scmp.ne.s32.totalorder %s401, %s402
      %p411 = scmp.eq.s32.totalorder %s45, 0
      %p412 = por %p410, %p411
      %p413 = scmp.ne.s32.totalorder %s401, %s402
      %p414 = scmp.eq.s32.totalorder %s46, 1
      %p415 = por %p413, %p414
      %p417 = scmp.ne.s32.totalorder %s402, %s416
      %p418 = scmp.eq.s32.totalorder %s46, 0
      %p419 = por %p417, %p418
      %s421 = sadd.s32 %s420, 1
      %p424 = scmp.eq.s32.totalorder %s40, 1
      %p425 = scmp.ne.s32.totalorder %s420, %s422
      %p426 = scmp.eq.s32.totalorder %s40, 0
      %p427 = por %p425, %p426
      %p428 = scmp.ne.s32.totalorder %s420, %s422
      %p429 = scmp.eq.s32.totalorder %s45, 1
      %p430 = por %p428, %p429
      %p431 = scmp.ne.s32.totalorder %s422, %s423
      %p432 = scmp.eq.s32.totalorder %s45, 0
      %p433 = por %p431, %p432
      %p434 = scmp.ne.s32.totalorder %s422, %s423
      %p435 = scmp.eq.s32.totalorder %s46, 1
      %p436 = por %p434, %p435
      %p438 = scmp.ne.s32.totalorder %s423, %s437
      %p439 = scmp.eq.s32.totalorder %s46, 0
      %p440 = por %p438, %p439
      %s442 = sadd.s32 %s441, 1
      %p445 = scmp.eq.s32.totalorder %s40, 1
      %p446 = scmp.ne.s32.totalorder %s441, %s443
      %p447 = scmp.eq.s32.totalorder %s40, 0
      %p448 = por %p446, %p447
      %p449 = scmp.ne.s32.totalorder %s441, %s443
      %p450 = scmp.eq.s32.totalorder %s45, 1
      %p451 = por %p449, %p450
      %p452 = scmp.ne.s32.totalorder %s443, %s444
      %p453 = scmp.eq.s32.totalorder %s45, 0
      %p454 = por %p452, %p453
      %p455 = scmp.ne.s32.totalorder %s443, %s444
      %p456 = scmp.eq.s32.totalorder %s46, 1
      %p457 = por %p455, %p456
      %p459 = scmp.ne.s32.totalorder %s444, %s458
      %p460 = scmp.eq.s32.totalorder %s46, 0
      %p461 = por %p459, %p460
      %s463 = sadd.s32 %s462, 1
      %p466 = scmp.eq.s32.totalorder %s40, 1
      %p467 = scmp.ne.s32.totalorder %s462, %s464
      %p468 = scmp.eq.s32.totalorder %s40, 0
      %p469 = por %p467, %p468
      %p470 = scmp.ne.s32.totalorder %s462, %s464
      %p471 = scmp.eq.s32.totalorder %s45, 1
      %p472 = por %p470, %p471
      %p473 = scmp.ne.s32.totalorder %s464, %s465
      %p474 = scmp.eq.s32.totalorder %s45, 0
      %p475 = por %p473, %p474
      %p476 = scmp.ne.s32.totalorder %s464, %s465
      %p477 = scmp.eq.s32.totalorder %s46, 1
      %p478 = por %p476, %p477
      %p480 = scmp.ne.s32.totalorder %s465, %s479
      %p481 = scmp.eq.s32.totalorder %s46, 0
      %p482 = por %p480, %p481
      %s484 = sadd.s32 %s483, 1
      %p487 = scmp.eq.s32.totalorder %s40, 1
      %p488 = scmp.ne.s32.totalorder %s483, %s485
      %p489 = scmp.eq.s32.totalorder %s40, 0
      %p490 = por %p488, %p489
      %p491 = scmp.ne.s32.totalorder %s483, %s485
      %p492 = scmp.eq.s32.totalorder %s45, 1
      %p493 = por %p491, %p492
      %p494 = scmp.ne.s32.totalorder %s485, %s486
      %p495 = scmp.eq.s32.totalorder %s45, 0
      %p496 = por %p494, %p495
      %p497 = scmp.ne.s32.totalorder %s485, %s486
      %p498 = scmp.eq.s32.totalorder %s46, 1
      %p499 = por %p497, %p498
      %p501 = scmp.ne.s32.totalorder %s486, %s500
      %p502 = scmp.eq.s32.totalorder %s46, 0
      %p503 = por %p501, %p502
      %s505 = sadd.s32 %s504, 1
      %p508 = scmp.eq.s32.totalorder %s40, 1
      %p509 = scmp.ne.s32.totalorder %s504, %s506
      %p510 = scmp.eq.s32.totalorder %s40, 0
      %p511 = por %p509, %p510
      %p512 = scmp.ne.s32.totalorder %s504, %s506
      %p513 = scmp.eq.s32.totalorder %s45, 1
      %p514 = por %p512, %p513
      %p515 = scmp.ne.s32.totalorder %s506, %s507
      %p516 = scmp.eq.s32.totalorder %s45, 0
      %p517 = por %p515, %p516
      %p518 = scmp.ne.s32.totalorder %s506, %s507
      %p519 = scmp.eq.s32.totalorder %s46, 1
      %p520 = por %p518, %p519
      %p522 = scmp.ne.s32.totalorder %s507, %s521
      %p523 = scmp.eq.s32.totalorder %s46, 0
      %p524 = por %p522, %p523
      %s526 = sadd.s32 %s525, 1
      %p529 = scmp.eq.s32.totalorder %s40, 1
      %p530 = scmp.ne.s32.totalorder %s525, %s527
      %p531 = scmp.eq.s32.totalorder %s40, 0
      %p532 = por %p530, %p531
      %p533 = scmp.ne.s32.totalorder %s525, %s527
      %p534 = scmp.eq.s32.totalorder %s45, 1
      %p535 = por %p533, %p534
      %p536 = scmp.ne.s32.totalorder %s527, %s528
      %p537 = scmp.eq.s32.totalorder %s45, 0
      %p538 = por %p536, %p537
      %p539 = scmp.ne.s32.totalorder %s527, %s528
      %p540 = scmp.eq.s32.totalorder %s46, 1
      %p541 = por %p539, %p540
      %p543 = scmp.ne.s32.totalorder %s528, %s542
      %p544 = scmp.eq.s32.totalorder %s46, 0
      %p545 = por %p543, %p544
      %s546 = ssub.s32 %s40, %s47
      %p547 = scmp.eq.s32.totalorder %s546, 0
      %s549 = sadd.s32 %s548, 1
      %s550 = scalar_select %p547, %s548, %s549
      %p553 = pneg %p547
      %p554 = scmp.eq.s32.totalorder %s40, 1
      %p555 = por %p553, %p554
      %p556 = scmp.ne.s32.totalorder %s548, %s551
      %p557 = scmp.eq.s32.totalorder %s40, 0
      %p558 = por %p556, %p557
      %p559 = scmp.ne.s32.totalorder %s548, %s551
      %p560 = scmp.eq.s32.totalorder %s45, 1
      %p561 = por %p559, %p560
      %p562 = scmp.ne.s32.totalorder %s551, %s552
      %p563 = scmp.eq.s32.totalorder %s45, 0
      %p564 = por %p562, %p563
      %p565 = scmp.ne.s32.totalorder %s551, %s552
      %p566 = scmp.eq.s32.totalorder %s46, 1
      %p567 = por %p565, %p566
      %p569 = scmp.ne.s32.totalorder %s552, %s568
      %p570 = scmp.eq.s32.totalorder %s46, 0
      %p571 = por %p569, %p570
      %p572 = scmp.le.s32.totalorder 1, %s40
      %p573 = scmp.lt.s32.totalorder %s40, 3
      %p574 = pnand %p572, %p573
      %p575 = pneg %p574
      // Predicated region
      $region9: #{tpu_custom_call.1} parent=5 // pred_check
        _
      $region10: #{tpu_custom_call.1} parent=5 // pred_check_branch
        %577 = sbr.rel (%p574) target = $region12
      $region11: #{tpu_custom_call.1} parent=5 // pred_region
        %s578 = ssub.s32 %s40, 1
        // Predicated region
        $region13: #{tpu_custom_call.1} parent=11 // pred_check
          %p579 = pneg %p139
        $region14: #{tpu_custom_call.1} parent=11 // pred_check_branch
          %581 = sbr.rel (%p579) target = $region16
        $region15: #{tpu_custom_call.1} parent=11 // pred_region
          %s583 = ssub.s32 128, 128
          %584 = vsyncadd [#allocation3], %s583
          %s586 = sshll.u32 [#allocation2], 4
          %s587 = int_to_ptr.vmem [resolvable:$true] %s586
          %589 = dma.hbm_to_vmem [thread:$0]  %s3, 128, %s587, [#allocation3]
        $region16: #{tpu_custom_call.1} parent=11 // pred_fallthru
          _
        // Predicated region
        $region17: #{tpu_custom_call.1} parent=11 // pred_check
          %p590 = pneg %p160
        $region18: #{tpu_custom_call.1} parent=11 // pred_check_branch
          %592 = sbr.rel (%p590) target = $region20
        $region19: #{tpu_custom_call.1} parent=11 // pred_region
          %s594 = ssub.s32 128, 128
          %595 = vsyncadd [#allocation6], %s594
          %s597 = sshll.u32 [#allocation5], 4
          %s598 = int_to_ptr.vmem [resolvable:$true] %s597
          %600 = dma.hbm_to_vmem [thread:$0]  %s4, 128, %s598, [#allocation6]
        $region20: #{tpu_custom_call.1} parent=11 // pred_fallthru
          _
        // Predicated region
        $region21: #{tpu_custom_call.1} parent=11 // pred_check
          %p601 = pneg %p181
        $region22: #{tpu_custom_call.1} parent=11 // pred_check_branch
          %603 = sbr.rel (%p601) target = $region24
        $region23: #{tpu_custom_call.1} parent=11 // pred_region
          %s605 = ssub.s32 512, 512
          %606 = vsyncadd [#allocation6], %s605
          %s607 = sshll.u32 [#allocation7], 4
          %s608 = int_to_ptr.vmem [resolvable:$true] %s607
          %613 = dma.hbm_to_vmem [thread:$0]  %s5, 512, %s608, [#allocation6], 128, 128, 8
        $region24: #{tpu_custom_call.1} parent=11 // pred_fallthru
          _
        // Predicated region
        $region25: #{tpu_custom_call.1} parent=11 // pred_check
          %p614 = pneg %p202
        $region26: #{tpu_custom_call.1} parent=11 // pred_check_branch
          %616 = sbr.rel (%p614) target = $region28
        $region27: #{tpu_custom_call.1} parent=11 // pred_region
          %s618 = ssub.s32 512, 512
          %619 = vsyncadd [#allocation9], %s618
          %s620 = sshll.u32 [#allocation8], 4
          %s621 = int_to_ptr.vmem [resolvable:$true] %s620
          %626 = dma.hbm_to_vmem [thread:$0]  %s6, 512, %s621, [#allocation9], 128, 128, 8
        $region28: #{tpu_custom_call.1} parent=11 // pred_fallthru
          _
        // Predicated region
        $region29: #{tpu_custom_call.1} parent=11 // pred_check
          %p627 = pneg %p223
        $region30: #{tpu_custom_call.1} parent=11 // pred_check_branch
          %629 = sbr.rel (%p627) target = $region32
        $region31: #{tpu_custom_call.1} parent=11 // pred_region
          %s631 = ssub.s32 256, 256
          %632 = vsyncadd [#allocation9], %s631
          %s633 = sshll.u32 [#allocation10], 4
          %s634 = int_to_ptr.vmem [resolvable:$true] %s633
          %639 = dma.hbm_to_vmem [thread:$0]  %s7, 256, %s634, [#allocation9], 128, 128, 8
        $region32: #{tpu_custom_call.1} parent=11 // pred_fallthru
          _
        // Predicated region
        $region33: #{tpu_custom_call.1} parent=11 // pred_check
          %p640 = pneg %p244
        $region34: #{tpu_custom_call.1} parent=11 // pred_check_branch
          %642 = sbr.rel (%p640) target = $region36
        $region35: #{tpu_custom_call.1} parent=11 // pred_region
          %s644 = ssub.s32 16, 16
          %645 = vsyncadd [#allocation12], %s644
          %s647 = sshll.u32 [#allocation11], 4
          %s648 = int_to_ptr.vmem [resolvable:$true] %s647
          %650 = dma.hbm_to_vmem [thread:$0]  %s8, 16, %s648, [#allocation12]
        $region36: #{tpu_custom_call.1} parent=11 // pred_fallthru
          _
        // Predicated region
        $region37: #{tpu_custom_call.1} parent=11 // pred_check
          %p651 = pneg %p265
        $region38: #{tpu_custom_call.1} parent=11 // pred_check_branch
          %653 = sbr.rel (%p651) target = $region40
        $region39: #{tpu_custom_call.1} parent=11 // pred_region
          %s655 = ssub.s32 256, 256
          %656 = vsyncadd [#allocation12], %s655
          %s657 = sshll.u32 [#allocation13], 4
          %s658 = int_to_ptr.vmem [resolvable:$true] %s657
          %663 = dma.hbm_to_vmem [thread:$0]  %s9, 256, %s658, [#allocation12], 128, 128, 8
        $region40: #{tpu_custom_call.1} parent=11 // pred_fallthru
          _
        // Predicated region
        $region41: #{tpu_custom_call.1} parent=11 // pred_check
          %p664 = pneg %p286
        $region42: #{tpu_custom_call.1} parent=11 // pred_check_branch
          %666 = sbr.rel (%p664) target = $region44
        $region43: #{tpu_custom_call.1} parent=11 // pred_region
          %s668 = ssub.s32 16, 16
          %669 = vsyncadd [#allocation15], %s668
          %s671 = sshll.u32 [#allocation14], 4
          %s672 = int_to_ptr.vmem [resolvable:$true] %s671
          %674 = dma.hbm_to_vmem [thread:$0]  %s10, 16, %s672, [#allocation15]
        $region44: #{tpu_custom_call.1} parent=11 // pred_fallthru
          _
        // Predicated region
        $region45: #{tpu_custom_call.1} parent=11 // pred_check
          %p675 = pneg %p307
        $region46: #{tpu_custom_call.1} parent=11 // pred_check_branch
          %677 = sbr.rel (%p675) target = $region48
        $region47: #{tpu_custom_call.1} parent=11 // pred_region
          _
        $region48: #{tpu_custom_call.1} parent=11 // pred_fallthru
          _
        // Predicated region
        $region49: #{tpu_custom_call.1} parent=11 // pred_check
          %p678 = pneg %p328
        $region50: #{tpu_custom_call.1} parent=11 // pred_check_branch
          %680 = sbr.rel (%p678) target = $region52
        $region51: #{tpu_custom_call.1} parent=11 // pred_region
          %s682 = ssub.s32 32, 32
          %683 = vsyncadd [#allocation15], %s682
          %s684 = sshll.u32 [#allocation16], 4
          %s685 = int_to_ptr.vmem [resolvable:$true] %s684
          %690 = dma.hbm_to_vmem [thread:$0]  %s12, 32, %s685, [#allocation15], 16, 16, 1
        $region52: #{tpu_custom_call.1} parent=11 // pred_fallthru
          _
        // Predicated region
        $region53: #{tpu_custom_call.1} parent=11 // pred_check
          %p691 = pneg %p349
        $region54: #{tpu_custom_call.1} parent=11 // pred_check_branch
          %693 = sbr.rel (%p691) target = $region56
        $region55: #{tpu_custom_call.1} parent=11 // pred_region
          %s695 = ssub.s32 1024, 1024
          %696 = vsyncadd [#allocation18], %s695
          %s697 = sshll.u32 [#allocation17], 4
          %s698 = int_to_ptr.vmem [resolvable:$true] %s697
          %703 = dma.hbm_to_vmem [thread:$0]  %s13, 1024, %s698, [#allocation18], 128, 128, 8
        $region56: #{tpu_custom_call.1} parent=11 // pred_fallthru
          _
        // Predicated region
        $region57: #{tpu_custom_call.1} parent=11 // pred_check
          %p704 = pneg %p370
        $region58: #{tpu_custom_call.1} parent=11 // pred_check_branch
          %706 = sbr.rel (%p704) target = $region60
        $region59: #{tpu_custom_call.1} parent=11 // pred_region
          %s708 = ssub.s32 32, 32
          %709 = vsyncadd [#allocation18], %s708
          %s710 = sshll.u32 [#allocation19], 4
          %s711 = int_to_ptr.vmem [resolvable:$true] %s710
          %716 = dma.hbm_to_vmem [thread:$0]  %s14, 32, %s711, [#allocation18], 16, 16, 1
        $region60: #{tpu_custom_call.1} parent=11 // pred_fallthru
          _
        // Predicated region
        $region61: #{tpu_custom_call.1} parent=11 // pred_check
          %p717 = pneg %p391
        $region62: #{tpu_custom_call.1} parent=11 // pred_check_branch
          %719 = sbr.rel (%p717) target = $region64
        $region63: #{tpu_custom_call.1} parent=11 // pred_region
          _
        $region64: #{tpu_custom_call.1} parent=11 // pred_fallthru
          _
        // Predicated region
        $region65: #{tpu_custom_call.1} parent=11 // pred_check
          %p720 = pneg %p412
        $region66: #{tpu_custom_call.1} parent=11 // pred_check_branch
          %722 = sbr.rel (%p720) target = $region68
        $region67: #{tpu_custom_call.1} parent=11 // pred_region
          %s724 = ssub.s32 16, 16
          %725 = vsyncadd [#allocation21], %s724
          %s727 = sshll.u32 [#allocation20], 4
          %s728 = int_to_ptr.vmem [resolvable:$true] %s727
          %730 = dma.hbm_to_vmem [thread:$0]  %s16, 16, %s728, [#allocation21]
        $region68: #{tpu_custom_call.1} parent=11 // pred_fallthru
          _
        // Predicated region
        $region69: #{tpu_custom_call.1} parent=11 // pred_check
          %p731 = pneg %p433
        $region70: #{tpu_custom_call.1} parent=11 // pred_check_branch
          %733 = sbr.rel (%p731) target = $region72
        $region71: #{tpu_custom_call.1} parent=11 // pred_region
          %s735 = ssub.s32 1024, 1024
          %736 = vsyncadd [#allocation21], %s735
          %s737 = sshll.u32 [#allocation22], 4
          %s738 = int_to_ptr.vmem [resolvable:$true] %s737
          %743 = dma.hbm_to_vmem [thread:$0]  %s17, 1024, %s738, [#allocation21], 128, 128, 8
        $region72: #{tpu_custom_call.1} parent=11 // pred_fallthru
          _
        // Predicated region
        $region73: #{tpu_custom_call.1} parent=11 // pred_check
          %p744 = pneg %p454
        $region74: #{tpu_custom_call.1} parent=11 // pred_check_branch
          %746 = sbr.rel (%p744) target = $region76
        $region75: #{tpu_custom_call.1} parent=11 // pred_region
          %s748 = ssub.s32 16, 16
          %749 = vsyncadd [#allocation24], %s748
          %s751 = sshll.u32 [#allocation23], 4
          %s752 = int_to_ptr.vmem [resolvable:$true] %s751
          %754 = dma.hbm_to_vmem [thread:$0]  %s18, 16, %s752, [#allocation24]
        $region76: #{tpu_custom_call.1} parent=11 // pred_fallthru
          _
        // Predicated region
        $region77: #{tpu_custom_call.1} parent=11 // pred_check
          %p755 = pneg %p475
        $region78: #{tpu_custom_call.1} parent=11 // pred_check_branch
          %757 = sbr.rel (%p755) target = $region80
        $region79: #{tpu_custom_call.1} parent=11 // pred_region
          _
        $region80: #{tpu_custom_call.1} parent=11 // pred_fallthru
          _
        // Predicated region
        $region81: #{tpu_custom_call.1} parent=11 // pred_check
          %p758 = pneg %p496
        $region82: #{tpu_custom_call.1} parent=11 // pred_check_branch
          %760 = sbr.rel (%p758) target = $region84
        $region83: #{tpu_custom_call.1} parent=11 // pred_region
          _
        $region84: #{tpu_custom_call.1} parent=11 // pred_fallthru
          _
        // Predicated region
        $region85: #{tpu_custom_call.1} parent=11 // pred_check
          %p761 = pneg %p517
        $region86: #{tpu_custom_call.1} parent=11 // pred_check_branch
          %763 = sbr.rel (%p761) target = $region88
        $region87: #{tpu_custom_call.1} parent=11 // pred_region
          %s765 = ssub.s32 512, 512
          %766 = vsyncadd [#allocation24], %s765
          %s767 = sshll.u32 [#allocation25], 4
          %s768 = int_to_ptr.vmem [resolvable:$true] %s767
          %773 = dma.hbm_to_vmem [thread:$0]  %s21, 512, %s768, [#allocation24], 128, 128, 8
        $region88: #{tpu_custom_call.1} parent=11 // pred_fallthru
          _
        // Predicated region
        $region89: #{tpu_custom_call.1} parent=11 // pred_check
          %p774 = pneg %p538
        $region90: #{tpu_custom_call.1} parent=11 // pred_check_branch
          %776 = sbr.rel (%p774) target = $region92
        $region91: #{tpu_custom_call.1} parent=11 // pred_region
          _
        $region92: #{tpu_custom_call.1} parent=11 // pred_fallthru
          _
      $region12: #{tpu_custom_call.1} parent=5 // pred_fallthru
        _
      %p777 = scmp.lt.s32.totalorder %s40, 2
      // Predicated region
      $region93: #{tpu_custom_call.1} parent=5 // pred_check
        %p778 = pneg %p777
      $region94: #{tpu_custom_call.1} parent=5 // pred_check_branch
        %780 = sbr.rel (%p778) target = $region96
      $region95: #{tpu_custom_call.1} parent=5 // pred_region
        // Predicated region
        $region97: #{tpu_custom_call.1} parent=95 // pred_check
          %p781 = pneg %p60
        $region98: #{tpu_custom_call.1} parent=95 // pred_check_branch
          %783 = sbr.rel (%p781) target = $region100
        $region99: #{tpu_custom_call.1} parent=95 // pred_region
          %p784 = scmp.lt.s32.totalorder %s40, 1
          %s785 = scalar_select %p784, %s40, 1
          %s786 = smul.addr %s785, 8
          %s787 = smul.addr %s786, 8
          %s788 = scalar_lea.vmem %s0, %s787
        $region100: #{tpu_custom_call.1} parent=95 // pred_fallthru
          _
        // Predicated region
        $region101: #{tpu_custom_call.1} parent=95 // pred_check
          %p789 = pneg %p86
        $region102: #{tpu_custom_call.1} parent=95 // pred_check_branch
          %791 = sbr.rel (%p789) target = $region104
        $region103: #{tpu_custom_call.1} parent=95 // pred_region
          %p792 = scmp.lt.s32.totalorder %s40, 1
          %s793 = scalar_select %p792, %s40, 1
          %s794 = smul.addr %s793, 4
          %s795 = smul.addr %s794, 8
          %s796 = scalar_lea.vmem %s1, %s795
        $region104: #{tpu_custom_call.1} parent=95 // pred_fallthru
          _
        // Predicated region
        $region105: #{tpu_custom_call.1} parent=95 // pred_check
          %p797 = pneg %p112
        $region106: #{tpu_custom_call.1} parent=95 // pred_check_branch
          %799 = sbr.rel (%p797) target = $region108
        $region107: #{tpu_custom_call.1} parent=95 // pred_region
          %p800 = scmp.lt.s32.totalorder %s40, 1
          %s801 = scalar_select %p800, %s40, 1
          %s802 = smul.addr %s801, 4
          %s803 = smul.addr %s802, 8
          %s804 = scalar_lea.vmem %s2, %s803
        $region108: #{tpu_custom_call.1} parent=95 // pred_fallthru
          _
      $region96: #{tpu_custom_call.1} parent=5 // pred_fallthru
        _
      %p805 = scmp.le.s32.totalorder 1, %s40
      %p806 = scmp.lt.s32.totalorder %s40, 3
      %p807 = pnand %p805, %p806
      %p808 = pneg %p807
      // Predicated region
      $region109: #{tpu_custom_call.1} parent=5 // pred_check
        _
      $region110: #{tpu_custom_call.1} parent=5 // pred_check_branch
        %810 = sbr.rel (%p807) target = $region112
      $region111: #{tpu_custom_call.1} parent=5 // pred_region
        %s811 = ssub.s32 %s40, 1
        // Predicated region
        $region113: #{tpu_custom_call.1} parent=111 // pred_check
          %p812 = pneg %p139
        $region114: #{tpu_custom_call.1} parent=111 // pred_check_branch
          %814 = sbr.rel (%p812) target = $region116
        $region115: #{tpu_custom_call.1} parent=111 // pred_region
          %815 = dma.done [#allocation3], 128
        $region116: #{tpu_custom_call.1} parent=111 // pred_fallthru
          _
        // Predicated region
        $region117: #{tpu_custom_call.1} parent=111 // pred_check
          %p816 = pneg %p160
        $region118: #{tpu_custom_call.1} parent=111 // pred_check_branch
          %818 = sbr.rel (%p816) target = $region120
        $region119: #{tpu_custom_call.1} parent=111 // pred_region
          %819 = dma.done [#allocation6], 128
        $region120: #{tpu_custom_call.1} parent=111 // pred_fallthru
          _
        // Predicated region
        $region121: #{tpu_custom_call.1} parent=111 // pred_check
          %p820 = pneg %p181
        $region122: #{tpu_custom_call.1} parent=111 // pred_check_branch
          %822 = sbr.rel (%p820) target = $region124
        $region123: #{tpu_custom_call.1} parent=111 // pred_region
          %823 = dma.done [#allocation6], 512
        $region124: #{tpu_custom_call.1} parent=111 // pred_fallthru
          _
        // Predicated region
        $region125: #{tpu_custom_call.1} parent=111 // pred_check
          %p824 = pneg %p202
        $region126: #{tpu_custom_call.1} parent=111 // pred_check_branch
          %826 = sbr.rel (%p824) target = $region128
        $region127: #{tpu_custom_call.1} parent=111 // pred_region
          %827 = dma.done [#allocation9], 512
        $region128: #{tpu_custom_call.1} parent=111 // pred_fallthru
          _
        // Predicated region
        $region129: #{tpu_custom_call.1} parent=111 // pred_check
          %p828 = pneg %p223
        $region130: #{tpu_custom_call.1} parent=111 // pred_check_branch
          %830 = sbr.rel (%p828) target = $region132
        $region131: #{tpu_custom_call.1} parent=111 // pred_region
          %831 = dma.done [#allocation9], 256
        $region132: #{tpu_custom_call.1} parent=111 // pred_fallthru
          _
        // Predicated region
        $region133: #{tpu_custom_call.1} parent=111 // pred_check
          %p832 = pneg %p244
        $region134: #{tpu_custom_call.1} parent=111 // pred_check_branch
          %834 = sbr.rel (%p832) target = $region136
        $region135: #{tpu_custom_call.1} parent=111 // pred_region
          %835 = dma.done [#allocation12], 16
        $region136: #{tpu_custom_call.1} parent=111 // pred_fallthru
          _
        // Predicated region
        $region137: #{tpu_custom_call.1} parent=111 // pred_check
          %p836 = pneg %p265
        $region138: #{tpu_custom_call.1} parent=111 // pred_check_branch
          %838 = sbr.rel (%p836) target = $region140
        $region139: #{tpu_custom_call.1} parent=111 // pred_region
          %839 = dma.done [#allocation12], 256
        $region140: #{tpu_custom_call.1} parent=111 // pred_fallthru
          _
        // Predicated region
        $region141: #{tpu_custom_call.1} parent=111 // pred_check
          %p840 = pneg %p286
        $region142: #{tpu_custom_call.1} parent=111 // pred_check_branch
          %842 = sbr.rel (%p840) target = $region144
        $region143: #{tpu_custom_call.1} parent=111 // pred_region
          %843 = dma.done [#allocation15], 16
        $region144: #{tpu_custom_call.1} parent=111 // pred_fallthru
          _
        // Predicated region
        $region145: #{tpu_custom_call.1} parent=111 // pred_check
          %p844 = pneg %p328
        $region146: #{tpu_custom_call.1} parent=111 // pred_check_branch
          %846 = sbr.rel (%p844) target = $region148
        $region147: #{tpu_custom_call.1} parent=111 // pred_region
          %847 = dma.done [#allocation15], 32
        $region148: #{tpu_custom_call.1} parent=111 // pred_fallthru
          _
        // Predicated region
        $region149: #{tpu_custom_call.1} parent=111 // pred_check
          %p848 = pneg %p349
        $region150: #{tpu_custom_call.1} parent=111 // pred_check_branch
          %850 = sbr.rel (%p848) target = $region152
        $region151: #{tpu_custom_call.1} parent=111 // pred_region
          %851 = dma.done [#allocation18], 1024
        $region152: #{tpu_custom_call.1} parent=111 // pred_fallthru
          _
        // Predicated region
        $region153: #{tpu_custom_call.1} parent=111 // pred_check
          %p852 = pneg %p370
        $region154: #{tpu_custom_call.1} parent=111 // pred_check_branch
          %854 = sbr.rel (%p852) target = $region156
        $region155: #{tpu_custom_call.1} parent=111 // pred_region
          %855 = dma.done [#allocation18], 32
        $region156: #{tpu_custom_call.1} parent=111 // pred_fallthru
          _
        // Predicated region
        $region157: #{tpu_custom_call.1} parent=111 // pred_check
          %p856 = pneg %p412
        $region158: #{tpu_custom_call.1} parent=111 // pred_check_branch
          %858 = sbr.rel (%p856) target = $region160
        $region159: #{tpu_custom_call.1} parent=111 // pred_region
          %859 = dma.done [#allocation21], 16
        $region160: #{tpu_custom_call.1} parent=111 // pred_fallthru
          _
        // Predicated region
        $region161: #{tpu_custom_call.1} parent=111 // pred_check
          %p860 = pneg %p433
        $region162: #{tpu_custom_call.1} parent=111 // pred_check_branch
          %862 = sbr.rel (%p860) target = $region164
        $region163: #{tpu_custom_call.1} parent=111 // pred_region
          %863 = dma.done [#allocation21], 1024
        $region164: #{tpu_custom_call.1} parent=111 // pred_fallthru
          _
        // Predicated region
        $region165: #{tpu_custom_call.1} parent=111 // pred_check
          %p864 = pneg %p454
        $region166: #{tpu_custom_call.1} parent=111 // pred_check_branch
          %866 = sbr.rel (%p864) target = $region168
        $region167: #{tpu_custom_call.1} parent=111 // pred_region
          %867 = dma.done [#allocation24], 16
        $region168: #{tpu_custom_call.1} parent=111 // pred_fallthru
          _
        // Predicated region
        $region169: #{tpu_custom_call.1} parent=111 // pred_check
          %p868 = pneg %p517
        $region170: #{tpu_custom_call.1} parent=111 // pred_check_branch
          %870 = sbr.rel (%p868) target = $region172
        $region171: #{tpu_custom_call.1} parent=111 // pred_region
          %871 = dma.done [#allocation24], 512
        $region172: #{tpu_custom_call.1} parent=111 // pred_fallthru
          _
        %p872 = scmp.lt.s32.totalorder %s45, 1
        %s873 = scalar_select %p872, %s45, 1
        %s874 = smul.addr %s873, 8
        %s875 = smul.addr %s874, 8
        %s876 = scalar_lea.vmem %s0, %s875
        %p877 = pneg %p66
        %p878 = pneg %p63
        %p879 = scmp.lt.s32.totalorder %s45, 1
        %s880 = scalar_select %p879, %s45, 1
        %s881 = smul.addr %s880, 4
        %s882 = smul.addr %s881, 8
        %s883 = scalar_lea.vmem %s1, %s882
        %p884 = pneg %p92
        %p885 = pneg %p89
        %p886 = scmp.lt.s32.totalorder %s45, 1
        %s887 = scalar_select %p886, %s45, 1
        %s888 = smul.addr %s887, 4
        %s889 = smul.addr %s888, 8
        %s890 = scalar_lea.vmem %s2, %s889
        %p891 = pneg %p118
        %p892 = pneg %p115
        %p893 = pneg %p139
        %p894 = pneg %p136
        %p895 = pneg %p160
        %p896 = pneg %p157
        %p897 = pneg %p181
        %p898 = pneg %p178
        %p899 = pneg %p202
        %p900 = pneg %p199
        %p901 = pneg %p223
        %p902 = pneg %p220
        %p903 = pneg %p244
        %p904 = pneg %p241
        %p905 = pneg %p265
        %p906 = pneg %p262
        %p907 = pneg %p286
        %p908 = pneg %p283
        %p909 = pneg %p307
        %p910 = pneg %p304
        %p911 = pneg %p328
        %p912 = pneg %p325
        %p913 = pneg %p349
        %p914 = pneg %p346
        %p915 = pneg %p370
        %p916 = pneg %p367
        %p917 = pneg %p391
        %p918 = pneg %p388
        %p919 = pneg %p412
        %p920 = pneg %p409
        %p921 = pneg %p433
        %p922 = pneg %p430
        %p923 = pneg %p454
        %p924 = pneg %p451
        %p925 = pneg %p475
        %p926 = pneg %p472
        %p927 = pneg %p496
        %p928 = pneg %p493
        %p929 = pneg %p517
        %p930 = pneg %p514
        %p931 = pneg %p538
        %p932 = pneg %p535
        %p933 = pneg %p564
        %p934 = pneg %p561
        %s935 = sand.u32 %s551, 1
        %s936 = scalar_lea.sflag [#allocation4], %s935
        %s937 = sand.u32 %s551, 1
        %s938 = smul.addr %s937, 8
        %s939 = scalar_lea.vmem [#allocation26], %s938
        %p940 = scmp.lt.s32.totalorder %s45, 1
        %s941 = scalar_select %p940, %s45, 1
        %s942 = smul.addr %s941, 8
        %s943 = smul.addr %s942, 8
        %s944 = scalar_lea.vmem %s0, %s943
        %p945 = scmp.lt.s32.totalorder %s45, 1
        %s946 = scalar_select %p945, %s45, 1
        %s947 = smul.addr %s946, 4
        %s948 = smul.addr %s947, 8
        %s949 = scalar_lea.vmem %s1, %s948
        %p950 = scmp.lt.s32.totalorder %s45, 1
        %s951 = scalar_select %p950, %s45, 1
        %s952 = smul.addr %s951, 4
        %s953 = smul.addr %s952, 8
        %s954 = scalar_lea.vmem %s2, %s953
        %v955 = vld [vmem:[#allocation7] sm:$0xff]
        %v956 = vld [vmem:[#allocation7 + $0x8] sm:$0xff]
        %v957 = vld [vmem:[#allocation7 + $0x10] sm:$0xff]
        %v958 = vld [vmem:[#allocation7 + $0x18] sm:$0xff]
        %v959 = vld [vmem:[#allocation8] sm:$0xff]
        %v960 = vld [vmem:[#allocation8 + $0x8] sm:$0xff]
        %v961 = vld [vmem:[#allocation8 + $0x10] sm:$0xff]
        %v962 = vld [vmem:[#allocation8 + $0x18] sm:$0xff]
        %v963 = vld [vmem:[%s944] sm:$0xff]
        %v964 = vld [vmem:[%s944 + $0x8] sm:$0xff]
        %v965 = vld [vmem:[%s944 + $0x10] sm:$0xff]
        %v966 = vld [vmem:[%s944 + $0x18] sm:$0xff]
        %v967 = vld [vmem:[%s944 + $0x20] sm:$0xff]
        %v968 = vld [vmem:[%s944 + $0x28] sm:$0xff]
        %v969 = vld [vmem:[%s944 + $0x30] sm:$0xff]
        %v970 = vld [vmem:[%s944 + $0x38] sm:$0xff]
        %v971 = vld [vmem:[#allocation10] sm:$0xff]
        %v972 = vld [vmem:[#allocation10 + $0x8] sm:$0xff]
        %v973 = vld [vmem:[#allocation11] sm:$0x1]
        %v975 = vlaneseq
        %v976 = vshrl.u32 %v975, 7
        %v977 = vsub.s32 0, %v976
        %v978 = vrot.slane %v973, %v977
        %vm980 = vcmask 130048
        %v982 = vsel %vm980, %v963, 0
        %v985 = vsel %vm980, %v964, 0
        %v988 = vsel %vm980, %v965, 0
        %v991 = vsel %vm980, %v966, 0
        %993 = vmatprep.subr.mxu0 0.0
        %994 = vmatpush1.msra.mxu0 0.0
        %995 = vmatprep.subr.mxu0 0.0
        %996 = vmatpush1.msra.mxu0 0.0
        %997 = vmatprep.subr.mxu0 0.0
        %998 = vmatpush1.msra.mxu0 0.0
        %999 = vmatprep.subr.mxu0 0.0
        %1000 = vmatpush1.msra.mxu0 0.0
        %1001 = vmatprep.subr.mxu0 0.0
        %1002 = vmatpush1.msra.mxu0 0.0
        %1003 = vmatprep.subr.mxu0 0.0
        %1004 = vmatpush1.msra.mxu0 0.0
        %1005 = vmatprep.subr.mxu0 0.0
        %1006 = vmatpush1.msra.mxu0 0.0
        %1007 = vmatprep.subr.mxu0 0.0
        %1008 = vmatpush1.msra.mxu0 0.0
        %1009 = vmatprep.subr.mxu0 0.0
        %1010 = vmatpush1.msra.mxu0 0.0
        %1011 = vmatprep.subr.mxu0 0.0
        %1012 = vmatpush1.msra.mxu0 0.0
        %1013 = vmatprep.subr.mxu0 0.0
        %1014 = vmatpush1.msra.mxu0 0.0
        %1015 = vmatprep.subr.mxu0 0.0
        %1016 = vmatpush1.msra.mxu0 0.0
        %1017 = vmatprep.subr.mxu0 0.0
        %1018 = vmatpush1.msra.mxu0 0.0
        %1019 = vmatprep.subr.mxu0 0.0
        %1020 = vmatpush1.msra.mxu0 0.0
        %1021 = vmatprep.subr.mxu0 0.0
        %1022 = vmatpush1.msra.mxu0 %v972
        %1023 = vmatprep.subr.mxu0 0.0
        %1024 = vmatpush1.msra.mxu0 %v971
        %1025 = vmatprep.subr.mxu0 0.0
        %1026 = vmatpush2.msra.mxu0 0.0
        %1027 = vmatprep.subr.mxu0 0.0
        %1028 = vmatpush2.msra.mxu0 0.0
        %1029 = vmatprep.subr.mxu0 0.0
        %1030 = vmatpush2.msra.mxu0 0.0
        %1031 = vmatprep.subr.mxu0 0.0
        %1032 = vmatpush2.msra.mxu0 0.0
        %1033 = vmatprep.subr.mxu0 0.0
        %1034 = vmatpush2.msra.mxu0 0.0
        %1035 = vmatprep.subr.mxu0 0.0
        %1036 = vmatpush2.msra.mxu0 0.0
        %1037 = vmatprep.subr.mxu0 0.0
        %1038 = vmatpush2.msra.mxu0 0.0
        %1039 = vmatprep.subr.mxu0 0.0
        %1040 = vmatpush2.msra.mxu0 0.0
        %1041 = vmatprep.subr.mxu0 0.0
        %1042 = vmatpush2.msra.mxu0 0.0
        %1043 = vmatprep.subr.mxu0 0.0
        %1044 = vmatpush2.msra.mxu0 0.0
        %1045 = vmatprep.subr.mxu0 0.0
        %1046 = vmatpush2.msra.mxu0 0.0
        %1047 = vmatprep.subr.mxu0 0.0
        %1048 = vmatpush2.msra.mxu0 0.0
        %1049 = vmatprep.subr.mxu0 0.0
        %1050 = vmatpush2.msra.mxu0 0.0
        %1051 = vmatprep.subr.mxu0 0.0
        %1052 = vmatpush2.msra.mxu0 0.0
        %1053 = vmatprep.subr.mxu0 0.0
        %1054 = vmatpush2.msra.mxu0 0.0
        %1055 = vmatprep.subr.mxu0 0.0
        %1056 = vmatpush2.msra.mxu0 0.0
        %1057 = vmatprep.mubr.f32.mxu0 0.0
        %1058 = vmatmul.mubr.f32.gmra.mxu0 %v982
        %v1059 = vpop.f32.mrf.mxu0
        %v1060 = vadd.f32 %v978, %v1059
        %v1061 = vpop.f32.mrf.mxu0
        %1062 = vmatprep.mubr.f32.mxu0 0.0
        %1063 = vmatmul.mubr.f32.gmra.mxu0 %v985
        %v1064 = vpop.f32.mrf.mxu0
        %v1065 = vadd.f32 %v978, %v1064
        %v1066 = vpop.f32.mrf.mxu0
        %1067 = vmatprep.mubr.f32.mxu0 0.0
        %1068 = vmatmul.mubr.f32.gmra.mxu0 %v988
        %v1069 = vpop.f32.mrf.mxu0
        %v1070 = vadd.f32 %v978, %v1069
        %v1071 = vpop.f32.mrf.mxu0
        %1072 = vmatprep.mubr.f32.mxu0 0.0
        %1073 = vmatmul.mubr.f32.gmra.mxu0 %v991
        %v1074 = vpop.f32.mrf.mxu0
        %v1075 = vadd.f32 %v978, %v1074
        %v1076 = vpop.f32.mrf.mxu0
        %1077 = vdwg.mxu0
        %v1078 = vmax.f32 %v1060, 0.0
        %v1079 = vmax.f32 %v1065, 0.0
        %v1080 = vmax.f32 %v1070, 0.0
        %v1081 = vmax.f32 %v1075, 0.0
        %v1082 = vmul.f32 %v1078, %v955
        %v1083 = vmul.f32 %v1079, %v956
        %v1084 = vmul.f32 %v1080, %v957
        %v1085 = vmul.f32 %v1081, %v958
        %v1086 = vld [vmem:[#allocation13] sm:$0xff]
        %v1087 = vld [vmem:[#allocation13 + $0x8] sm:$0xff]
        %v1088 = vld [vmem:[#allocation14] sm:$0x1]
        %v1090 = vlaneseq
        %v1091 = vshrl.u32 %v1090, 7
        %v1092 = vsub.s32 0, %v1091
        %v1093 = vrot.slane %v1088, %v1092
        %v1096 = vsel %vm980, %v967, 0
        %v1099 = vsel %vm980, %v968, 0
        %v1102 = vsel %vm980, %v969, 0
        %v1105 = vsel %vm980, %v970, 0
        %1107 = vmatprep.subr.mxu0 0.0
        %1108 = vmatpush1.msra.mxu0 0.0
        %1109 = vmatprep.subr.mxu0 0.0
        %1110 = vmatpush1.msra.mxu0 0.0
        %1111 = vmatprep.subr.mxu0 0.0
        %1112 = vmatpush1.msra.mxu0 0.0
        %1113 = vmatprep.subr.mxu0 0.0
        %1114 = vmatpush1.msra.mxu0 0.0
        %1115 = vmatprep.subr.mxu0 0.0
        %1116 = vmatpush1.msra.mxu0 0.0
        %1117 = vmatprep.subr.mxu0 0.0
        %1118 = vmatpush1.msra.mxu0 0.0
        %1119 = vmatprep.subr.mxu0 0.0
        %1120 = vmatpush1.msra.mxu0 0.0
        %1121 = vmatprep.subr.mxu0 0.0
        %1122 = vmatpush1.msra.mxu0 0.0
        %1123 = vmatprep.subr.mxu0 0.0
        %1124 = vmatpush1.msra.mxu0 0.0
        %1125 = vmatprep.subr.mxu0 0.0
        %1126 = vmatpush1.msra.mxu0 0.0
        %1127 = vmatprep.subr.mxu0 0.0
        %1128 = vmatpush1.msra.mxu0 0.0
        %1129 = vmatprep.subr.mxu0 0.0
        %1130 = vmatpush1.msra.mxu0 0.0
        %1131 = vmatprep.subr.mxu0 0.0
        %1132 = vmatpush1.msra.mxu0 0.0
        %1133 = vmatprep.subr.mxu0 0.0
        %1134 = vmatpush1.msra.mxu0 0.0
        %1135 = vmatprep.subr.mxu0 0.0
        %1136 = vmatpush1.msra.mxu0 %v1087
        %1137 = vmatprep.subr.mxu0 0.0
        %1138 = vmatpush1.msra.mxu0 %v1086
        %1139 = vmatprep.subr.mxu0 0.0
        %1140 = vmatpush2.msra.mxu0 0.0
        %1141 = vmatprep.subr.mxu0 0.0
        %1142 = vmatpush2.msra.mxu0 0.0
        %1143 = vmatprep.subr.mxu0 0.0
        %1144 = vmatpush2.msra.mxu0 0.0
        %1145 = vmatprep.subr.mxu0 0.0
        %1146 = vmatpush2.msra.mxu0 0.0
        %1147 = vmatprep.subr.mxu0 0.0
        %1148 = vmatpush2.msra.mxu0 0.0
        %1149 = vmatprep.subr.mxu0 0.0
        %1150 = vmatpush2.msra.mxu0 0.0
        %1151 = vmatprep.subr.mxu0 0.0
        %1152 = vmatpush2.msra.mxu0 0.0
        %1153 = vmatprep.subr.mxu0 0.0
        %1154 = vmatpush2.msra.mxu0 0.0
        %1155 = vmatprep.subr.mxu0 0.0
        %1156 = vmatpush2.msra.mxu0 0.0
        %1157 = vmatprep.subr.mxu0 0.0
        %1158 = vmatpush2.msra.mxu0 0.0
        %1159 = vmatprep.subr.mxu0 0.0
        %1160 = vmatpush2.msra.mxu0 0.0
        %1161 = vmatprep.subr.mxu0 0.0
        %1162 = vmatpush2.msra.mxu0 0.0
        %1163 = vmatprep.subr.mxu0 0.0
        %1164 = vmatpush2.msra.mxu0 0.0
        %1165 = vmatprep.subr.mxu0 0.0
        %1166 = vmatpush2.msra.mxu0 0.0
        %1167 = vmatprep.subr.mxu0 0.0
        %1168 = vmatpush2.msra.mxu0 0.0
        %1169 = vmatprep.subr.mxu0 0.0
        %1170 = vmatpush2.msra.mxu0 0.0
        %1171 = vmatprep.mubr.f32.mxu0 0.0
        %1172 = vmatmul.mubr.f32.gmra.mxu0 %v1096
        %v1173 = vpop.f32.mrf.mxu0
        %v1174 = vadd.f32 %v1093, %v1173
        %v1175 = vpop.f32.mrf.mxu0
        %1176 = vmatprep.mubr.f32.mxu0 0.0
        %1177 = vmatmul.mubr.f32.gmra.mxu0 %v1099
        %v1178 = vpop.f32.mrf.mxu0
        %v1179 = vadd.f32 %v1093, %v1178
        %v1180 = vpop.f32.mrf.mxu0
        %1181 = vmatprep.mubr.f32.mxu0 0.0
        %1182 = vmatmul.mubr.f32.gmra.mxu0 %v1102
        %v1183 = vpop.f32.mrf.mxu0
        %v1184 = vadd.f32 %v1093, %v1183
        %v1185 = vpop.f32.mrf.mxu0
        %1186 = vmatprep.mubr.f32.mxu0 0.0
        %1187 = vmatmul.mubr.f32.gmra.mxu0 %v1105
        %v1188 = vpop.f32.mrf.mxu0
        %v1189 = vadd.f32 %v1093, %v1188
        %v1190 = vpop.f32.mrf.mxu0
        %1191 = vdwg.mxu0
        %v1192 = vmax.f32 %v1174, 0.0
        %v1193 = vmax.f32 %v1179, 0.0
        %v1194 = vmax.f32 %v1184, 0.0
        %v1195 = vmax.f32 %v1189, 0.0
        %v1196 = vmul.f32 %v1192, %v959
        %v1197 = vmul.f32 %v1193, %v960
        %v1198 = vmul.f32 %v1194, %v961
        %v1199 = vmul.f32 %v1195, %v962
        %v1200 = vld [vmem:[%s949] sm:$0xff]
        %v1201 = vld [vmem:[%s949 + $0x8] sm:$0xff]
        %v1202 = vld [vmem:[%s949 + $0x10] sm:$0xff]
        %v1203 = vld [vmem:[%s949 + $0x18] sm:$0xff]
        %v1204 = vld [vmem:[%s954] sm:$0xff]
        %v1205 = vld [vmem:[%s954 + $0x8] sm:$0xff]
        %v1206 = vld [vmem:[%s954 + $0x10] sm:$0xff]
        %v1207 = vld [vmem:[%s954 + $0x18] sm:$0xff]
        %v1208 = vld [vmem:[#allocation2] sm:$0xff]
        %v1209 = vld [vmem:[#allocation5] sm:$0xff]
        %vm1210 = vcmask 261120
        %v1212 = vsel %vm1210, %v1200, 0
        %v1215 = vsel %vm1210, %v1201, 0
        %v1218 = vsel %vm1210, %v1202, 0
        %v1221 = vsel %vm1210, %v1203, 0
        %1223 = vmatprep.subr.mxu0 0.0
        %1224 = vmatpush1.msra.mxu0 0.0
        %1225 = vmatprep.subr.mxu0 0.0
        %1226 = vmatpush1.msra.mxu0 0.0
        %1227 = vmatprep.subr.mxu0 0.0
        %1228 = vmatpush1.msra.mxu0 0.0
        %1229 = vmatprep.subr.mxu0 0.0
        %1230 = vmatpush1.msra.mxu0 0.0
        %1231 = vmatprep.subr.mxu0 0.0
        %1232 = vmatpush1.msra.mxu0 0.0
        %1233 = vmatprep.subr.mxu0 0.0
        %1234 = vmatpush1.msra.mxu0 0.0
        %1235 = vmatprep.subr.mxu0 0.0
        %1236 = vmatpush1.msra.mxu0 0.0
        %1237 = vmatprep.subr.mxu0 0.0
        %1238 = vmatpush1.msra.mxu0 0.0
        %1239 = vmatprep.subr.mxu0 0.0
        %1240 = vmatpush1.msra.mxu0 0.0
        %1241 = vmatprep.subr.mxu0 0.0
        %1242 = vmatpush1.msra.mxu0 0.0
        %1243 = vmatprep.subr.mxu0 0.0
        %1244 = vmatpush1.msra.mxu0 0.0
        %1245 = vmatprep.subr.mxu0 0.0
        %1246 = vmatpush1.msra.mxu0 0.0
        %1247 = vmatprep.subr.mxu0 0.0
        %1248 = vmatpush1.msra.mxu0 %v1199
        %1249 = vmatprep.subr.mxu0 0.0
        %1250 = vmatpush1.msra.mxu0 %v1198
        %1251 = vmatprep.subr.mxu0 0.0
        %1252 = vmatpush1.msra.mxu0 %v1197
        %1253 = vmatprep.subr.mxu0 0.0
        %1254 = vmatpush1.msra.mxu0 %v1196
        %1255 = vmatprep.subr.mxu0 0.0
        %1256 = vmatpush2.msra.mxu0 0.0
        %1257 = vmatprep.subr.mxu0 0.0
        %1258 = vmatpush2.msra.mxu0 0.0
        %1259 = vmatprep.subr.mxu0 0.0
        %1260 = vmatpush2.msra.mxu0 0.0
        %1261 = vmatprep.subr.mxu0 0.0
        %1262 = vmatpush2.msra.mxu0 0.0
        %1263 = vmatprep.subr.mxu0 0.0
        %1264 = vmatpush2.msra.mxu0 0.0
        %1265 = vmatprep.subr.mxu0 0.0
        %1266 = vmatpush2.msra.mxu0 0.0
        %1267 = vmatprep.subr.mxu0 0.0
        %1268 = vmatpush2.msra.mxu0 0.0
        %1269 = vmatprep.subr.mxu0 0.0
        %1270 = vmatpush2.msra.mxu0 0.0
        %1271 = vmatprep.subr.mxu0 0.0
        %1272 = vmatpush2.msra.mxu0 0.0
        %1273 = vmatprep.subr.mxu0 0.0
        %1274 = vmatpush2.msra.mxu0 0.0
        %1275 = vmatprep.subr.mxu0 0.0
        %1276 = vmatpush2.msra.mxu0 0.0
        %1277 = vmatprep.subr.mxu0 0.0
        %1278 = vmatpush2.msra.mxu0 0.0
        %1279 = vmatprep.subr.mxu0 0.0
        %1280 = vmatpush2.msra.mxu0 0.0
        %1281 = vmatprep.subr.mxu0 0.0
        %1282 = vmatpush2.msra.mxu0 0.0
        %1283 = vmatprep.subr.mxu0 0.0
        %1284 = vmatpush2.msra.mxu0 0.0
        %1285 = vmatprep.subr.mxu0 0.0
        %1286 = vmatpush2.msra.mxu0 0.0
        %1287 = vmatprep.mubr.f32.mxu0 0.0
        %1288 = vmatmul.mubr.f32.gmra.mxu0 %v1212
        %v1289 = vpop.f32.mrf.mxu0
        %v1290 = vadd.f32 0.0, %v1289
        %v1291 = vpop.f32.mrf.mxu0
        %1292 = vmatprep.mubr.f32.mxu0 0.0
        %1293 = vmatmul.mubr.f32.gmra.mxu0 %v1215
        %v1294 = vpop.f32.mrf.mxu0
        %v1295 = vadd.f32 0.0, %v1294
        %v1296 = vpop.f32.mrf.mxu0
        %1297 = vmatprep.mubr.f32.mxu0 0.0
        %1298 = vmatmul.mubr.f32.gmra.mxu0 %v1218
        %v1299 = vpop.f32.mrf.mxu0
        %v1300 = vadd.f32 0.0, %v1299
        %v1301 = vpop.f32.mrf.mxu0
        %1302 = vmatprep.mubr.f32.mxu0 0.0
        %1303 = vmatmul.mubr.f32.gmra.mxu0 %v1221
        %v1304 = vpop.f32.mrf.mxu0
        %v1305 = vadd.f32 0.0, %v1304
        %v1306 = vpop.f32.mrf.mxu0
        %1307 = vdwg.mxu0
        %v1309 = vsel %vm1210, %v1204, 0
        %v1312 = vsel %vm1210, %v1205, 0
        %v1315 = vsel %vm1210, %v1206, 0
        %v1318 = vsel %vm1210, %v1207, 0
        %1320 = vmatprep.subr.mxu0 0.0
        %1321 = vmatpush1.msra.mxu0 0.0
        %1322 = vmatprep.subr.mxu0 0.0
        %1323 = vmatpush1.msra.mxu0 0.0
        %1324 = vmatprep.subr.mxu0 0.0
        %1325 = vmatpush1.msra.mxu0 0.0
        %1326 = vmatprep.subr.mxu0 0.0
        %1327 = vmatpush1.msra.mxu0 0.0
        %1328 = vmatprep.subr.mxu0 0.0
        %1329 = vmatpush1.msra.mxu0 0.0
        %1330 = vmatprep.subr.mxu0 0.0
        %1331 = vmatpush1.msra.mxu0 0.0
        %1332 = vmatprep.subr.mxu0 0.0
        %1333 = vmatpush1.msra.mxu0 0.0
        %1334 = vmatprep.subr.mxu0 0.0
        %1335 = vmatpush1.msra.mxu0 0.0
        %1336 = vmatprep.subr.mxu0 0.0
        %1337 = vmatpush1.msra.mxu0 0.0
        %1338 = vmatprep.subr.mxu0 0.0
        %1339 = vmatpush1.msra.mxu0 0.0
        %1340 = vmatprep.subr.mxu0 0.0
        %1341 = vmatpush1.msra.mxu0 0.0
        %1342 = vmatprep.subr.mxu0 0.0
        %1343 = vmatpush1.msra.mxu0 0.0
        %1344 = vmatprep.subr.mxu0 0.0
        %1345 = vmatpush1.msra.mxu0 %v1085
        %1346 = vmatprep.subr.mxu0 0.0
        %1347 = vmatpush1.msra.mxu0 %v1084
        %1348 = vmatprep.subr.mxu0 0.0
        %1349 = vmatpush1.msra.mxu0 %v1083
        %1350 = vmatprep.subr.mxu0 0.0
        %1351 = vmatpush1.msra.mxu0 %v1082
        %1352 = vmatprep.subr.mxu0 0.0
        %1353 = vmatpush2.msra.mxu0 0.0
        %1354 = vmatprep.subr.mxu0 0.0
        %1355 = vmatpush2.msra.mxu0 0.0
        %1356 = vmatprep.subr.mxu0 0.0
        %1357 = vmatpush2.msra.mxu0 0.0
        %1358 = vmatprep.subr.mxu0 0.0
        %1359 = vmatpush2.msra.mxu0 0.0
        %1360 = vmatprep.subr.mxu0 0.0
        %1361 = vmatpush2.msra.mxu0 0.0
        %1362 = vmatprep.subr.mxu0 0.0
        %1363 = vmatpush2.msra.mxu0 0.0
        %1364 = vmatprep.subr.mxu0 0.0
        %1365 = vmatpush2.msra.mxu0 0.0
        %1366 = vmatprep.subr.mxu0 0.0
        %1367 = vmatpush2.msra.mxu0 0.0
        %1368 = vmatprep.subr.mxu0 0.0
        %1369 = vmatpush2.msra.mxu0 0.0
        %1370 = vmatprep.subr.mxu0 0.0
        %1371 = vmatpush2.msra.mxu0 0.0
        %1372 = vmatprep.subr.mxu0 0.0
        %1373 = vmatpush2.msra.mxu0 0.0
        %1374 = vmatprep.subr.mxu0 0.0
        %1375 = vmatpush2.msra.mxu0 0.0
        %1376 = vmatprep.subr.mxu0 0.0
        %1377 = vmatpush2.msra.mxu0 0.0
        %1378 = vmatprep.subr.mxu0 0.0
        %1379 = vmatpush2.msra.mxu0 0.0
        %1380 = vmatprep.subr.mxu0 0.0
        %1381 = vmatpush2.msra.mxu0 0.0
        %1382 = vmatprep.subr.mxu0 0.0
        %1383 = vmatpush2.msra.mxu0 0.0
        %1384 = vmatprep.mubr.f32.mxu0 0.0
        %1385 = vmatmul.mubr.f32.gmra.mxu0 %v1309
        %v1386 = vpop.f32.mrf.mxu0
        %v1387 = vadd.f32 0.0, %v1386
        %v1388 = vpop.f32.mrf.mxu0
        %1389 = vmatprep.mubr.f32.mxu0 0.0
        %1390 = vmatmul.mubr.f32.gmra.mxu0 %v1312
        %v1391 = vpop.f32.mrf.mxu0
        %v1392 = vadd.f32 0.0, %v1391
        %v1393 = vpop.f32.mrf.mxu0
        %1394 = vmatprep.mubr.f32.mxu0 0.0
        %1395 = vmatmul.mubr.f32.gmra.mxu0 %v1315
        %v1396 = vpop.f32.mrf.mxu0
        %v1397 = vadd.f32 0.0, %v1396
        %v1398 = vpop.f32.mrf.mxu0
        %1399 = vmatprep.mubr.f32.mxu0 0.0
        %1400 = vmatmul.mubr.f32.gmra.mxu0 %v1318
        %v1401 = vpop.f32.mrf.mxu0
        %v1402 = vadd.f32 0.0, %v1401
        %v1403 = vpop.f32.mrf.mxu0
        %1404 = vdwg.mxu0
        %v1405 = vadd.f32 %v1082, %v1290
        %v1406 = vadd.f32 %v1083, %v1295
        %v1407 = vadd.f32 %v1084, %v1300
        %v1408 = vadd.f32 %v1085, %v1305
        %v1409 = vld [vmem:[%s11] sm:$0xff]
        %v1410 = vld [vmem:[%s11 + $0x8] sm:$0xff]
        %v1411 = vld [vmem:[%s11 + $0x10] sm:$0xff]
        %v1412 = vld [vmem:[%s11 + $0x18] sm:$0xff]
        %v1413 = vld [vmem:[#allocation16] sm:$0x1]
        %v1415 = vlaneseq
        %v1416 = vshrl.u32 %v1415, 7
        %v1417 = vsub.s32 0, %v1416
        %v1418 = vrot.slane %v1413, %v1417
        %v1421 = vsel %vm1210, %v1405, 0
        %v1424 = vsel %vm1210, %v1406, 0
        %v1427 = vsel %vm1210, %v1407, 0
        %v1430 = vsel %vm1210, %v1408, 0
        %1432 = vmatprep.subr.mxu0 0.0
        %1433 = vmatpush1.msra.mxu0 0.0
        %1434 = vmatprep.subr.mxu0 0.0
        %1435 = vmatpush1.msra.mxu0 0.0
        %1436 = vmatprep.subr.mxu0 0.0
        %1437 = vmatpush1.msra.mxu0 0.0
        %1438 = vmatprep.subr.mxu0 0.0
        %1439 = vmatpush1.msra.mxu0 0.0
        %1440 = vmatprep.subr.mxu0 0.0
        %1441 = vmatpush1.msra.mxu0 0.0
        %1442 = vmatprep.subr.mxu0 0.0
        %1443 = vmatpush1.msra.mxu0 0.0
        %1444 = vmatprep.subr.mxu0 0.0
        %1445 = vmatpush1.msra.mxu0 0.0
        %1446 = vmatprep.subr.mxu0 0.0
        %1447 = vmatpush1.msra.mxu0 0.0
        %1448 = vmatprep.subr.mxu0 0.0
        %1449 = vmatpush1.msra.mxu0 0.0
        %1450 = vmatprep.subr.mxu0 0.0
        %1451 = vmatpush1.msra.mxu0 0.0
        %1452 = vmatprep.subr.mxu0 0.0
        %1453 = vmatpush1.msra.mxu0 0.0
        %1454 = vmatprep.subr.mxu0 0.0
        %1455 = vmatpush1.msra.mxu0 0.0
        %1456 = vmatprep.subr.mxu0 0.0
        %1457 = vmatpush1.msra.mxu0 %v1412
        %1458 = vmatprep.subr.mxu0 0.0
        %1459 = vmatpush1.msra.mxu0 %v1411
        %1460 = vmatprep.subr.mxu0 0.0
        %1461 = vmatpush1.msra.mxu0 %v1410
        %1462 = vmatprep.subr.mxu0 0.0
        %1463 = vmatpush1.msra.mxu0 %v1409
        %1464 = vmatprep.subr.mxu0 0.0
        %1465 = vmatpush2.msra.mxu0 0.0
        %1466 = vmatprep.subr.mxu0 0.0
        %1467 = vmatpush2.msra.mxu0 0.0
        %1468 = vmatprep.subr.mxu0 0.0
        %1469 = vmatpush2.msra.mxu0 0.0
        %1470 = vmatprep.subr.mxu0 0.0
        %1471 = vmatpush2.msra.mxu0 0.0
        %1472 = vmatprep.subr.mxu0 0.0
        %1473 = vmatpush2.msra.mxu0 0.0
        %1474 = vmatprep.subr.mxu0 0.0
        %1475 = vmatpush2.msra.mxu0 0.0
        %1476 = vmatprep.subr.mxu0 0.0
        %1477 = vmatpush2.msra.mxu0 0.0
        %1478 = vmatprep.subr.mxu0 0.0
        %1479 = vmatpush2.msra.mxu0 0.0
        %1480 = vmatprep.subr.mxu0 0.0
        %1481 = vmatpush2.msra.mxu0 0.0
        %1482 = vmatprep.subr.mxu0 0.0
        %1483 = vmatpush2.msra.mxu0 0.0
        %1484 = vmatprep.subr.mxu0 0.0
        %1485 = vmatpush2.msra.mxu0 0.0
        %1486 = vmatprep.subr.mxu0 0.0
        %1487 = vmatpush2.msra.mxu0 0.0
        %1488 = vmatprep.subr.mxu0 0.0
        %1489 = vmatpush2.msra.mxu0 0.0
        %1490 = vmatprep.subr.mxu0 0.0
        %1491 = vmatpush2.msra.mxu0 0.0
        %1492 = vmatprep.subr.mxu0 0.0
        %1493 = vmatpush2.msra.mxu0 0.0
        %1494 = vmatprep.subr.mxu0 0.0
        %1495 = vmatpush2.msra.mxu0 0.0
        %1496 = vmatprep.mubr.f32.mxu0 0.0
        %1497 = vmatmul.mubr.f32.gmra.mxu0 %v1421
        %v1498 = vpop.f32.mrf.mxu0
        %v1499 = vadd.f32 %v1418, %v1498
        %v1500 = vpop.f32.mrf.mxu0
        %1501 = vmatprep.mubr.f32.mxu0 0.0
        %1502 = vmatmul.mubr.f32.gmra.mxu0 %v1424
        %v1503 = vpop.f32.mrf.mxu0
        %v1504 = vadd.f32 %v1418, %v1503
        %v1505 = vpop.f32.mrf.mxu0
        %1506 = vmatprep.mubr.f32.mxu0 0.0
        %1507 = vmatmul.mubr.f32.gmra.mxu0 %v1427
        %v1508 = vpop.f32.mrf.mxu0
        %v1509 = vadd.f32 %v1418, %v1508
        %v1510 = vpop.f32.mrf.mxu0
        %1511 = vmatprep.mubr.f32.mxu0 0.0
        %1512 = vmatmul.mubr.f32.gmra.mxu0 %v1430
        %v1513 = vpop.f32.mrf.mxu0
        %v1514 = vadd.f32 %v1418, %v1513
        %v1515 = vpop.f32.mrf.mxu0
        %1516 = vdwg.mxu0
        %v1517 = vmax.f32 %v1499, 0.0
        %v1518 = vmax.f32 %v1504, 0.0
        %v1519 = vmax.f32 %v1509, 0.0
        %v1520 = vmax.f32 %v1514, 0.0
        %v1521 = vmul.f32 %v1517, %v955
        %v1522 = vmul.f32 %v1518, %v956
        %v1523 = vmul.f32 %v1519, %v957
        %v1524 = vmul.f32 %v1520, %v958
        %v1525 = vadd.f32 %v1196, %v1387
        %v1526 = vadd.f32 %v1197, %v1392
        %v1527 = vadd.f32 %v1198, %v1397
        %v1528 = vadd.f32 %v1199, %v1402
        %v1529 = vld [vmem:[#allocation17] sm:$0xff]
        %v1530 = vld [vmem:[#allocation17 + $0x8] sm:$0xff]
        %v1531 = vld [vmem:[#allocation17 + $0x10] sm:$0xff]
        %v1532 = vld [vmem:[#allocation17 + $0x18] sm:$0xff]
        %v1533 = vld [vmem:[#allocation19] sm:$0x1]
        %v1535 = vlaneseq
        %v1536 = vshrl.u32 %v1535, 7
        %v1537 = vsub.s32 0, %v1536
        %v1538 = vrot.slane %v1533, %v1537
        %v1541 = vsel %vm1210, %v1525, 0
        %v1544 = vsel %vm1210, %v1526, 0
        %v1547 = vsel %vm1210, %v1527, 0
        %v1550 = vsel %vm1210, %v1528, 0
        %1552 = vmatprep.subr.mxu0 0.0
        %1553 = vmatpush1.msra.mxu0 0.0
        %1554 = vmatprep.subr.mxu0 0.0
        %1555 = vmatpush1.msra.mxu0 0.0
        %1556 = vmatprep.subr.mxu0 0.0
        %1557 = vmatpush1.msra.mxu0 0.0
        %1558 = vmatprep.subr.mxu0 0.0
        %1559 = vmatpush1.msra.mxu0 0.0
        %1560 = vmatprep.subr.mxu0 0.0
        %1561 = vmatpush1.msra.mxu0 0.0
        %1562 = vmatprep.subr.mxu0 0.0
        %1563 = vmatpush1.msra.mxu0 0.0
        %1564 = vmatprep.subr.mxu0 0.0
        %1565 = vmatpush1.msra.mxu0 0.0
        %1566 = vmatprep.subr.mxu0 0.0
        %1567 = vmatpush1.msra.mxu0 0.0
        %1568 = vmatprep.subr.mxu0 0.0
        %1569 = vmatpush1.msra.mxu0 0.0
        %1570 = vmatprep.subr.mxu0 0.0
        %1571 = vmatpush1.msra.mxu0 0.0
        %1572 = vmatprep.subr.mxu0 0.0
        %1573 = vmatpush1.msra.mxu0 0.0
        %1574 = vmatprep.subr.mxu0 0.0
        %1575 = vmatpush1.msra.mxu0 0.0
        %1576 = vmatprep.subr.mxu0 0.0
        %1577 = vmatpush1.msra.mxu0 %v1532
        %1578 = vmatprep.subr.mxu0 0.0
        %1579 = vmatpush1.msra.mxu0 %v1531
        %1580 = vmatprep.subr.mxu0 0.0
        %1581 = vmatpush1.msra.mxu0 %v1530
        %1582 = vmatprep.subr.mxu0 0.0
        %1583 = vmatpush1.msra.mxu0 %v1529
        %1584 = vmatprep.subr.mxu0 0.0
        %1585 = vmatpush2.msra.mxu0 0.0
        %1586 = vmatprep.subr.mxu0 0.0
        %1587 = vmatpush2.msra.mxu0 0.0
        %1588 = vmatprep.subr.mxu0 0.0
        %1589 = vmatpush2.msra.mxu0 0.0
        %1590 = vmatprep.subr.mxu0 0.0
        %1591 = vmatpush2.msra.mxu0 0.0
        %1592 = vmatprep.subr.mxu0 0.0
        %1593 = vmatpush2.msra.mxu0 0.0
        %1594 = vmatprep.subr.mxu0 0.0
        %1595 = vmatpush2.msra.mxu0 0.0
        %1596 = vmatprep.subr.mxu0 0.0
        %1597 = vmatpush2.msra.mxu0 0.0
        %1598 = vmatprep.subr.mxu0 0.0
        %1599 = vmatpush2.msra.mxu0 0.0
        %1600 = vmatprep.subr.mxu0 0.0
        %1601 = vmatpush2.msra.mxu0 0.0
        %1602 = vmatprep.subr.mxu0 0.0
        %1603 = vmatpush2.msra.mxu0 0.0
        %1604 = vmatprep.subr.mxu0 0.0
        %1605 = vmatpush2.msra.mxu0 0.0
        %1606 = vmatprep.subr.mxu0 0.0
        %1607 = vmatpush2.msra.mxu0 0.0
        %1608 = vmatprep.subr.mxu0 0.0
        %1609 = vmatpush2.msra.mxu0 0.0
        %1610 = vmatprep.subr.mxu0 0.0
        %1611 = vmatpush2.msra.mxu0 0.0
        %1612 = vmatprep.subr.mxu0 0.0
        %1613 = vmatpush2.msra.mxu0 0.0
        %1614 = vmatprep.subr.mxu0 0.0
        %1615 = vmatpush2.msra.mxu0 0.0
        %1616 = vmatprep.mubr.f32.mxu0 0.0
        %1617 = vmatmul.mubr.f32.gmra.mxu0 %v1541
        %v1618 = vpop.f32.mrf.mxu0
        %v1619 = vadd.f32 %v1538, %v1618
        %v1620 = vpop.f32.mrf.mxu0
        %1621 = vmatprep.mubr.f32.mxu0 0.0
        %1622 = vmatmul.mubr.f32.gmra.mxu0 %v1544
        %v1623 = vpop.f32.mrf.mxu0
        %v1624 = vadd.f32 %v1538, %v1623
        %v1625 = vpop.f32.mrf.mxu0
        %1626 = vmatprep.mubr.f32.mxu0 0.0
        %1627 = vmatmul.mubr.f32.gmra.mxu0 %v1547
        %v1628 = vpop.f32.mrf.mxu0
        %v1629 = vadd.f32 %v1538, %v1628
        %v1630 = vpop.f32.mrf.mxu0
        %1631 = vmatprep.mubr.f32.mxu0 0.0
        %1632 = vmatmul.mubr.f32.gmra.mxu0 %v1550
        %v1633 = vpop.f32.mrf.mxu0
        %v1634 = vadd.f32 %v1538, %v1633
        %v1635 = vpop.f32.mrf.mxu0
        %1636 = vdwg.mxu0
        %v1637 = vmax.f32 %v1619, 0.0
        %v1638 = vmax.f32 %v1624, 0.0
        %v1639 = vmax.f32 %v1629, 0.0
        %v1640 = vmax.f32 %v1634, 0.0
        %v1641 = vmul.f32 %v1637, %v959
        %v1642 = vmul.f32 %v1638, %v960
        %v1643 = vmul.f32 %v1639, %v961
        %v1644 = vmul.f32 %v1640, %v962
        %v1646 = vsel %vm1210, %v1208, 0
        %1648 = vmatprep.subr.mxu0 0.0
        %1649 = vmatpush1.msra.mxu0 0.0
        %1650 = vmatprep.subr.mxu0 0.0
        %1651 = vmatpush1.msra.mxu0 0.0
        %1652 = vmatprep.subr.mxu0 0.0
        %1653 = vmatpush1.msra.mxu0 0.0
        %1654 = vmatprep.subr.mxu0 0.0
        %1655 = vmatpush1.msra.mxu0 0.0
        %1656 = vmatprep.subr.mxu0 0.0
        %1657 = vmatpush1.msra.mxu0 0.0
        %1658 = vmatprep.subr.mxu0 0.0
        %1659 = vmatpush1.msra.mxu0 0.0
        %1660 = vmatprep.subr.mxu0 0.0
        %1661 = vmatpush1.msra.mxu0 0.0
        %1662 = vmatprep.subr.mxu0 0.0
        %1663 = vmatpush1.msra.mxu0 0.0
        %1664 = vmatprep.subr.mxu0 0.0
        %1665 = vmatpush1.msra.mxu0 0.0
        %1666 = vmatprep.subr.mxu0 0.0
        %1667 = vmatpush1.msra.mxu0 0.0
        %1668 = vmatprep.subr.mxu0 0.0
        %1669 = vmatpush1.msra.mxu0 0.0
        %1670 = vmatprep.subr.mxu0 0.0
        %1671 = vmatpush1.msra.mxu0 0.0
        %1672 = vmatprep.subr.mxu0 0.0
        %1673 = vmatpush1.msra.mxu0 %v1524
        %1674 = vmatprep.subr.mxu0 0.0
        %1675 = vmatpush1.msra.mxu0 %v1523
        %1676 = vmatprep.subr.mxu0 0.0
        %1677 = vmatpush1.msra.mxu0 %v1522
        %1678 = vmatprep.subr.mxu0 0.0
        %1679 = vmatpush1.msra.mxu0 %v1521
        %1680 = vmatprep.subr.mxu0 0.0
        %1681 = vmatpush2.msra.mxu0 0.0
        %1682 = vmatprep.subr.mxu0 0.0
        %1683 = vmatpush2.msra.mxu0 0.0
        %1684 = vmatprep.subr.mxu0 0.0
        %1685 = vmatpush2.msra.mxu0 0.0
        %1686 = vmatprep.subr.mxu0 0.0
        %1687 = vmatpush2.msra.mxu0 0.0
        %1688 = vmatprep.subr.mxu0 0.0
        %1689 = vmatpush2.msra.mxu0 0.0
        %1690 = vmatprep.subr.mxu0 0.0
        %1691 = vmatpush2.msra.mxu0 0.0
        %1692 = vmatprep.subr.mxu0 0.0
        %1693 = vmatpush2.msra.mxu0 0.0
        %1694 = vmatprep.subr.mxu0 0.0
        %1695 = vmatpush2.msra.mxu0 0.0
        %1696 = vmatprep.subr.mxu0 0.0
        %1697 = vmatpush2.msra.mxu0 0.0
        %1698 = vmatprep.subr.mxu0 0.0
        %1699 = vmatpush2.msra.mxu0 0.0
        %1700 = vmatprep.subr.mxu0 0.0
        %1701 = vmatpush2.msra.mxu0 0.0
        %1702 = vmatprep.subr.mxu0 0.0
        %1703 = vmatpush2.msra.mxu0 0.0
        %1704 = vmatprep.subr.mxu0 0.0
        %1705 = vmatpush2.msra.mxu0 0.0
        %1706 = vmatprep.subr.mxu0 0.0
        %1707 = vmatpush2.msra.mxu0 0.0
        %1708 = vmatprep.subr.mxu0 0.0
        %1709 = vmatpush2.msra.mxu0 0.0
        %1710 = vmatprep.subr.mxu0 0.0
        %1711 = vmatpush2.msra.mxu0 0.0
        %1712 = vmatprep.mubr.f32.mxu0 0.0
        %1713 = vmatmul.mubr.f32.gmra.mxu0 %v1646
        %v1714 = vpop.f32.mrf.mxu0
        %v1715 = vadd.f32 0.0, %v1714
        %v1716 = vpop.f32.mrf.mxu0
        %1717 = vdwg.mxu0
        %v1719 = vsel %vm1210, %v1209, 0
        %1721 = vmatprep.subr.mxu0 0.0
        %1722 = vmatpush1.msra.mxu0 0.0
        %1723 = vmatprep.subr.mxu0 0.0
        %1724 = vmatpush1.msra.mxu0 0.0
        %1725 = vmatprep.subr.mxu0 0.0
        %1726 = vmatpush1.msra.mxu0 0.0
        %1727 = vmatprep.subr.mxu0 0.0
        %1728 = vmatpush1.msra.mxu0 0.0
        %1729 = vmatprep.subr.mxu0 0.0
        %1730 = vmatpush1.msra.mxu0 0.0
        %1731 = vmatprep.subr.mxu0 0.0
        %1732 = vmatpush1.msra.mxu0 0.0
        %1733 = vmatprep.subr.mxu0 0.0
        %1734 = vmatpush1.msra.mxu0 0.0
        %1735 = vmatprep.subr.mxu0 0.0
        %1736 = vmatpush1.msra.mxu0 0.0
        %1737 = vmatprep.subr.mxu0 0.0
        %1738 = vmatpush1.msra.mxu0 0.0
        %1739 = vmatprep.subr.mxu0 0.0
        %1740 = vmatpush1.msra.mxu0 0.0
        %1741 = vmatprep.subr.mxu0 0.0
        %1742 = vmatpush1.msra.mxu0 0.0
        %1743 = vmatprep.subr.mxu0 0.0
        %1744 = vmatpush1.msra.mxu0 0.0
        %1745 = vmatprep.subr.mxu0 0.0
        %1746 = vmatpush1.msra.mxu0 %v1644
        %1747 = vmatprep.subr.mxu0 0.0
        %1748 = vmatpush1.msra.mxu0 %v1643
        %1749 = vmatprep.subr.mxu0 0.0
        %1750 = vmatpush1.msra.mxu0 %v1642
        %1751 = vmatprep.subr.mxu0 0.0
        %1752 = vmatpush1.msra.mxu0 %v1641
        %1753 = vmatprep.subr.mxu0 0.0
        %1754 = vmatpush2.msra.mxu0 0.0
        %1755 = vmatprep.subr.mxu0 0.0
        %1756 = vmatpush2.msra.mxu0 0.0
        %1757 = vmatprep.subr.mxu0 0.0
        %1758 = vmatpush2.msra.mxu0 0.0
        %1759 = vmatprep.subr.mxu0 0.0
        %1760 = vmatpush2.msra.mxu0 0.0
        %1761 = vmatprep.subr.mxu0 0.0
        %1762 = vmatpush2.msra.mxu0 0.0
        %1763 = vmatprep.subr.mxu0 0.0
        %1764 = vmatpush2.msra.mxu0 0.0
        %1765 = vmatprep.subr.mxu0 0.0
        %1766 = vmatpush2.msra.mxu0 0.0
        %1767 = vmatprep.subr.mxu0 0.0
        %1768 = vmatpush2.msra.mxu0 0.0
        %1769 = vmatprep.subr.mxu0 0.0
        %1770 = vmatpush2.msra.mxu0 0.0
        %1771 = vmatprep.subr.mxu0 0.0
        %1772 = vmatpush2.msra.mxu0 0.0
        %1773 = vmatprep.subr.mxu0 0.0
        %1774 = vmatpush2.msra.mxu0 0.0
        %1775 = vmatprep.subr.mxu0 0.0
        %1776 = vmatpush2.msra.mxu0 0.0
        %1777 = vmatprep.subr.mxu0 0.0
        %1778 = vmatpush2.msra.mxu0 0.0
        %1779 = vmatprep.subr.mxu0 0.0
        %1780 = vmatpush2.msra.mxu0 0.0
        %1781 = vmatprep.subr.mxu0 0.0
        %1782 = vmatpush2.msra.mxu0 0.0
        %1783 = vmatprep.subr.mxu0 0.0
        %1784 = vmatpush2.msra.mxu0 0.0
        %1785 = vmatprep.mubr.f32.mxu0 0.0
        %1786 = vmatmul.mubr.f32.gmra.mxu0 %v1719
        %v1787 = vpop.f32.mrf.mxu0
        %v1788 = vadd.f32 0.0, %v1787
        %v1789 = vpop.f32.mrf.mxu0
        %1790 = vdwg.mxu0
        %1791 = vmatprep.subr.mxu0 0.0
        %1792 = vmatpush1.msra.mxu0 0.0
        %1793 = vmatprep.subr.mxu0 0.0
        %1794 = vmatpush1.msra.mxu0 0.0
        %1795 = vmatprep.subr.mxu0 0.0
        %1796 = vmatpush1.msra.mxu0 0.0
        %1797 = vmatprep.subr.mxu0 0.0
        %1798 = vmatpush1.msra.mxu0 0.0
        %1799 = vmatprep.subr.mxu0 0.0
        %1800 = vmatpush1.msra.mxu0 0.0
        %1801 = vmatprep.subr.mxu0 0.0
        %1802 = vmatpush1.msra.mxu0 0.0
        %1803 = vmatprep.subr.mxu0 0.0
        %1804 = vmatpush1.msra.mxu0 0.0
        %1805 = vmatprep.subr.mxu0 0.0
        %1806 = vmatpush1.msra.mxu0 0.0
        %1807 = vmatprep.subr.mxu0 0.0
        %1808 = vmatpush1.msra.mxu0 0.0
        %1809 = vmatprep.subr.mxu0 0.0
        %1810 = vmatpush1.msra.mxu0 0.0
        %1811 = vmatprep.subr.mxu0 0.0
        %1812 = vmatpush1.msra.mxu0 0.0
        %1813 = vmatprep.subr.mxu0 0.0
        %1814 = vmatpush1.msra.mxu0 0.0
        %1815 = vmatprep.subr.mxu0 0.0
        %1816 = vmatpush1.msra.mxu0 %v1644
        %1817 = vmatprep.subr.mxu0 0.0
        %1818 = vmatpush1.msra.mxu0 %v1643
        %1819 = vmatprep.subr.mxu0 0.0
        %1820 = vmatpush1.msra.mxu0 %v1642
        %1821 = vmatprep.subr.mxu0 0.0
        %1822 = vmatpush1.msra.mxu0 %v1641
        %1823 = vmatprep.subr.mxu0 0.0
        %1824 = vmatpush2.msra.mxu0 0.0
        %1825 = vmatprep.subr.mxu0 0.0
        %1826 = vmatpush2.msra.mxu0 0.0
        %1827 = vmatprep.subr.mxu0 0.0
        %1828 = vmatpush2.msra.mxu0 0.0
        %1829 = vmatprep.subr.mxu0 0.0
        %1830 = vmatpush2.msra.mxu0 0.0
        %1831 = vmatprep.subr.mxu0 0.0
        %1832 = vmatpush2.msra.mxu0 0.0
        %1833 = vmatprep.subr.mxu0 0.0
        %1834 = vmatpush2.msra.mxu0 0.0
        %1835 = vmatprep.subr.mxu0 0.0
        %1836 = vmatpush2.msra.mxu0 0.0
        %1837 = vmatprep.subr.mxu0 0.0
        %1838 = vmatpush2.msra.mxu0 0.0
        %1839 = vmatprep.subr.mxu0 0.0
        %1840 = vmatpush2.msra.mxu0 0.0
        %1841 = vmatprep.subr.mxu0 0.0
        %1842 = vmatpush2.msra.mxu0 0.0
        %1843 = vmatprep.subr.mxu0 0.0
        %1844 = vmatpush2.msra.mxu0 0.0
        %1845 = vmatprep.subr.mxu0 0.0
        %1846 = vmatpush2.msra.mxu0 0.0
        %1847 = vmatprep.subr.mxu0 0.0
        %1848 = vmatpush2.msra.mxu0 0.0
        %1849 = vmatprep.subr.mxu0 0.0
        %1850 = vmatpush2.msra.mxu0 0.0
        %1851 = vmatprep.subr.mxu0 0.0
        %1852 = vmatpush2.msra.mxu0 0.0
        %1853 = vmatprep.subr.mxu0 0.0
        %1854 = vmatpush2.msra.mxu0 0.0
        %1855 = vmatprep.mubr.f32.mxu0 0.0
        %1856 = vmatmul.mubr.f32.gmra.mxu0 %v1212
        %v1857 = vpop.f32.mrf.mxu0
        %v1858 = vadd.f32 0.0, %v1857
        %v1859 = vpop.f32.mrf.mxu0
        %1860 = vmatprep.mubr.f32.mxu0 0.0
        %1861 = vmatmul.mubr.f32.gmra.mxu0 %v1215
        %v1862 = vpop.f32.mrf.mxu0
        %v1863 = vadd.f32 0.0, %v1862
        %v1864 = vpop.f32.mrf.mxu0
        %1865 = vmatprep.mubr.f32.mxu0 0.0
        %1866 = vmatmul.mubr.f32.gmra.mxu0 %v1218
        %v1867 = vpop.f32.mrf.mxu0
        %v1868 = vadd.f32 0.0, %v1867
        %v1869 = vpop.f32.mrf.mxu0
        %1870 = vmatprep.mubr.f32.mxu0 0.0
        %1871 = vmatmul.mubr.f32.gmra.mxu0 %v1221
        %v1872 = vpop.f32.mrf.mxu0
        %v1873 = vadd.f32 0.0, %v1872
        %v1874 = vpop.f32.mrf.mxu0
        %1875 = vdwg.mxu0
        %1876 = vmatprep.subr.mxu0 0.0
        %1877 = vmatpush1.msra.mxu0 0.0
        %1878 = vmatprep.subr.mxu0 0.0
        %1879 = vmatpush1.msra.mxu0 0.0
        %1880 = vmatprep.subr.mxu0 0.0
        %1881 = vmatpush1.msra.mxu0 0.0
        %1882 = vmatprep.subr.mxu0 0.0
        %1883 = vmatpush1.msra.mxu0 0.0
        %1884 = vmatprep.subr.mxu0 0.0
        %1885 = vmatpush1.msra.mxu0 0.0
        %1886 = vmatprep.subr.mxu0 0.0
        %1887 = vmatpush1.msra.mxu0 0.0
        %1888 = vmatprep.subr.mxu0 0.0
        %1889 = vmatpush1.msra.mxu0 0.0
        %1890 = vmatprep.subr.mxu0 0.0
        %1891 = vmatpush1.msra.mxu0 0.0
        %1892 = vmatprep.subr.mxu0 0.0
        %1893 = vmatpush1.msra.mxu0 0.0
        %1894 = vmatprep.subr.mxu0 0.0
        %1895 = vmatpush1.msra.mxu0 0.0
        %1896 = vmatprep.subr.mxu0 0.0
        %1897 = vmatpush1.msra.mxu0 0.0
        %1898 = vmatprep.subr.mxu0 0.0
        %1899 = vmatpush1.msra.mxu0 0.0
        %1900 = vmatprep.subr.mxu0 0.0
        %1901 = vmatpush1.msra.mxu0 %v1524
        %1902 = vmatprep.subr.mxu0 0.0
        %1903 = vmatpush1.msra.mxu0 %v1523
        %1904 = vmatprep.subr.mxu0 0.0
        %1905 = vmatpush1.msra.mxu0 %v1522
        %1906 = vmatprep.subr.mxu0 0.0
        %1907 = vmatpush1.msra.mxu0 %v1521
        %1908 = vmatprep.subr.mxu0 0.0
        %1909 = vmatpush2.msra.mxu0 0.0
        %1910 = vmatprep.subr.mxu0 0.0
        %1911 = vmatpush2.msra.mxu0 0.0
        %1912 = vmatprep.subr.mxu0 0.0
        %1913 = vmatpush2.msra.mxu0 0.0
        %1914 = vmatprep.subr.mxu0 0.0
        %1915 = vmatpush2.msra.mxu0 0.0
        %1916 = vmatprep.subr.mxu0 0.0
        %1917 = vmatpush2.msra.mxu0 0.0
        %1918 = vmatprep.subr.mxu0 0.0
        %1919 = vmatpush2.msra.mxu0 0.0
        %1920 = vmatprep.subr.mxu0 0.0
        %1921 = vmatpush2.msra.mxu0 0.0
        %1922 = vmatprep.subr.mxu0 0.0
        %1923 = vmatpush2.msra.mxu0 0.0
        %1924 = vmatprep.subr.mxu0 0.0
        %1925 = vmatpush2.msra.mxu0 0.0
        %1926 = vmatprep.subr.mxu0 0.0
        %1927 = vmatpush2.msra.mxu0 0.0
        %1928 = vmatprep.subr.mxu0 0.0
        %1929 = vmatpush2.msra.mxu0 0.0
        %1930 = vmatprep.subr.mxu0 0.0
        %1931 = vmatpush2.msra.mxu0 0.0
        %1932 = vmatprep.subr.mxu0 0.0
        %1933 = vmatpush2.msra.mxu0 0.0
        %1934 = vmatprep.subr.mxu0 0.0
        %1935 = vmatpush2.msra.mxu0 0.0
        %1936 = vmatprep.subr.mxu0 0.0
        %1937 = vmatpush2.msra.mxu0 0.0
        %1938 = vmatprep.subr.mxu0 0.0
        %1939 = vmatpush2.msra.mxu0 0.0
        %1940 = vmatprep.mubr.f32.mxu0 0.0
        %1941 = vmatmul.mubr.f32.gmra.mxu0 %v1309
        %v1942 = vpop.f32.mrf.mxu0
        %v1943 = vadd.f32 0.0, %v1942
        %v1944 = vpop.f32.mrf.mxu0
        %1945 = vmatprep.mubr.f32.mxu0 0.0
        %1946 = vmatmul.mubr.f32.gmra.mxu0 %v1312
        %v1947 = vpop.f32.mrf.mxu0
        %v1948 = vadd.f32 0.0, %v1947
        %v1949 = vpop.f32.mrf.mxu0
        %1950 = vmatprep.mubr.f32.mxu0 0.0
        %1951 = vmatmul.mubr.f32.gmra.mxu0 %v1315
        %v1952 = vpop.f32.mrf.mxu0
        %v1953 = vadd.f32 0.0, %v1952
        %v1954 = vpop.f32.mrf.mxu0
        %1955 = vmatprep.mubr.f32.mxu0 0.0
        %1956 = vmatmul.mubr.f32.gmra.mxu0 %v1318
        %v1957 = vpop.f32.mrf.mxu0
        %v1958 = vadd.f32 0.0, %v1957
        %v1959 = vpop.f32.mrf.mxu0
        %1960 = vdwg.mxu0
        %v1961 = vadd.f32 %v1521, %v1858
        %v1962 = vadd.f32 %v1522, %v1863
        %v1963 = vadd.f32 %v1523, %v1868
        %v1964 = vadd.f32 %v1524, %v1873
        %s1965 = scalar_lea.vmem %s11, 32
        %v1966 = vld [vmem:[%s1965] sm:$0xff]
        %v1967 = vld [vmem:[%s1965 + $0x8] sm:$0xff]
        %v1968 = vld [vmem:[%s1965 + $0x10] sm:$0xff]
        %v1969 = vld [vmem:[%s1965 + $0x18] sm:$0xff]
        %s1970 = scalar_lea.vmem [#allocation16], 1
        %v1971 = vld [vmem:[%s1970] sm:$0x1]
        %v1973 = vlaneseq
        %v1974 = vshrl.u32 %v1973, 7
        %v1975 = vsub.s32 0, %v1974
        %v1976 = vrot.slane %v1971, %v1975
        %v1979 = vsel %vm1210, %v1961, 0
        %v1982 = vsel %vm1210, %v1962, 0
        %v1985 = vsel %vm1210, %v1963, 0
        %v1988 = vsel %vm1210, %v1964, 0
        %1990 = vmatprep.subr.mxu0 0.0
        %1991 = vmatpush1.msra.mxu0 0.0
        %1992 = vmatprep.subr.mxu0 0.0
        %1993 = vmatpush1.msra.mxu0 0.0
        %1994 = vmatprep.subr.mxu0 0.0
        %1995 = vmatpush1.msra.mxu0 0.0
        %1996 = vmatprep.subr.mxu0 0.0
        %1997 = vmatpush1.msra.mxu0 0.0
        %1998 = vmatprep.subr.mxu0 0.0
        %1999 = vmatpush1.msra.mxu0 0.0
        %2000 = vmatprep.subr.mxu0 0.0
        %2001 = vmatpush1.msra.mxu0 0.0
        %2002 = vmatprep.subr.mxu0 0.0
        %2003 = vmatpush1.msra.mxu0 0.0
        %2004 = vmatprep.subr.mxu0 0.0
        %2005 = vmatpush1.msra.mxu0 0.0
        %2006 = vmatprep.subr.mxu0 0.0
        %2007 = vmatpush1.msra.mxu0 0.0
        %2008 = vmatprep.subr.mxu0 0.0
        %2009 = vmatpush1.msra.mxu0 0.0
        %2010 = vmatprep.subr.mxu0 0.0
        %2011 = vmatpush1.msra.mxu0 0.0
        %2012 = vmatprep.subr.mxu0 0.0
        %2013 = vmatpush1.msra.mxu0 0.0
        %2014 = vmatprep.subr.mxu0 0.0
        %2015 = vmatpush1.msra.mxu0 %v1969
        %2016 = vmatprep.subr.mxu0 0.0
        %2017 = vmatpush1.msra.mxu0 %v1968
        %2018 = vmatprep.subr.mxu0 0.0
        %2019 = vmatpush1.msra.mxu0 %v1967
        %2020 = vmatprep.subr.mxu0 0.0
        %2021 = vmatpush1.msra.mxu0 %v1966
        %2022 = vmatprep.subr.mxu0 0.0
        %2023 = vmatpush2.msra.mxu0 0.0
        %2024 = vmatprep.subr.mxu0 0.0
        %2025 = vmatpush2.msra.mxu0 0.0
        %2026 = vmatprep.subr.mxu0 0.0
        %2027 = vmatpush2.msra.mxu0 0.0
        %2028 = vmatprep.subr.mxu0 0.0
        %2029 = vmatpush2.msra.mxu0 0.0
        %2030 = vmatprep.subr.mxu0 0.0
        %2031 = vmatpush2.msra.mxu0 0.0
        %2032 = vmatprep.subr.mxu0 0.0
        %2033 = vmatpush2.msra.mxu0 0.0
        %2034 = vmatprep.subr.mxu0 0.0
        %2035 = vmatpush2.msra.mxu0 0.0
        %2036 = vmatprep.subr.mxu0 0.0
        %2037 = vmatpush2.msra.mxu0 0.0
        %2038 = vmatprep.subr.mxu0 0.0
        %2039 = vmatpush2.msra.mxu0 0.0
        %2040 = vmatprep.subr.mxu0 0.0
        %2041 = vmatpush2.msra.mxu0 0.0
        %2042 = vmatprep.subr.mxu0 0.0
        %2043 = vmatpush2.msra.mxu0 0.0
        %2044 = vmatprep.subr.mxu0 0.0
        %2045 = vmatpush2.msra.mxu0 0.0
        %2046 = vmatprep.subr.mxu0 0.0
        %2047 = vmatpush2.msra.mxu0 0.0
        %2048 = vmatprep.subr.mxu0 0.0
        %2049 = vmatpush2.msra.mxu0 0.0
        %2050 = vmatprep.subr.mxu0 0.0
        %2051 = vmatpush2.msra.mxu0 0.0
        %2052 = vmatprep.subr.mxu0 0.0
        %2053 = vmatpush2.msra.mxu0 0.0
        %2054 = vmatprep.mubr.f32.mxu0 0.0
        %2055 = vmatmul.mubr.f32.gmra.mxu0 %v1979
        %v2056 = vpop.f32.mrf.mxu0
        %v2057 = vadd.f32 %v1976, %v2056
        %v2058 = vpop.f32.mrf.mxu0
        %2059 = vmatprep.mubr.f32.mxu0 0.0
        %2060 = vmatmul.mubr.f32.gmra.mxu0 %v1982
        %v2061 = vpop.f32.mrf.mxu0
        %v2062 = vadd.f32 %v1976, %v2061
        %v2063 = vpop.f32.mrf.mxu0
        %2064 = vmatprep.mubr.f32.mxu0 0.0
        %2065 = vmatmul.mubr.f32.gmra.mxu0 %v1985
        %v2066 = vpop.f32.mrf.mxu0
        %v2067 = vadd.f32 %v1976, %v2066
        %v2068 = vpop.f32.mrf.mxu0
        %2069 = vmatprep.mubr.f32.mxu0 0.0
        %2070 = vmatmul.mubr.f32.gmra.mxu0 %v1988
        %v2071 = vpop.f32.mrf.mxu0
        %v2072 = vadd.f32 %v1976, %v2071
        %v2073 = vpop.f32.mrf.mxu0
        %2074 = vdwg.mxu0
        %v2075 = vmax.f32 %v2057, 0.0
        %v2076 = vmax.f32 %v2062, 0.0
        %v2077 = vmax.f32 %v2067, 0.0
        %v2078 = vmax.f32 %v2072, 0.0
        %v2079 = vmul.f32 %v2075, %v955
        %v2080 = vmul.f32 %v2076, %v956
        %v2081 = vmul.f32 %v2077, %v957
        %v2082 = vmul.f32 %v2078, %v958
        %v2083 = vadd.f32 %v1641, %v1943
        %v2084 = vadd.f32 %v1642, %v1948
        %v2085 = vadd.f32 %v1643, %v1953
        %v2086 = vadd.f32 %v1644, %v1958
        %s2087 = scalar_lea.vmem [#allocation17], 32
        %v2088 = vld [vmem:[%s2087] sm:$0xff]
        %v2089 = vld [vmem:[%s2087 + $0x8] sm:$0xff]
        %v2090 = vld [vmem:[%s2087 + $0x10] sm:$0xff]
        %v2091 = vld [vmem:[%s2087 + $0x18] sm:$0xff]
        %s2092 = scalar_lea.vmem [#allocation19], 1
        %v2093 = vld [vmem:[%s2092] sm:$0x1]
        %v2095 = vlaneseq
        %v2096 = vshrl.u32 %v2095, 7
        %v2097 = vsub.s32 0, %v2096
        %v2098 = vrot.slane %v2093, %v2097
        %v2101 = vsel %vm1210, %v2083, 0
        %v2104 = vsel %vm1210, %v2084, 0
        %v2107 = vsel %vm1210, %v2085, 0
        %v2110 = vsel %vm1210, %v2086, 0
        %2112 = vmatprep.subr.mxu0 0.0
        %2113 = vmatpush1.msra.mxu0 0.0
        %2114 = vmatprep.subr.mxu0 0.0
        %2115 = vmatpush1.msra.mxu0 0.0
        %2116 = vmatprep.subr.mxu0 0.0
        %2117 = vmatpush1.msra.mxu0 0.0
        %2118 = vmatprep.subr.mxu0 0.0
        %2119 = vmatpush1.msra.mxu0 0.0
        %2120 = vmatprep.subr.mxu0 0.0
        %2121 = vmatpush1.msra.mxu0 0.0
        %2122 = vmatprep.subr.mxu0 0.0
        %2123 = vmatpush1.msra.mxu0 0.0
        %2124 = vmatprep.subr.mxu0 0.0
        %2125 = vmatpush1.msra.mxu0 0.0
        %2126 = vmatprep.subr.mxu0 0.0
        %2127 = vmatpush1.msra.mxu0 0.0
        %2128 = vmatprep.subr.mxu0 0.0
        %2129 = vmatpush1.msra.mxu0 0.0
        %2130 = vmatprep.subr.mxu0 0.0
        %2131 = vmatpush1.msra.mxu0 0.0
        %2132 = vmatprep.subr.mxu0 0.0
        %2133 = vmatpush1.msra.mxu0 0.0
        %2134 = vmatprep.subr.mxu0 0.0
        %2135 = vmatpush1.msra.mxu0 0.0
        %2136 = vmatprep.subr.mxu0 0.0
        %2137 = vmatpush1.msra.mxu0 %v2091
        %2138 = vmatprep.subr.mxu0 0.0
        %2139 = vmatpush1.msra.mxu0 %v2090
        %2140 = vmatprep.subr.mxu0 0.0
        %2141 = vmatpush1.msra.mxu0 %v2089
        %2142 = vmatprep.subr.mxu0 0.0
        %2143 = vmatpush1.msra.mxu0 %v2088
        %2144 = vmatprep.subr.mxu0 0.0
        %2145 = vmatpush2.msra.mxu0 0.0
        %2146 = vmatprep.subr.mxu0 0.0
        %2147 = vmatpush2.msra.mxu0 0.0
        %2148 = vmatprep.subr.mxu0 0.0
        %2149 = vmatpush2.msra.mxu0 0.0
        %2150 = vmatprep.subr.mxu0 0.0
        %2151 = vmatpush2.msra.mxu0 0.0
        %2152 = vmatprep.subr.mxu0 0.0
        %2153 = vmatpush2.msra.mxu0 0.0
        %2154 = vmatprep.subr.mxu0 0.0
        %2155 = vmatpush2.msra.mxu0 0.0
        %2156 = vmatprep.subr.mxu0 0.0
        %2157 = vmatpush2.msra.mxu0 0.0
        %2158 = vmatprep.subr.mxu0 0.0
        %2159 = vmatpush2.msra.mxu0 0.0
        %2160 = vmatprep.subr.mxu0 0.0
        %2161 = vmatpush2.msra.mxu0 0.0
        %2162 = vmatprep.subr.mxu0 0.0
        %2163 = vmatpush2.msra.mxu0 0.0
        %2164 = vmatprep.subr.mxu0 0.0
        %2165 = vmatpush2.msra.mxu0 0.0
        %2166 = vmatprep.subr.mxu0 0.0
        %2167 = vmatpush2.msra.mxu0 0.0
        %2168 = vmatprep.subr.mxu0 0.0
        %2169 = vmatpush2.msra.mxu0 0.0
        %2170 = vmatprep.subr.mxu0 0.0
        %2171 = vmatpush2.msra.mxu0 0.0
        %2172 = vmatprep.subr.mxu0 0.0
        %2173 = vmatpush2.msra.mxu0 0.0
        %2174 = vmatprep.subr.mxu0 0.0
        %2175 = vmatpush2.msra.mxu0 0.0
        %2176 = vmatprep.mubr.f32.mxu0 0.0
        %2177 = vmatmul.mubr.f32.gmra.mxu0 %v2101
        %v2178 = vpop.f32.mrf.mxu0
        %v2179 = vadd.f32 %v2098, %v2178
        %v2180 = vpop.f32.mrf.mxu0
        %2181 = vmatprep.mubr.f32.mxu0 0.0
        %2182 = vmatmul.mubr.f32.gmra.mxu0 %v2104
        %v2183 = vpop.f32.mrf.mxu0
        %v2184 = vadd.f32 %v2098, %v2183
        %v2185 = vpop.f32.mrf.mxu0
        %2186 = vmatprep.mubr.f32.mxu0 0.0
        %2187 = vmatmul.mubr.f32.gmra.mxu0 %v2107
        %v2188 = vpop.f32.mrf.mxu0
        %v2189 = vadd.f32 %v2098, %v2188
        %v2190 = vpop.f32.mrf.mxu0
        %2191 = vmatprep.mubr.f32.mxu0 0.0
        %2192 = vmatmul.mubr.f32.gmra.mxu0 %v2110
        %v2193 = vpop.f32.mrf.mxu0
        %v2194 = vadd.f32 %v2098, %v2193
        %v2195 = vpop.f32.mrf.mxu0
        %2196 = vdwg.mxu0
        %v2197 = vmax.f32 %v2179, 0.0
        %v2198 = vmax.f32 %v2184, 0.0
        %v2199 = vmax.f32 %v2189, 0.0
        %v2200 = vmax.f32 %v2194, 0.0
        %v2201 = vmul.f32 %v2197, %v959
        %v2202 = vmul.f32 %v2198, %v960
        %v2203 = vmul.f32 %v2199, %v961
        %v2204 = vmul.f32 %v2200, %v962
        %2205 = vmatprep.subr.mxu0 0.0
        %2206 = vmatpush1.msra.mxu0 0.0
        %2207 = vmatprep.subr.mxu0 0.0
        %2208 = vmatpush1.msra.mxu0 0.0
        %2209 = vmatprep.subr.mxu0 0.0
        %2210 = vmatpush1.msra.mxu0 0.0
        %2211 = vmatprep.subr.mxu0 0.0
        %2212 = vmatpush1.msra.mxu0 0.0
        %2213 = vmatprep.subr.mxu0 0.0
        %2214 = vmatpush1.msra.mxu0 0.0
        %2215 = vmatprep.subr.mxu0 0.0
        %2216 = vmatpush1.msra.mxu0 0.0
        %2217 = vmatprep.subr.mxu0 0.0
        %2218 = vmatpush1.msra.mxu0 0.0
        %2219 = vmatprep.subr.mxu0 0.0
        %2220 = vmatpush1.msra.mxu0 0.0
        %2221 = vmatprep.subr.mxu0 0.0
        %2222 = vmatpush1.msra.mxu0 0.0
        %2223 = vmatprep.subr.mxu0 0.0
        %2224 = vmatpush1.msra.mxu0 0.0
        %2225 = vmatprep.subr.mxu0 0.0
        %2226 = vmatpush1.msra.mxu0 0.0
        %2227 = vmatprep.subr.mxu0 0.0
        %2228 = vmatpush1.msra.mxu0 0.0
        %2229 = vmatprep.subr.mxu0 0.0
        %2230 = vmatpush1.msra.mxu0 %v2082
        %2231 = vmatprep.subr.mxu0 0.0
        %2232 = vmatpush1.msra.mxu0 %v2081
        %2233 = vmatprep.subr.mxu0 0.0
        %2234 = vmatpush1.msra.mxu0 %v2080
        %2235 = vmatprep.subr.mxu0 0.0
        %2236 = vmatpush1.msra.mxu0 %v2079
        %2237 = vmatprep.subr.mxu0 0.0
        %2238 = vmatpush2.msra.mxu0 0.0
        %2239 = vmatprep.subr.mxu0 0.0
        %2240 = vmatpush2.msra.mxu0 0.0
        %2241 = vmatprep.subr.mxu0 0.0
        %2242 = vmatpush2.msra.mxu0 0.0
        %2243 = vmatprep.subr.mxu0 0.0
        %2244 = vmatpush2.msra.mxu0 0.0
        %2245 = vmatprep.subr.mxu0 0.0
        %2246 = vmatpush2.msra.mxu0 0.0
        %2247 = vmatprep.subr.mxu0 0.0
        %2248 = vmatpush2.msra.mxu0 0.0
        %2249 = vmatprep.subr.mxu0 0.0
        %2250 = vmatpush2.msra.mxu0 0.0
        %2251 = vmatprep.subr.mxu0 0.0
        %2252 = vmatpush2.msra.mxu0 0.0
        %2253 = vmatprep.subr.mxu0 0.0
        %2254 = vmatpush2.msra.mxu0 0.0
        %2255 = vmatprep.subr.mxu0 0.0
        %2256 = vmatpush2.msra.mxu0 0.0
        %2257 = vmatprep.subr.mxu0 0.0
        %2258 = vmatpush2.msra.mxu0 0.0
        %2259 = vmatprep.subr.mxu0 0.0
        %2260 = vmatpush2.msra.mxu0 0.0
        %2261 = vmatprep.subr.mxu0 0.0
        %2262 = vmatpush2.msra.mxu0 0.0
        %2263 = vmatprep.subr.mxu0 0.0
        %2264 = vmatpush2.msra.mxu0 0.0
        %2265 = vmatprep.subr.mxu0 0.0
        %2266 = vmatpush2.msra.mxu0 0.0
        %2267 = vmatprep.subr.mxu0 0.0
        %2268 = vmatpush2.msra.mxu0 0.0
        %2269 = vmatprep.mubr.f32.mxu0 0.0
        %2270 = vmatmul.mubr.f32.gmra.mxu0 %v1646
        %v2271 = vpop.f32.mrf.mxu0
        %v2272 = vadd.f32 0.0, %v2271
        %v2273 = vpop.f32.mrf.mxu0
        %2274 = vdwg.mxu0
        %2275 = vmatprep.subr.mxu0 0.0
        %2276 = vmatpush1.msra.mxu0 0.0
        %2277 = vmatprep.subr.mxu0 0.0
        %2278 = vmatpush1.msra.mxu0 0.0
        %2279 = vmatprep.subr.mxu0 0.0
        %2280 = vmatpush1.msra.mxu0 0.0
        %2281 = vmatprep.subr.mxu0 0.0
        %2282 = vmatpush1.msra.mxu0 0.0
        %2283 = vmatprep.subr.mxu0 0.0
        %2284 = vmatpush1.msra.mxu0 0.0
        %2285 = vmatprep.subr.mxu0 0.0
        %2286 = vmatpush1.msra.mxu0 0.0
        %2287 = vmatprep.subr.mxu0 0.0
        %2288 = vmatpush1.msra.mxu0 0.0
        %2289 = vmatprep.subr.mxu0 0.0
        %2290 = vmatpush1.msra.mxu0 0.0
        %2291 = vmatprep.subr.mxu0 0.0
        %2292 = vmatpush1.msra.mxu0 0.0
        %2293 = vmatprep.subr.mxu0 0.0
        %2294 = vmatpush1.msra.mxu0 0.0
        %2295 = vmatprep.subr.mxu0 0.0
        %2296 = vmatpush1.msra.mxu0 0.0
        %2297 = vmatprep.subr.mxu0 0.0
        %2298 = vmatpush1.msra.mxu0 0.0
        %2299 = vmatprep.subr.mxu0 0.0
        %2300 = vmatpush1.msra.mxu0 %v2204
        %2301 = vmatprep.subr.mxu0 0.0
        %2302 = vmatpush1.msra.mxu0 %v2203
        %2303 = vmatprep.subr.mxu0 0.0
        %2304 = vmatpush1.msra.mxu0 %v2202
        %2305 = vmatprep.subr.mxu0 0.0
        %2306 = vmatpush1.msra.mxu0 %v2201
        %2307 = vmatprep.subr.mxu0 0.0
        %2308 = vmatpush2.msra.mxu0 0.0
        %2309 = vmatprep.subr.mxu0 0.0
        %2310 = vmatpush2.msra.mxu0 0.0
        %2311 = vmatprep.subr.mxu0 0.0
        %2312 = vmatpush2.msra.mxu0 0.0
        %2313 = vmatprep.subr.mxu0 0.0
        %2314 = vmatpush2.msra.mxu0 0.0
        %2315 = vmatprep.subr.mxu0 0.0
        %2316 = vmatpush2.msra.mxu0 0.0
        %2317 = vmatprep.subr.mxu0 0.0
        %2318 = vmatpush2.msra.mxu0 0.0
        %2319 = vmatprep.subr.mxu0 0.0
        %2320 = vmatpush2.msra.mxu0 0.0
        %2321 = vmatprep.subr.mxu0 0.0
        %2322 = vmatpush2.msra.mxu0 0.0
        %2323 = vmatprep.subr.mxu0 0.0
        %2324 = vmatpush2.msra.mxu0 0.0
        %2325 = vmatprep.subr.mxu0 0.0
        %2326 = vmatpush2.msra.mxu0 0.0
        %2327 = vmatprep.subr.mxu0 0.0
        %2328 = vmatpush2.msra.mxu0 0.0
        %2329 = vmatprep.subr.mxu0 0.0
        %2330 = vmatpush2.msra.mxu0 0.0
        %2331 = vmatprep.subr.mxu0 0.0
        %2332 = vmatpush2.msra.mxu0 0.0
        %2333 = vmatprep.subr.mxu0 0.0
        %2334 = vmatpush2.msra.mxu0 0.0
        %2335 = vmatprep.subr.mxu0 0.0
        %2336 = vmatpush2.msra.mxu0 0.0
        %2337 = vmatprep.subr.mxu0 0.0
        %2338 = vmatpush2.msra.mxu0 0.0
        %2339 = vmatprep.mubr.f32.mxu0 0.0
        %2340 = vmatmul.mubr.f32.gmra.mxu0 %v1719
        %v2341 = vpop.f32.mrf.mxu0
        %v2342 = vadd.f32 0.0, %v2341
        %v2343 = vpop.f32.mrf.mxu0
        %2344 = vdwg.mxu0
        %v2345 = vld [vmem:[#allocation20] sm:$0x1]
        %v2346 = vld [vmem:[%s15] sm:$0xff]
        %v2347 = vld [vmem:[%s15 + $0x8] sm:$0xff]
        %v2348 = vld [vmem:[%s15 + $0x10] sm:$0xff]
        %v2349 = vld [vmem:[%s15 + $0x18] sm:$0xff]
        %v2351 = vsel %vm1210, %v1715, 0
        %2353 = vmatprep.subr.mxu0 0.0
        %2354 = vmatpush1.msra.mxu0 0.0
        %2355 = vmatprep.subr.mxu0 0.0
        %2356 = vmatpush1.msra.mxu0 0.0
        %2357 = vmatprep.subr.mxu0 0.0
        %2358 = vmatpush1.msra.mxu0 0.0
        %2359 = vmatprep.subr.mxu0 0.0
        %2360 = vmatpush1.msra.mxu0 0.0
        %2361 = vmatprep.subr.mxu0 0.0
        %2362 = vmatpush1.msra.mxu0 0.0
        %2363 = vmatprep.subr.mxu0 0.0
        %2364 = vmatpush1.msra.mxu0 0.0
        %2365 = vmatprep.subr.mxu0 0.0
        %2366 = vmatpush1.msra.mxu0 0.0
        %2367 = vmatprep.subr.mxu0 0.0
        %2368 = vmatpush1.msra.mxu0 0.0
        %2369 = vmatprep.subr.mxu0 0.0
        %2370 = vmatpush1.msra.mxu0 0.0
        %2371 = vmatprep.subr.mxu0 0.0
        %2372 = vmatpush1.msra.mxu0 0.0
        %2373 = vmatprep.subr.mxu0 0.0
        %2374 = vmatpush1.msra.mxu0 0.0
        %2375 = vmatprep.subr.mxu0 0.0
        %2376 = vmatpush1.msra.mxu0 0.0
        %2377 = vmatprep.subr.mxu0 0.0
        %2378 = vmatpush1.msra.mxu0 %v2349
        %2379 = vmatprep.subr.mxu0 0.0
        %2380 = vmatpush1.msra.mxu0 %v2348
        %2381 = vmatprep.subr.mxu0 0.0
        %2382 = vmatpush1.msra.mxu0 %v2347
        %2383 = vmatprep.subr.mxu0 0.0
        %2384 = vmatpush1.msra.mxu0 %v2346
        %2385 = vmatprep.subr.mxu0 0.0
        %2386 = vmatpush2.msra.mxu0 0.0
        %2387 = vmatprep.subr.mxu0 0.0
        %2388 = vmatpush2.msra.mxu0 0.0
        %2389 = vmatprep.subr.mxu0 0.0
        %2390 = vmatpush2.msra.mxu0 0.0
        %2391 = vmatprep.subr.mxu0 0.0
        %2392 = vmatpush2.msra.mxu0 0.0
        %2393 = vmatprep.subr.mxu0 0.0
        %2394 = vmatpush2.msra.mxu0 0.0
        %2395 = vmatprep.subr.mxu0 0.0
        %2396 = vmatpush2.msra.mxu0 0.0
        %2397 = vmatprep.subr.mxu0 0.0
        %2398 = vmatpush2.msra.mxu0 0.0
        %2399 = vmatprep.subr.mxu0 0.0
        %2400 = vmatpush2.msra.mxu0 0.0
        %2401 = vmatprep.subr.mxu0 0.0
        %2402 = vmatpush2.msra.mxu0 0.0
        %2403 = vmatprep.subr.mxu0 0.0
        %2404 = vmatpush2.msra.mxu0 0.0
        %2405 = vmatprep.subr.mxu0 0.0
        %2406 = vmatpush2.msra.mxu0 0.0
        %2407 = vmatprep.subr.mxu0 0.0
        %2408 = vmatpush2.msra.mxu0 0.0
        %2409 = vmatprep.subr.mxu0 0.0
        %2410 = vmatpush2.msra.mxu0 0.0
        %2411 = vmatprep.subr.mxu0 0.0
        %2412 = vmatpush2.msra.mxu0 0.0
        %2413 = vmatprep.subr.mxu0 0.0
        %2414 = vmatpush2.msra.mxu0 0.0
        %2415 = vmatprep.subr.mxu0 0.0
        %2416 = vmatpush2.msra.mxu0 0.0
        %2417 = vmatprep.mubr.f32.mxu0 0.0
        %2418 = vmatmul.mubr.f32.gmra.mxu0 %v2351
        %v2419 = vpop.f32.mrf.mxu0
        %v2420 = vadd.f32 0.0, %v2419
        %v2421 = vpop.f32.mrf.mxu0
        %2422 = vdwg.mxu0
        %v2424 = vlaneseq
        %v2425 = vshrl.u32 %v2424, 7
        %v2426 = vsub.s32 0, %v2425
        %v2427 = vrot.slane %v2345, %v2426
        %v2429 = vadd.f32 %v2427, %v2420
        %s2430 = scalar_lea.vmem %s15, 64
        %v2431 = vld [vmem:[%s2430] sm:$0xff]
        %v2432 = vld [vmem:[%s2430 + $0x8] sm:$0xff]
        %v2433 = vld [vmem:[%s2430 + $0x10] sm:$0xff]
        %v2434 = vld [vmem:[%s2430 + $0x18] sm:$0xff]
        %v2436 = vsel %vm1210, %v1788, 0
        %2438 = vmatprep.subr.mxu0 0.0
        %2439 = vmatpush1.msra.mxu0 0.0
        %2440 = vmatprep.subr.mxu0 0.0
        %2441 = vmatpush1.msra.mxu0 0.0
        %2442 = vmatprep.subr.mxu0 0.0
        %2443 = vmatpush1.msra.mxu0 0.0
        %2444 = vmatprep.subr.mxu0 0.0
        %2445 = vmatpush1.msra.mxu0 0.0
        %2446 = vmatprep.subr.mxu0 0.0
        %2447 = vmatpush1.msra.mxu0 0.0
        %2448 = vmatprep.subr.mxu0 0.0
        %2449 = vmatpush1.msra.mxu0 0.0
        %2450 = vmatprep.subr.mxu0 0.0
        %2451 = vmatpush1.msra.mxu0 0.0
        %2452 = vmatprep.subr.mxu0 0.0
        %2453 = vmatpush1.msra.mxu0 0.0
        %2454 = vmatprep.subr.mxu0 0.0
        %2455 = vmatpush1.msra.mxu0 0.0
        %2456 = vmatprep.subr.mxu0 0.0
        %2457 = vmatpush1.msra.mxu0 0.0
        %2458 = vmatprep.subr.mxu0 0.0
        %2459 = vmatpush1.msra.mxu0 0.0
        %2460 = vmatprep.subr.mxu0 0.0
        %2461 = vmatpush1.msra.mxu0 0.0
        %2462 = vmatprep.subr.mxu0 0.0
        %2463 = vmatpush1.msra.mxu0 %v2434
        %2464 = vmatprep.subr.mxu0 0.0
        %2465 = vmatpush1.msra.mxu0 %v2433
        %2466 = vmatprep.subr.mxu0 0.0
        %2467 = vmatpush1.msra.mxu0 %v2432
        %2468 = vmatprep.subr.mxu0 0.0
        %2469 = vmatpush1.msra.mxu0 %v2431
        %2470 = vmatprep.subr.mxu0 0.0
        %2471 = vmatpush2.msra.mxu0 0.0
        %2472 = vmatprep.subr.mxu0 0.0
        %2473 = vmatpush2.msra.mxu0 0.0
        %2474 = vmatprep.subr.mxu0 0.0
        %2475 = vmatpush2.msra.mxu0 0.0
        %2476 = vmatprep.subr.mxu0 0.0
        %2477 = vmatpush2.msra.mxu0 0.0
        %2478 = vmatprep.subr.mxu0 0.0
        %2479 = vmatpush2.msra.mxu0 0.0
        %2480 = vmatprep.subr.mxu0 0.0
        %2481 = vmatpush2.msra.mxu0 0.0
        %2482 = vmatprep.subr.mxu0 0.0
        %2483 = vmatpush2.msra.mxu0 0.0
        %2484 = vmatprep.subr.mxu0 0.0
        %2485 = vmatpush2.msra.mxu0 0.0
        %2486 = vmatprep.subr.mxu0 0.0
        %2487 = vmatpush2.msra.mxu0 0.0
        %2488 = vmatprep.subr.mxu0 0.0
        %2489 = vmatpush2.msra.mxu0 0.0
        %2490 = vmatprep.subr.mxu0 0.0
        %2491 = vmatpush2.msra.mxu0 0.0
        %2492 = vmatprep.subr.mxu0 0.0
        %2493 = vmatpush2.msra.mxu0 0.0
        %2494 = vmatprep.subr.mxu0 0.0
        %2495 = vmatpush2.msra.mxu0 0.0
        %2496 = vmatprep.subr.mxu0 0.0
        %2497 = vmatpush2.msra.mxu0 0.0
        %2498 = vmatprep.subr.mxu0 0.0
        %2499 = vmatpush2.msra.mxu0 0.0
        %2500 = vmatprep.subr.mxu0 0.0
        %2501 = vmatpush2.msra.mxu0 0.0
        %2502 = vmatprep.mubr.f32.mxu0 0.0
        %2503 = vmatmul.mubr.f32.gmra.mxu0 %v2436
        %v2504 = vpop.f32.mrf.mxu0
        %v2505 = vadd.f32 0.0, %v2504
        %v2506 = vpop.f32.mrf.mxu0
        %2507 = vdwg.mxu0
        %v2508 = vadd.f32 %v2429, %v2505
        %s2509 = scalar_lea.vmem %s15, 32
        %v2510 = vld [vmem:[%s2509] sm:$0xff]
        %v2511 = vld [vmem:[%s2509 + $0x8] sm:$0xff]
        %v2512 = vld [vmem:[%s2509 + $0x10] sm:$0xff]
        %v2513 = vld [vmem:[%s2509 + $0x18] sm:$0xff]
        %v2515 = vsel %vm1210, %v2272, 0
        %2517 = vmatprep.subr.mxu0 0.0
        %2518 = vmatpush1.msra.mxu0 0.0
        %2519 = vmatprep.subr.mxu0 0.0
        %2520 = vmatpush1.msra.mxu0 0.0
        %2521 = vmatprep.subr.mxu0 0.0
        %2522 = vmatpush1.msra.mxu0 0.0
        %2523 = vmatprep.subr.mxu0 0.0
        %2524 = vmatpush1.msra.mxu0 0.0
        %2525 = vmatprep.subr.mxu0 0.0
        %2526 = vmatpush1.msra.mxu0 0.0
        %2527 = vmatprep.subr.mxu0 0.0
        %2528 = vmatpush1.msra.mxu0 0.0
        %2529 = vmatprep.subr.mxu0 0.0
        %2530 = vmatpush1.msra.mxu0 0.0
        %2531 = vmatprep.subr.mxu0 0.0
        %2532 = vmatpush1.msra.mxu0 0.0
        %2533 = vmatprep.subr.mxu0 0.0
        %2534 = vmatpush1.msra.mxu0 0.0
        %2535 = vmatprep.subr.mxu0 0.0
        %2536 = vmatpush1.msra.mxu0 0.0
        %2537 = vmatprep.subr.mxu0 0.0
        %2538 = vmatpush1.msra.mxu0 0.0
        %2539 = vmatprep.subr.mxu0 0.0
        %2540 = vmatpush1.msra.mxu0 0.0
        %2541 = vmatprep.subr.mxu0 0.0
        %2542 = vmatpush1.msra.mxu0 %v2513
        %2543 = vmatprep.subr.mxu0 0.0
        %2544 = vmatpush1.msra.mxu0 %v2512
        %2545 = vmatprep.subr.mxu0 0.0
        %2546 = vmatpush1.msra.mxu0 %v2511
        %2547 = vmatprep.subr.mxu0 0.0
        %2548 = vmatpush1.msra.mxu0 %v2510
        %2549 = vmatprep.subr.mxu0 0.0
        %2550 = vmatpush2.msra.mxu0 0.0
        %2551 = vmatprep.subr.mxu0 0.0
        %2552 = vmatpush2.msra.mxu0 0.0
        %2553 = vmatprep.subr.mxu0 0.0
        %2554 = vmatpush2.msra.mxu0 0.0
        %2555 = vmatprep.subr.mxu0 0.0
        %2556 = vmatpush2.msra.mxu0 0.0
        %2557 = vmatprep.subr.mxu0 0.0
        %2558 = vmatpush2.msra.mxu0 0.0
        %2559 = vmatprep.subr.mxu0 0.0
        %2560 = vmatpush2.msra.mxu0 0.0
        %2561 = vmatprep.subr.mxu0 0.0
        %2562 = vmatpush2.msra.mxu0 0.0
        %2563 = vmatprep.subr.mxu0 0.0
        %2564 = vmatpush2.msra.mxu0 0.0
        %2565 = vmatprep.subr.mxu0 0.0
        %2566 = vmatpush2.msra.mxu0 0.0
        %2567 = vmatprep.subr.mxu0 0.0
        %2568 = vmatpush2.msra.mxu0 0.0
        %2569 = vmatprep.subr.mxu0 0.0
        %2570 = vmatpush2.msra.mxu0 0.0
        %2571 = vmatprep.subr.mxu0 0.0
        %2572 = vmatpush2.msra.mxu0 0.0
        %2573 = vmatprep.subr.mxu0 0.0
        %2574 = vmatpush2.msra.mxu0 0.0
        %2575 = vmatprep.subr.mxu0 0.0
        %2576 = vmatpush2.msra.mxu0 0.0
        %2577 = vmatprep.subr.mxu0 0.0
        %2578 = vmatpush2.msra.mxu0 0.0
        %2579 = vmatprep.subr.mxu0 0.0
        %2580 = vmatpush2.msra.mxu0 0.0
        %2581 = vmatprep.mubr.f32.mxu0 0.0
        %2582 = vmatmul.mubr.f32.gmra.mxu0 %v2515
        %v2583 = vpop.f32.mrf.mxu0
        %v2584 = vadd.f32 0.0, %v2583
        %v2585 = vpop.f32.mrf.mxu0
        %2586 = vdwg.mxu0
        %v2587 = vadd.f32 %v2508, %v2584
        %s2588 = scalar_lea.vmem %s15, 96
        %v2589 = vld [vmem:[%s2588] sm:$0xff]
        %v2590 = vld [vmem:[%s2588 + $0x8] sm:$0xff]
        %v2591 = vld [vmem:[%s2588 + $0x10] sm:$0xff]
        %v2592 = vld [vmem:[%s2588 + $0x18] sm:$0xff]
        %v2594 = vsel %vm1210, %v2342, 0
        %2596 = vmatprep.subr.mxu0 0.0
        %2597 = vmatpush1.msra.mxu0 0.0
        %2598 = vmatprep.subr.mxu0 0.0
        %2599 = vmatpush1.msra.mxu0 0.0
        %2600 = vmatprep.subr.mxu0 0.0
        %2601 = vmatpush1.msra.mxu0 0.0
        %2602 = vmatprep.subr.mxu0 0.0
        %2603 = vmatpush1.msra.mxu0 0.0
        %2604 = vmatprep.subr.mxu0 0.0
        %2605 = vmatpush1.msra.mxu0 0.0
        %2606 = vmatprep.subr.mxu0 0.0
        %2607 = vmatpush1.msra.mxu0 0.0
        %2608 = vmatprep.subr.mxu0 0.0
        %2609 = vmatpush1.msra.mxu0 0.0
        %2610 = vmatprep.subr.mxu0 0.0
        %2611 = vmatpush1.msra.mxu0 0.0
        %2612 = vmatprep.subr.mxu0 0.0
        %2613 = vmatpush1.msra.mxu0 0.0
        %2614 = vmatprep.subr.mxu0 0.0
        %2615 = vmatpush1.msra.mxu0 0.0
        %2616 = vmatprep.subr.mxu0 0.0
        %2617 = vmatpush1.msra.mxu0 0.0
        %2618 = vmatprep.subr.mxu0 0.0
        %2619 = vmatpush1.msra.mxu0 0.0
        %2620 = vmatprep.subr.mxu0 0.0
        %2621 = vmatpush1.msra.mxu0 %v2592
        %2622 = vmatprep.subr.mxu0 0.0
        %2623 = vmatpush1.msra.mxu0 %v2591
        %2624 = vmatprep.subr.mxu0 0.0
        %2625 = vmatpush1.msra.mxu0 %v2590
        %2626 = vmatprep.subr.mxu0 0.0
        %2627 = vmatpush1.msra.mxu0 %v2589
        %2628 = vmatprep.subr.mxu0 0.0
        %2629 = vmatpush2.msra.mxu0 0.0
        %2630 = vmatprep.subr.mxu0 0.0
        %2631 = vmatpush2.msra.mxu0 0.0
        %2632 = vmatprep.subr.mxu0 0.0
        %2633 = vmatpush2.msra.mxu0 0.0
        %2634 = vmatprep.subr.mxu0 0.0
        %2635 = vmatpush2.msra.mxu0 0.0
        %2636 = vmatprep.subr.mxu0 0.0
        %2637 = vmatpush2.msra.mxu0 0.0
        %2638 = vmatprep.subr.mxu0 0.0
        %2639 = vmatpush2.msra.mxu0 0.0
        %2640 = vmatprep.subr.mxu0 0.0
        %2641 = vmatpush2.msra.mxu0 0.0
        %2642 = vmatprep.subr.mxu0 0.0
        %2643 = vmatpush2.msra.mxu0 0.0
        %2644 = vmatprep.subr.mxu0 0.0
        %2645 = vmatpush2.msra.mxu0 0.0
        %2646 = vmatprep.subr.mxu0 0.0
        %2647 = vmatpush2.msra.mxu0 0.0
        %2648 = vmatprep.subr.mxu0 0.0
        %2649 = vmatpush2.msra.mxu0 0.0
        %2650 = vmatprep.subr.mxu0 0.0
        %2651 = vmatpush2.msra.mxu0 0.0
        %2652 = vmatprep.subr.mxu0 0.0
        %2653 = vmatpush2.msra.mxu0 0.0
        %2654 = vmatprep.subr.mxu0 0.0
        %2655 = vmatpush2.msra.mxu0 0.0
        %2656 = vmatprep.subr.mxu0 0.0
        %2657 = vmatpush2.msra.mxu0 0.0
        %2658 = vmatprep.subr.mxu0 0.0
        %2659 = vmatpush2.msra.mxu0 0.0
        %2660 = vmatprep.mubr.f32.mxu0 0.0
        %2661 = vmatmul.mubr.f32.gmra.mxu0 %v2594
        %v2662 = vpop.f32.mrf.mxu0
        %v2663 = vadd.f32 0.0, %v2662
        %v2664 = vpop.f32.mrf.mxu0
        %2665 = vdwg.mxu0
        %v2666 = vadd.f32 %v2587, %v2663
        %v2667 = vmax.f32 %v2666, 0.0
        %v2668 = vld [vmem:[#allocation22] sm:$0xff]
        %v2669 = vld [vmem:[#allocation22 + $0x8] sm:$0xff]
        %v2670 = vld [vmem:[#allocation22 + $0x10] sm:$0xff]
        %v2671 = vld [vmem:[#allocation22 + $0x18] sm:$0xff]
        %v2672 = vld [vmem:[#allocation22 + $0x20] sm:$0xff]
        %v2673 = vld [vmem:[#allocation22 + $0x28] sm:$0xff]
        %v2674 = vld [vmem:[#allocation22 + $0x30] sm:$0xff]
        %v2675 = vld [vmem:[#allocation22 + $0x38] sm:$0xff]
        %v2676 = vld [vmem:[#allocation23] sm:$0x1]
        %v2678 = vlaneseq
        %v2679 = vshrl.u32 %v2678, 7
        %v2680 = vsub.s32 0, %v2679
        %v2681 = vrot.slane %v2676, %v2680
        %vm2683 = vcmask 523264
        %v2685 = vsel %vm2683, %v2667, 0
        %2687 = vmatprep.subr.mxu0 0.0
        %2688 = vmatpush1.msra.mxu0 0.0
        %2689 = vmatprep.subr.mxu0 0.0
        %2690 = vmatpush1.msra.mxu0 0.0
        %2691 = vmatprep.subr.mxu0 0.0
        %2692 = vmatpush1.msra.mxu0 0.0
        %2693 = vmatprep.subr.mxu0 0.0
        %2694 = vmatpush1.msra.mxu0 0.0
        %2695 = vmatprep.subr.mxu0 0.0
        %2696 = vmatpush1.msra.mxu0 0.0
        %2697 = vmatprep.subr.mxu0 0.0
        %2698 = vmatpush1.msra.mxu0 0.0
        %2699 = vmatprep.subr.mxu0 0.0
        %2700 = vmatpush1.msra.mxu0 0.0
        %2701 = vmatprep.subr.mxu0 0.0
        %2702 = vmatpush1.msra.mxu0 0.0
        %2703 = vmatprep.subr.mxu0 0.0
        %2704 = vmatpush1.msra.mxu0 %v2675
        %2705 = vmatprep.subr.mxu0 0.0
        %2706 = vmatpush1.msra.mxu0 %v2674
        %2707 = vmatprep.subr.mxu0 0.0
        %2708 = vmatpush1.msra.mxu0 %v2673
        %2709 = vmatprep.subr.mxu0 0.0
        %2710 = vmatpush1.msra.mxu0 %v2672
        %2711 = vmatprep.subr.mxu0 0.0
        %2712 = vmatpush1.msra.mxu0 %v2671
        %2713 = vmatprep.subr.mxu0 0.0
        %2714 = vmatpush1.msra.mxu0 %v2670
        %2715 = vmatprep.subr.mxu0 0.0
        %2716 = vmatpush1.msra.mxu0 %v2669
        %2717 = vmatprep.subr.mxu0 0.0
        %2718 = vmatpush1.msra.mxu0 %v2668
        %2719 = vmatprep.subr.mxu0 0.0
        %2720 = vmatpush2.msra.mxu0 0.0
        %2721 = vmatprep.subr.mxu0 0.0
        %2722 = vmatpush2.msra.mxu0 0.0
        %2723 = vmatprep.subr.mxu0 0.0
        %2724 = vmatpush2.msra.mxu0 0.0
        %2725 = vmatprep.subr.mxu0 0.0
        %2726 = vmatpush2.msra.mxu0 0.0
        %2727 = vmatprep.subr.mxu0 0.0
        %2728 = vmatpush2.msra.mxu0 0.0
        %2729 = vmatprep.subr.mxu0 0.0
        %2730 = vmatpush2.msra.mxu0 0.0
        %2731 = vmatprep.subr.mxu0 0.0
        %2732 = vmatpush2.msra.mxu0 0.0
        %2733 = vmatprep.subr.mxu0 0.0
        %2734 = vmatpush2.msra.mxu0 0.0
        %2735 = vmatprep.subr.mxu0 0.0
        %2736 = vmatpush2.msra.mxu0 0.0
        %2737 = vmatprep.subr.mxu0 0.0
        %2738 = vmatpush2.msra.mxu0 0.0
        %2739 = vmatprep.subr.mxu0 0.0
        %2740 = vmatpush2.msra.mxu0 0.0
        %2741 = vmatprep.subr.mxu0 0.0
        %2742 = vmatpush2.msra.mxu0 0.0
        %2743 = vmatprep.subr.mxu0 0.0
        %2744 = vmatpush2.msra.mxu0 0.0
        %2745 = vmatprep.subr.mxu0 0.0
        %2746 = vmatpush2.msra.mxu0 0.0
        %2747 = vmatprep.subr.mxu0 0.0
        %2748 = vmatpush2.msra.mxu0 0.0
        %2749 = vmatprep.subr.mxu0 0.0
        %2750 = vmatpush2.msra.mxu0 0.0
        %2751 = vmatprep.mubr.f32.mxu0 0.0
        %2752 = vmatmul.mubr.f32.gmra.mxu0 %v2685
        %v2753 = vpop.f32.mrf.mxu0
        %v2754 = vadd.f32 %v2681, %v2753
        %v2755 = vpop.f32.mrf.mxu0
        %2756 = vdwg.mxu0
        %v2757 = vld [vmem:[%s19] sm:$0xff]
        %v2758 = vld [vmem:[%s19 + $0x8] sm:$0xff]
        %v2759 = vld [vmem:[%s19 + $0x10] sm:$0xff]
        %v2760 = vld [vmem:[%s19 + $0x18] sm:$0xff]
        %v2761 = vld [vmem:[%s19 + $0x20] sm:$0xff]
        %v2762 = vld [vmem:[%s19 + $0x28] sm:$0xff]
        %v2763 = vld [vmem:[%s19 + $0x30] sm:$0xff]
        %v2764 = vld [vmem:[%s19 + $0x38] sm:$0xff]
        %v2765 = vld [vmem:[%s19 + $0x40] sm:$0xff]
        %v2766 = vld [vmem:[%s19 + $0x48] sm:$0xff]
        %v2767 = vld [vmem:[%s19 + $0x50] sm:$0xff]
        %v2768 = vld [vmem:[%s19 + $0x58] sm:$0xff]
        %v2769 = vld [vmem:[%s19 + $0x60] sm:$0xff]
        %v2770 = vld [vmem:[%s19 + $0x68] sm:$0xff]
        %v2771 = vld [vmem:[%s19 + $0x70] sm:$0xff]
        %v2772 = vld [vmem:[%s19 + $0x78] sm:$0xff]
        %v2773 = vld [vmem:[%s20] sm:$0x1]
        %v2775 = vlaneseq
        %v2776 = vshrl.u32 %v2775, 7
        %v2777 = vsub.s32 0, %v2776
        %v2778 = vrot.slane %v2773, %v2777
        %2780 = vmatprep.subr.mxu0 0.0
        %2781 = vmatpush1.msra.mxu0 %v2772
        %2782 = vmatprep.subr.mxu0 0.0
        %2783 = vmatpush1.msra.mxu0 %v2771
        %2784 = vmatprep.subr.mxu0 0.0
        %2785 = vmatpush1.msra.mxu0 %v2770
        %2786 = vmatprep.subr.mxu0 0.0
        %2787 = vmatpush1.msra.mxu0 %v2769
        %2788 = vmatprep.subr.mxu0 0.0
        %2789 = vmatpush1.msra.mxu0 %v2768
        %2790 = vmatprep.subr.mxu0 0.0
        %2791 = vmatpush1.msra.mxu0 %v2767
        %2792 = vmatprep.subr.mxu0 0.0
        %2793 = vmatpush1.msra.mxu0 %v2766
        %2794 = vmatprep.subr.mxu0 0.0
        %2795 = vmatpush1.msra.mxu0 %v2765
        %2796 = vmatprep.subr.mxu0 0.0
        %2797 = vmatpush1.msra.mxu0 %v2764
        %2798 = vmatprep.subr.mxu0 0.0
        %2799 = vmatpush1.msra.mxu0 %v2763
        %2800 = vmatprep.subr.mxu0 0.0
        %2801 = vmatpush1.msra.mxu0 %v2762
        %2802 = vmatprep.subr.mxu0 0.0
        %2803 = vmatpush1.msra.mxu0 %v2761
        %2804 = vmatprep.subr.mxu0 0.0
        %2805 = vmatpush1.msra.mxu0 %v2760
        %2806 = vmatprep.subr.mxu0 0.0
        %2807 = vmatpush1.msra.mxu0 %v2759
        %2808 = vmatprep.subr.mxu0 0.0
        %2809 = vmatpush1.msra.mxu0 %v2758
        %2810 = vmatprep.subr.mxu0 0.0
        %2811 = vmatpush1.msra.mxu0 %v2757
        %2812 = vmatprep.subr.mxu0 0.0
        %2813 = vmatpush2.msra.mxu0 0.0
        %2814 = vmatprep.subr.mxu0 0.0
        %2815 = vmatpush2.msra.mxu0 0.0
        %2816 = vmatprep.subr.mxu0 0.0
        %2817 = vmatpush2.msra.mxu0 0.0
        %2818 = vmatprep.subr.mxu0 0.0
        %2819 = vmatpush2.msra.mxu0 0.0
        %2820 = vmatprep.subr.mxu0 0.0
        %2821 = vmatpush2.msra.mxu0 0.0
        %2822 = vmatprep.subr.mxu0 0.0
        %2823 = vmatpush2.msra.mxu0 0.0
        %2824 = vmatprep.subr.mxu0 0.0
        %2825 = vmatpush2.msra.mxu0 0.0
        %2826 = vmatprep.subr.mxu0 0.0
        %2827 = vmatpush2.msra.mxu0 0.0
        %2828 = vmatprep.subr.mxu0 0.0
        %2829 = vmatpush2.msra.mxu0 0.0
        %2830 = vmatprep.subr.mxu0 0.0
        %2831 = vmatpush2.msra.mxu0 0.0
        %2832 = vmatprep.subr.mxu0 0.0
        %2833 = vmatpush2.msra.mxu0 0.0
        %2834 = vmatprep.subr.mxu0 0.0
        %2835 = vmatpush2.msra.mxu0 0.0
        %2836 = vmatprep.subr.mxu0 0.0
        %2837 = vmatpush2.msra.mxu0 0.0
        %2838 = vmatprep.subr.mxu0 0.0
        %2839 = vmatpush2.msra.mxu0 0.0
        %2840 = vmatprep.subr.mxu0 0.0
        %2841 = vmatpush2.msra.mxu0 0.0
        %2842 = vmatprep.subr.mxu0 0.0
        %2843 = vmatpush2.msra.mxu0 0.0
        %2844 = vmatprep.mubr.f32.mxu0 0.0
        %2845 = vmatmul.mubr.f32.gmra.mxu0 %v2754
        %v2846 = vpop.f32.mrf.mxu0
        %v2847 = vadd.f32 %v2778, %v2846
        %v2848 = vpop.f32.mrf.mxu0
        %2849 = vdwg.mxu0
        %v2850 = vmax.f32 %v2847, 0.0
        %v2851 = vld [vmem:[#allocation25] sm:$0xff]
        %v2852 = vld [vmem:[#allocation25 + $0x8] sm:$0xff]
        %v2853 = vld [vmem:[#allocation25 + $0x10] sm:$0xff]
        %v2854 = vld [vmem:[#allocation25 + $0x18] sm:$0xff]
        %v2855 = vld [vmem:[%s22] sm:$0x1]
        %v2857 = vlaneseq
        %v2858 = vshrl.u32 %v2857, 7
        %v2859 = vsub.s32 0, %v2858
        %v2860 = vrot.slane %v2855, %v2859
        %v2863 = vsel %vm1210, %v2850, 0
        %2865 = vmatprep.subr.mxu0 0.0
        %2866 = vmatpush1.msra.mxu0 0.0
        %2867 = vmatprep.subr.mxu0 0.0
        %2868 = vmatpush1.msra.mxu0 0.0
        %2869 = vmatprep.subr.mxu0 0.0
        %2870 = vmatpush1.msra.mxu0 0.0
        %2871 = vmatprep.subr.mxu0 0.0
        %2872 = vmatpush1.msra.mxu0 0.0
        %2873 = vmatprep.subr.mxu0 0.0
        %2874 = vmatpush1.msra.mxu0 0.0
        %2875 = vmatprep.subr.mxu0 0.0
        %2876 = vmatpush1.msra.mxu0 0.0
        %2877 = vmatprep.subr.mxu0 0.0
        %2878 = vmatpush1.msra.mxu0 0.0
        %2879 = vmatprep.subr.mxu0 0.0
        %2880 = vmatpush1.msra.mxu0 0.0
        %2881 = vmatprep.subr.mxu0 0.0
        %2882 = vmatpush1.msra.mxu0 0.0
        %2883 = vmatprep.subr.mxu0 0.0
        %2884 = vmatpush1.msra.mxu0 0.0
        %2885 = vmatprep.subr.mxu0 0.0
        %2886 = vmatpush1.msra.mxu0 0.0
        %2887 = vmatprep.subr.mxu0 0.0
        %2888 = vmatpush1.msra.mxu0 0.0
        %2889 = vmatprep.subr.mxu0 0.0
        %2890 = vmatpush1.msra.mxu0 %v2854
        %2891 = vmatprep.subr.mxu0 0.0
        %2892 = vmatpush1.msra.mxu0 %v2853
        %2893 = vmatprep.subr.mxu0 0.0
        %2894 = vmatpush1.msra.mxu0 %v2852
        %2895 = vmatprep.subr.mxu0 0.0
        %2896 = vmatpush1.msra.mxu0 %v2851
        %2897 = vmatprep.subr.mxu0 0.0
        %2898 = vmatpush2.msra.mxu0 0.0
        %2899 = vmatprep.subr.mxu0 0.0
        %2900 = vmatpush2.msra.mxu0 0.0
        %2901 = vmatprep.subr.mxu0 0.0
        %2902 = vmatpush2.msra.mxu0 0.0
        %2903 = vmatprep.subr.mxu0 0.0
        %2904 = vmatpush2.msra.mxu0 0.0
        %2905 = vmatprep.subr.mxu0 0.0
        %2906 = vmatpush2.msra.mxu0 0.0
        %2907 = vmatprep.subr.mxu0 0.0
        %2908 = vmatpush2.msra.mxu0 0.0
        %2909 = vmatprep.subr.mxu0 0.0
        %2910 = vmatpush2.msra.mxu0 0.0
        %2911 = vmatprep.subr.mxu0 0.0
        %2912 = vmatpush2.msra.mxu0 0.0
        %2913 = vmatprep.subr.mxu0 0.0
        %2914 = vmatpush2.msra.mxu0 0.0
        %2915 = vmatprep.subr.mxu0 0.0
        %2916 = vmatpush2.msra.mxu0 0.0
        %2917 = vmatprep.subr.mxu0 0.0
        %2918 = vmatpush2.msra.mxu0 0.0
        %2919 = vmatprep.subr.mxu0 0.0
        %2920 = vmatpush2.msra.mxu0 0.0
        %2921 = vmatprep.subr.mxu0 0.0
        %2922 = vmatpush2.msra.mxu0 0.0
        %2923 = vmatprep.subr.mxu0 0.0
        %2924 = vmatpush2.msra.mxu0 0.0
        %2925 = vmatprep.subr.mxu0 0.0
        %2926 = vmatpush2.msra.mxu0 0.0
        %2927 = vmatprep.subr.mxu0 0.0
        %2928 = vmatpush2.msra.mxu0 0.0
        %2929 = vmatprep.mubr.f32.mxu0 0.0
        %2930 = vmatmul.mubr.f32.gmra.mxu0 %v2863
        %v2931 = vpop.f32.mrf.mxu0
        %v2932 = vadd.f32 %v2860, %v2931
        %v2933 = vpop.f32.mrf.mxu0
        %2934 = vdwg.mxu0
        %2935 = vst [vmem:[%s939] sm:$0xff] %v2932
        %s2936 = sand.u32 %s551, 1
        %s2937 = scalar_lea.sflag [#allocation4], %s2936
        %s2938 = sand.u32 %s551, 1
        %s2939 = smul.addr %s2938, 8
        %s2940 = scalar_lea.vmem [#allocation26], %s2939
        // Predicated region
        $region173: #{tpu_custom_call.1} parent=111 // pred_check
          %p2941 = pneg %p561
        $region174: #{tpu_custom_call.1} parent=111 // pred_check_branch
          %2943 = sbr.rel (%p2941) target = $region176
        $region175: #{tpu_custom_call.1} parent=111 // pred_region
          %s2945 = ssub.s32 128, 128
          %2946 = vsyncadd %s2937, %s2945
          %s2947 = smul.addr %s45, 128
          %s2948 = scalar_lea.hbm %s23, %s2947
          %s2950 = sshll.u32 %s2940, 4
          %s2951 = int_to_ptr.vmem [resolvable:$true] %s2950
          %2953 = dma.vmem_to_hbm [thread:$0]  %s2951, 128, %s2948, %s2937
        $region176: #{tpu_custom_call.1} parent=111 // pred_fallthru
          _
      $region112: #{tpu_custom_call.1} parent=5 // pred_fallthru
        _
      %p2954 = scmp.le.s32.totalorder 2, %s40
      // Predicated region
      $region177: #{tpu_custom_call.1} parent=5 // pred_check
        %p2955 = pneg %p2954
      $region178: #{tpu_custom_call.1} parent=5 // pred_check_branch
        %2957 = sbr.rel (%p2955) target = $region180
      $region179: #{tpu_custom_call.1} parent=5 // pred_region
        %s2958 = ssub.s32 %s40, 2
        // Predicated region
        $region181: #{tpu_custom_call.1} parent=179 // pred_check
          %p2959 = pneg %p567
        $region182: #{tpu_custom_call.1} parent=179 // pred_check_branch
          %2961 = sbr.rel (%p2959) target = $region184
        $region183: #{tpu_custom_call.1} parent=179 // pred_region
          %s2962 = sand.u32 %s552, 1
          %s2963 = scalar_lea.sflag [#allocation4], %s2962
          %s2964 = sand.u32 %s552, 1
          %s2965 = smul.addr %s2964, 8
          %s2966 = scalar_lea.vmem [#allocation26], %s2965
          %2967 = dma.done %s2963, 128
        $region184: #{tpu_custom_call.1} parent=179 // pred_fallthru
          _
      $region180: #{tpu_custom_call.1} parent=5 // pred_fallthru
        _
    $region6: #{tpu_custom_call.1} parent=1 // loop_footer
      %s44 = sadd.s32 1, %s40
    $region7: #{tpu_custom_call.1} parent=1 // loop_footer_branch
      %39 = sbr.rel target = $region3
    $region8: #{tpu_custom_call.1} parent=1 // loop_exit
      _
    %2968 = vsyncpa [#allocation3], 1
    %s2969 = scalar_lea.sflag [#allocation3], 1
    %2970 = vsyncpa %s2969, 1
    %2971 = vsyncpa [#allocation6], 1
    %2972 = vsyncpa [#allocation9], 1
    %2973 = vsyncpa [#allocation12], 1
    %2974 = vsyncpa [#allocation15], 1
    %2975 = vsyncpa [#allocation18], 1
    %2976 = vsyncpa [#allocation21], 1
    %2977 = vsyncpa [#allocation24], 1
    %2978 = vsyncpa [#allocation4], 1
    %s2979 = scalar_lea.sflag [#allocation4], 1
    %2980 = vsyncpa %s2979, 1

</llo_original>
